<compile_context>
chip_gen: v5e
topology: v5e:2x2
jax: 0.10.0
libtpu: 0.0.40
codegen_flags: <defaults>
</compile_context>

<pallas_src>
import jax
import jax.numpy as jnp
import numpy as np
from jax.experimental import pallas as pl
from jax.experimental.pallas import tpu as pltpu


# ----------------------------------------------------------------------------
# Fused Pallas kernel
# ----------------------------------------------------------------------------
def _vmem_spec():
    # Whole array resident in VMEM; no tiling grid needed at these sizes.
    return pl.BlockSpec(memory_space=pltpu.MemorySpace.VMEM)


def _mm(a, b):
    # bf16 x bf16 -> f32 accumulate on the MXU.
    return jnp.dot(a, b, preferred_element_type=jnp.float32)


def critic_fused_kernel(p1_ref, w1_ref, b1_ref,
                        g2_ref, w2_ref, b2_ref,
                        g3_ref, w3_ref, b3_ref,
                        sel_ref, wf_ref, wp_ref, wl_ref, bfc1_ref,
                        pos_ref, lie_ref, wfc2_ref, bfc2_ref,
                        o_ref):
    bf16 = jnp.bfloat16

    # ---- conv1 + ReLU (im2col patches pre-built by the wrapper) ------------
    a1 = _mm(p1_ref[...], w1_ref[...]) + b1_ref[...]           # (B*H1*W1, 32) f32
    a1 = jnp.maximum(a1, 0.0).astype(bf16)

    # ---- conv2 + ReLU: sum over kh*kw taps, rows gathered via 0/1 matmul ---
    acc2 = jnp.zeros((g2_ref.shape[1], w2_ref.shape[2]), jnp.float32)
    for t in range(g2_ref.shape[0]):                           # 16 taps, unrolled
        rows = _mm(g2_ref[t], a1).astype(bf16)                 # (B*H2*W2, 32)
        acc2 = acc2 + _mm(rows, w2_ref[t])                     # (B*H2*W2, 64)
    a2 = jnp.maximum(acc2 + b2_ref[...], 0.0).astype(bf16)

    # ---- conv3 + ReLU ------------------------------------------------------
    acc3 = jnp.zeros((g3_ref.shape[1], w3_ref.shape[2]), jnp.float32)
    for t in range(g3_ref.shape[0]):                           # 9 taps, unrolled
        rows = _mm(g3_ref[t], a2).astype(bf16)                 # (B*H3*W3, 64)
        acc3 = acc3 + _mm(rows, w3_ref[t])
    a3 = jnp.maximum(acc3 + b3_ref[...], 0.0).astype(bf16)     # (B*H3*W3, 64)

    # ---- NCHW flatten (folded into wf layout) + concat(pos, lie) + fc1 -----
    h = _mm(pos_ref[...], wp_ref[...]) + _mm(lie_ref[...], wl_ref[...]) \
        + bfc1_ref[...]                                        # (B, 512) f32
    for p in range(sel_ref.shape[0]):                          # H3*W3 positions
        rows = _mm(sel_ref[p], a3).astype(bf16)                # (B, 64)
        h = h + _mm(rows, wf_ref[p])
    h = jnp.maximum(h, 0.0).astype(bf16)

    # ---- fc2 ---------------------------------------------------------------
    o_ref[...] = _mm(h, wfc2_ref[...]) + bfc2_ref[...]         # (B, 1) f32


# ----------------------------------------------------------------------------
# JAX / numpy glue: im2col, gather matrices, weight repack
# ----------------------------------------------------------------------------
def _conv_out(n, k, s):
    return (n - k) // s + 1


def im2col(x, kh, kw, stride):
    # x: (B, H, W, C) NHWC -> patches (B*Ho*Wo, kh*kw*C); taps row-major,
    # channels fastest — matches the (2,3,1,0) weight repack below.
    b, h, w, c = x.shape
    ho = _conv_out(h, kh, stride)
    wo = _conv_out(w, kw, stride)
    cols = []
    for i in range(kh):
        for j in range(kw):
            cols.append(x[:, i:i + ho * stride:stride, j:j + wo * stride:stride, :])
    patches = jnp.concatenate(cols, axis=-1)                   # (B, Ho, Wo, kh*kw*C)
    return patches.reshape(b * ho * wo, kh * kw * c), ho, wo


def _conv_gather(batch, h_in, w_in, k, stride):
    # 0/1 matrices g[t]: map flattened (b, h, w) rows of the previous
    # activation matrix to this conv's output rows for kernel tap t = i*k + j.
    h_out = _conv_out(h_in, k, stride)
    w_out = _conv_out(w_in, k, stride)
    g = np.zeros((k * k, batch * h_out * w_out, batch * h_in * w_in), np.float32)
    for i in range(k):
        for j in range(k):
            t = i * k + j
            for b in range(batch):
                for ho in range(h_out):
                    for wo in range(w_out):
                        r = (b * h_out + ho) * w_out + wo
                        m = (b * h_in + ho * stride + i) * w_in + (wo * stride + j)
                        g[t, r, m] = 1.0
    return jnp.asarray(g, dtype=jnp.bfloat16)


def _flatten_gather(batch, hw):
    # sel[p] picks, for every batch element, the conv3 output row at spatial
    # position p (rows of a3 are ordered (b, h, w)).
    s = np.zeros((hw, batch, batch * hw), np.float32)
    for p in range(hw):
        for b in range(batch):
            s[p, b, b * hw + p] = 1.0
    return jnp.asarray(s, dtype=jnp.bfloat16)


# ----------------------------------------------------------------------------
# CriticCnn forward (single fused pallas_call)
# ----------------------------------------------------------------------------
def feature_size(input_shape):
    _, h, w = input_shape
    h = _conv_out(_conv_out(_conv_out(h, 8, 4), 4, 2), 3, 1)
    w = _conv_out(_conv_out(_conv_out(w, 8, 4), 4, 2), 3, 1)
    return 64 * h * w


def critic_cnn_forward(params, img_nchw, pos, lie):
    bf16 = jnp.bfloat16
    batch, cin, hin, win = img_nchw.shape
    h1, w1 = _conv_out(hin, 8, 4), _conv_out(win, 8, 4)
    h2, w2 = _conv_out(h1, 4, 2), _conv_out(w1, 4, 2)
    h3, w3 = _conv_out(h2, 3, 1), _conv_out(w2, 3, 1)
    hw3 = h3 * w3
    c3 = params["conv3_w"].shape[0]
    nhid = params["fc1_w"].shape[1]

    # conv1 im2col: XLA input prep (the image starts in HBM anyway).
    x = jnp.transpose(img_nchw, (0, 2, 3, 1))                  # NCHW -> NHWC
    p1, _, _ = im2col(x, 8, 8, 4)
    p1 = p1.astype(bf16)

    # Weight repack (tap-major, (in, out) matmul layout), cast to bf16.
    w1m = jnp.transpose(params["conv1_w"], (2, 3, 1, 0)).reshape(8 * 8 * cin, -1).astype(bf16)
    w2t = jnp.transpose(params["conv2_w"], (2, 3, 1, 0)).reshape(4 * 4, 32, 64).astype(bf16)
    w3t = jnp.transpose(params["conv3_w"], (2, 3, 1, 0)).reshape(3 * 3, 64, 64).astype(bf16)

    # Gather matrices: trace-time constants (shapes are static under jit).
    g2 = _conv_gather(batch, h1, w1, 4, 2)                     # (16, B*H2*W2, B*H1*W1)
    g3 = _conv_gather(batch, h2, w2, 3, 1)                     # (9,  B*H3*W3, B*H2*W2)
    sel = _flatten_gather(batch, hw3)                          # (H3*W3, B, B*H3*W3)

    # fc1 weight: split feature / pos / lie row-blocks (no in-kernel concat);
    # reorder the feature block to (spatial, channel, out) so the kernel's
    # (b, h, w, c) feature order reproduces PyTorch's NCHW flatten.
    nf = c3 * hw3
    p_dim = pos.shape[-1]
    fc1_w = params["fc1_w"]
    wf = fc1_w[:nf].reshape(c3, hw3, nhid).transpose(1, 0, 2).astype(bf16)
    wp = fc1_w[nf:nf + p_dim].astype(bf16)
    wl = fc1_w[nf + p_dim:].astype(bf16)
    wfc2 = params["fc2_w"].astype(bf16)

    # torch.cat((x, pos.squeeze(), lie), dim=1); pos is (B, 1, P), batch > 1.
    pos_sq = jnp.squeeze(pos, axis=1).astype(bf16)
    lie_bf = lie.astype(bf16)

    b1 = params["conv1_b"].reshape(1, -1)
    b2 = params["conv2_b"].reshape(1, -1)
    b3 = params["conv3_b"].reshape(1, -1)
    bfc1 = params["fc1_b"].reshape(1, -1)
    bfc2 = params["fc2_b"].reshape(1, -1)

    return pl.pallas_call(
        critic_fused_kernel,
        out_shape=jax.ShapeDtypeStruct((batch, 1), jnp.float32),
        in_specs=[_vmem_spec()] * 18,
        out_specs=_vmem_spec(),
    )(p1, w1m, b1, g2, w2t, b2, g3, w3t, b3,
      sel, wf, wp, wl, bfc1, pos_sq, lie_bf, wfc2, bfc2)


# ----------------------------------------------------------------------------
# Pure-JAX reference with the same bf16-operand / f32-accumulate discipline
# (differences vs the kernel are f32 summation order only).
# ----------------------------------------------------------------------------
def reference_forward(params, img_nchw, pos, lie):
    bf16 = jnp.bfloat16

    def dot(a, b):
        return jnp.dot(a.astype(bf16), b.astype(bf16),
                       preferred_element_type=jnp.float32)

    def conv(x_nhwc, w_oihw, bias, stride):
        cout, cin, kh, kw = w_oihw.shape
        patches, ho, wo = im2col(x_nhwc, kh, kw, stride)
        wm = jnp.transpose(w_oihw, (2, 3, 1, 0)).reshape(kh * kw * cin, cout)
        y = jnp.maximum(dot(patches, wm) + bias.reshape(1, -1), 0.0)
        return y.reshape(x_nhwc.shape[0], ho, wo, cout)

    x = jnp.transpose(img_nchw, (0, 2, 3, 1))
    x = conv(x, params["conv1_w"], params["conv1_b"], 4)
    x = conv(x, params["conv2_w"], params["conv2_b"], 2)
    x = conv(x, params["conv3_w"], params["conv3_b"], 1)
    feat = jnp.transpose(x, (0, 3, 1, 2)).reshape(x.shape[0], -1)   # NCHW flatten
    xcat = jnp.concatenate([feat, jnp.squeeze(pos, axis=1), lie], axis=1)
    h = jnp.maximum(dot(xcat, params["fc1_w"]) + params["fc1_b"].reshape(1, -1), 0.0)
    return dot(h, params["fc2_w"]) + params["fc2_b"].reshape(1, -1)


# ----------------------------------------------------------------------------
# Deterministic parameter init (PyTorch default: U(-1/sqrt(fan_in), +))
# ----------------------------------------------------------------------------
def _uniform(key, shape, fan_in):
    bound = float(fan_in) ** -0.5
    return jax.random.uniform(key, shape, jnp.float32, -bound, bound)


def init_params(key, input_shape, pos_shape, lie_shape):
    c_in = input_shape[0]
    ks = jax.random.split(key, 10)
    p = {}
    p["conv1_w"] = _uniform(ks[0], (32, c_in, 8, 8), c_in * 8 * 8)
    p["conv1_b"] = _uniform(ks[1], (32,), c_in * 8 * 8)
    p["conv2_w"] = _uniform(ks[2], (64, 32, 4, 4), 32 * 4 * 4)
    p["conv2_b"] = _uniform(ks[3], (64,), 32 * 4 * 4)
    p["conv3_w"] = _uniform(ks[4], (64, 64, 3, 3), 64 * 3 * 3)
    p["conv3_b"] = _uniform(ks[5], (64,), 64 * 3 * 3)
    in_dim = feature_size(input_shape) + pos_shape[1] + lie_shape
    p["fc1_w"] = _uniform(ks[6], (in_dim, 512), in_dim)   # (in, out) layout
    p["fc1_b"] = _uniform(ks[7], (512,), in_dim)
    p["fc2_w"] = _uniform(ks[8], (512, 1), 512)
    p["fc2_b"] = _uniform(ks[9], (1,), 512)
    return p


# ----------------------------------------------------------------------------
if __name__ == "__main__":
    input_shape = (4, 36, 36)     # -> conv stack output 64 x 1 x 1 = 64 features
    pos_shape = (1, 8)            # pos_shape[1] = 8 extra features
    lie_shape = 6
    batch = 2

    params = init_params(jax.random.PRNGKey(0), input_shape, pos_shape, lie_shape)

    k_img, k_pos, k_lie = jax.random.split(jax.random.PRNGKey(0), 3)
    img = jax.random.normal(k_img, (batch,) + input_shape, dtype=jnp.float32)
    pos = jax.random.normal(k_pos, (batch, 1, pos_shape[1]), dtype=jnp.float32)
    lie = jax.random.normal(k_lie, (batch, lie_shape), dtype=jnp.float32)

    out = jax.jit(critic_cnn_forward)(params, img, pos, lie)
    out = jax.block_until_ready(out)
    assert out.shape == (batch, 1) and out.dtype == jnp.float32

    ref = jax.jit(reference_forward)(params, img, pos, lie)
    ref = jax.block_until_ready(ref)
    np.testing.assert_allclose(np.asarray(out), np.asarray(ref), rtol=2e-2, atol=2e-2)
    print("KERNEL_OK")
</pallas_src>

<mosaic_0001>
module attributes {stable_mosaic.version = 11 : i64} {
  func.func @critic_fused_kernel(%arg0: memref<128x256xbf16, #tpu.memory_space<vmem>>, %arg1: memref<256x32xbf16, #tpu.memory_space<vmem>>, %arg2: memref<1x32xf32, #tpu.memory_space<vmem>>, %arg3: memref<16x18x128xbf16, #tpu.memory_space<vmem>>, %arg4: memref<16x32x64xbf16, #tpu.memory_space<vmem>>, %arg5: memref<1x64xf32, #tpu.memory_space<vmem>>, %arg6: memref<9x2x18xbf16, #tpu.memory_space<vmem>>, %arg7: memref<9x64x64xbf16, #tpu.memory_space<vmem>>, %arg8: memref<1x64xf32, #tpu.memory_space<vmem>>, %arg9: memref<1x2x2xbf16, #tpu.memory_space<vmem>>, %arg10: memref<1x64x512xbf16, #tpu.memory_space<vmem>>, %arg11: memref<8x512xbf16, #tpu.memory_space<vmem>>, %arg12: memref<6x512xbf16, #tpu.memory_space<vmem>>, %arg13: memref<1x512xf32, #tpu.memory_space<vmem>>, %arg14: memref<2x8xbf16, #tpu.memory_space<vmem>>, %arg15: memref<2x6xbf16, #tpu.memory_space<vmem>>, %arg16: memref<512x1xbf16, #tpu.memory_space<vmem>>, %arg17: memref<1x1xf32, #tpu.memory_space<vmem>>, %arg18: memref<2x1xf32, #tpu.memory_space<vmem>>) attributes {dimension_semantics = [], scalar_prefetch = 0 : i64, scratch_operands = 0 : i64, tpu.core_type = #tpu.core_type<tc>} {
    %c0 = arith.constant 0 : index
    %c0_0 = arith.constant 0 : index
    %0 = vector.load %arg0[%c0, %c0_0] : memref<128x256xbf16, #tpu.memory_space<vmem>>, vector<128x256xbf16>
    %c0_1 = arith.constant 0 : index
    %c0_2 = arith.constant 0 : index
    %1 = vector.load %arg1[%c0_1, %c0_2] : memref<256x32xbf16, #tpu.memory_space<vmem>>, vector<256x32xbf16>
    %cst = arith.constant dense<0.000000e+00> : vector<128x32xf32>
    %2 = tpu.matmul %0, %1, %cst {dimension_numbers = #tpu.dot_dimension_numbers<[1], [0], [0], [1], [0, 0, 1, 1], [], []>} : vector<128x256xbf16>, vector<256x32xbf16>, vector<128x32xf32> -> vector<128x32xf32>
    %c0_3 = arith.constant 0 : index
    %c0_4 = arith.constant 0 : index
    %3 = vector.load %arg2[%c0_3, %c0_4] : memref<1x32xf32, #tpu.memory_space<vmem>>, vector<1x32xf32>
    %4 = vector.broadcast %3 : vector<1x32xf32> to vector<128x32xf32>
    %5 = arith.addf %2, %4 : vector<128x32xf32>
    %cst_5 = arith.constant 0.000000e+00 : f32
    %6 = vector.broadcast %cst_5 : f32 to vector<128x32xf32>
    %7 = arith.maximumf %5, %6 : vector<128x32xf32>
    %8 = arith.truncf %7 : vector<128x32xf32> to vector<128x32xbf16>
    %cst_6 = arith.constant 0.000000e+00 : f32
    %9 = vector.broadcast %cst_6 : f32 to vector<18x64xf32>
    %c0_7 = arith.constant 0 : index
    %c0_8 = arith.constant 0 : index
    %c0_9 = arith.constant 0 : index
    %10 = vector.load %arg3[%c0_7, %c0_8, %c0_9] : memref<16x18x128xbf16, #tpu.memory_space<vmem>>, vector<1x18x128xbf16>
    %11 = vector.shape_cast %10 : vector<1x18x128xbf16> to vector<18x128xbf16>
    %cst_10 = arith.constant dense<0.000000e+00> : vector<18x32xf32>
    %12 = tpu.matmul %11, %8, %cst_10 {dimension_numbers = #tpu.dot_dimension_numbers<[1], [0], [0], [1], [0, 0, 1, 1], [], []>} : vector<18x128xbf16>, vector<128x32xbf16>, vector<18x32xf32> -> vector<18x32xf32>
    %13 = arith.truncf %12 : vector<18x32xf32> to vector<18x32xbf16>
    %c0_11 = arith.constant 0 : index
    %c0_12 = arith.constant 0 : index
    %c0_13 = arith.constant 0 : index
    %14 = vector.load %arg4[%c0_11, %c0_12, %c0_13] : memref<16x32x64xbf16, #tpu.memory_space<vmem>>, vector<1x32x64xbf16>
    %15 = vector.shape_cast %14 : vector<1x32x64xbf16> to vector<32x64xbf16>
    %cst_14 = arith.constant dense<0.000000e+00> : vector<18x64xf32>
    %16 = tpu.matmul %13, %15, %cst_14 {dimension_numbers = #tpu.dot_dimension_numbers<[1], [0], [0], [1], [0, 0, 1, 1], [], []>} : vector<18x32xbf16>, vector<32x64xbf16>, vector<18x64xf32> -> vector<18x64xf32>
    %17 = arith.addf %9, %16 : vector<18x64xf32>
    %c1 = arith.constant 1 : index
    %c0_15 = arith.constant 0 : index
    %c0_16 = arith.constant 0 : index
    %18 = vector.load %arg3[%c1, %c0_15, %c0_16] : memref<16x18x128xbf16, #tpu.memory_space<vmem>>, vector<1x18x128xbf16>
    %19 = vector.shape_cast %18 : vector<1x18x128xbf16> to vector<18x128xbf16>
    %cst_17 = arith.constant dense<0.000000e+00> : vector<18x32xf32>
    %20 = tpu.matmul %19, %8, %cst_17 {dimension_numbers = #tpu.dot_dimension_numbers<[1], [0], [0], [1], [0, 0, 1, 1], [], []>} : vector<18x128xbf16>, vector<128x32xbf16>, vector<18x32xf32> -> vector<18x32xf32>
    %21 = arith.truncf %20 : vector<18x32xf32> to vector<18x32xbf16>
    %c1_18 = arith.constant 1 : index
    %c0_19 = arith.constant 0 : index
    %c0_20 = arith.constant 0 : index
    %22 = vector.load %arg4[%c1_18, %c0_19, %c0_20] : memref<16x32x64xbf16, #tpu.memory_space<vmem>>, vector<1x32x64xbf16>
    %23 = vector.shape_cast %22 : vector<1x32x64xbf16> to vector<32x64xbf16>
    %cst_21 = arith.constant dense<0.000000e+00> : vector<18x64xf32>
    %24 = tpu.matmul %21, %23, %cst_21 {dimension_numbers = #tpu.dot_dimension_numbers<[1], [0], [0], [1], [0, 0, 1, 1], [], []>} : vector<18x32xbf16>, vector<32x64xbf16>, vector<18x64xf32> -> vector<18x64xf32>
    %25 = arith.addf %17, %24 : vector<18x64xf32>
    %c2 = arith.constant 2 : index
    %c0_22 = arith.constant 0 : index
    %c0_23 = arith.constant 0 : index
    %26 = vector.load %arg3[%c2, %c0_22, %c0_23] : memref<16x18x128xbf16, #tpu.memory_space<vmem>>, vector<1x18x128xbf16>
    %27 = vector.shape_cast %26 : vector<1x18x128xbf16> to vector<18x128xbf16>
    %cst_24 = arith.constant dense<0.000000e+00> : vector<18x32xf32>
    %28 = tpu.matmul %27, %8, %cst_24 {dimension_numbers = #tpu.dot_dimension_numbers<[1], [0], [0], [1], [0, 0, 1, 1], [], []>} : vector<18x128xbf16>, vector<128x32xbf16>, vector<18x32xf32> -> vector<18x32xf32>
    %29 = arith.truncf %28 : vector<18x32xf32> to vector<18x32xbf16>
    %c2_25 = arith.constant 2 : index
    %c0_26 = arith.constant 0 : index
    %c0_27 = arith.constant 0 : index
    %30 = vector.load %arg4[%c2_25, %c0_26, %c0_27] : memref<16x32x64xbf16, #tpu.memory_space<vmem>>, vector<1x32x64xbf16>
    %31 = vector.shape_cast %30 : vector<1x32x64xbf16> to vector<32x64xbf16>
    %cst_28 = arith.constant dense<0.000000e+00> : vector<18x64xf32>
    %32 = tpu.matmul %29, %31, %cst_28 {dimension_numbers = #tpu.dot_dimension_numbers<[1], [0], [0], [1], [0, 0, 1, 1], [], []>} : vector<18x32xbf16>, vector<32x64xbf16>, vector<18x64xf32> -> vector<18x64xf32>
    %33 = arith.addf %25, %32 : vector<18x64xf32>
    %c3 = arith.constant 3 : index
    %c0_29 = arith.constant 0 : index
    %c0_30 = arith.constant 0 : index
    %34 = vector.load %arg3[%c3, %c0_29, %c0_30] : memref<16x18x128xbf16, #tpu.memory_space<vmem>>, vector<1x18x128xbf16>
    %35 = vector.shape_cast %34 : vector<1x18x128xbf16> to vector<18x128xbf16>
    %cst_31 = arith.constant dense<0.000000e+00> : vector<18x32xf32>
    %36 = tpu.matmul %35, %8, %cst_31 {dimension_numbers = #tpu.dot_dimension_numbers<[1], [0], [0], [1], [0, 0, 1, 1], [], []>} : vector<18x128xbf16>, vector<128x32xbf16>, vector<18x32xf32> -> vector<18x32xf32>
    %37 = arith.truncf %36 : vector<18x32xf32> to vector<18x32xbf16>
    %c3_32 = arith.constant 3 : index
    %c0_33 = arith.constant 0 : index
    %c0_34 = arith.constant 0 : index
    %38 = vector.load %arg4[%c3_32, %c0_33, %c0_34] : memref<16x32x64xbf16, #tpu.memory_space<vmem>>, vector<1x32x64xbf16>
    %39 = vector.shape_cast %38 : vector<1x32x64xbf16> to vector<32x64xbf16>
    %cst_35 = arith.constant dense<0.000000e+00> : vector<18x64xf32>
    %40 = tpu.matmul %37, %39, %cst_35 {dimension_numbers = #tpu.dot_dimension_numbers<[1], [0], [0], [1], [0, 0, 1, 1], [], []>} : vector<18x32xbf16>, vector<32x64xbf16>, vector<18x64xf32> -> vector<18x64xf32>
    %41 = arith.addf %33, %40 : vector<18x64xf32>
    %c4 = arith.constant 4 : index
    %c0_36 = arith.constant 0 : index
    %c0_37 = arith.constant 0 : index
    %42 = vector.load %arg3[%c4, %c0_36, %c0_37] : memref<16x18x128xbf16, #tpu.memory_space<vmem>>, vector<1x18x128xbf16>
    %43 = vector.shape_cast %42 : vector<1x18x128xbf16> to vector<18x128xbf16>
    %cst_38 = arith.constant dense<0.000000e+00> : vector<18x32xf32>
    %44 = tpu.matmul %43, %8, %cst_38 {dimension_numbers = #tpu.dot_dimension_numbers<[1], [0], [0], [1], [0, 0, 1, 1], [], []>} : vector<18x128xbf16>, vector<128x32xbf16>, vector<18x32xf32> -> vector<18x32xf32>
    %45 = arith.truncf %44 : vector<18x32xf32> to vector<18x32xbf16>
    %c4_39 = arith.constant 4 : index
    %c0_40 = arith.constant 0 : index
    %c0_41 = arith.constant 0 : index
    %46 = vector.load %arg4[%c4_39, %c0_40, %c0_41] : memref<16x32x64xbf16, #tpu.memory_space<vmem>>, vector<1x32x64xbf16>
    %47 = vector.shape_cast %46 : vector<1x32x64xbf16> to vector<32x64xbf16>
    %cst_42 = arith.constant dense<0.000000e+00> : vector<18x64xf32>
    %48 = tpu.matmul %45, %47, %cst_42 {dimension_numbers = #tpu.dot_dimension_numbers<[1], [0], [0], [1], [0, 0, 1, 1], [], []>} : vector<18x32xbf16>, vector<32x64xbf16>, vector<18x64xf32> -> vector<18x64xf32>
    %49 = arith.addf %41, %48 : vector<18x64xf32>
    %c5 = arith.constant 5 : index
    %c0_43 = arith.constant 0 : index
    %c0_44 = arith.constant 0 : index
    %50 = vector.load %arg3[%c5, %c0_43, %c0_44] : memref<16x18x128xbf16, #tpu.memory_space<vmem>>, vector<1x18x128xbf16>
    %51 = vector.shape_cast %50 : vector<1x18x128xbf16> to vector<18x128xbf16>
    %cst_45 = arith.constant dense<0.000000e+00> : vector<18x32xf32>
    %52 = tpu.matmul %51, %8, %cst_45 {dimension_numbers = #tpu.dot_dimension_numbers<[1], [0], [0], [1], [0, 0, 1, 1], [], []>} : vector<18x128xbf16>, vector<128x32xbf16>, vector<18x32xf32> -> vector<18x32xf32>
    %53 = arith.truncf %52 : vector<18x32xf32> to vector<18x32xbf16>
    %c5_46 = arith.constant 5 : index
    %c0_47 = arith.constant 0 : index
    %c0_48 = arith.constant 0 : index
    %54 = vector.load %arg4[%c5_46, %c0_47, %c0_48] : memref<16x32x64xbf16, #tpu.memory_space<vmem>>, vector<1x32x64xbf16>
    %55 = vector.shape_cast %54 : vector<1x32x64xbf16> to vector<32x64xbf16>
    %cst_49 = arith.constant dense<0.000000e+00> : vector<18x64xf32>
    %56 = tpu.matmul %53, %55, %cst_49 {dimension_numbers = #tpu.dot_dimension_numbers<[1], [0], [0], [1], [0, 0, 1, 1], [], []>} : vector<18x32xbf16>, vector<32x64xbf16>, vector<18x64xf32> -> vector<18x64xf32>
    %57 = arith.addf %49, %56 : vector<18x64xf32>
    %c6 = arith.constant 6 : index
    %c0_50 = arith.constant 0 : index
    %c0_51 = arith.constant 0 : index
    %58 = vector.load %arg3[%c6, %c0_50, %c0_51] : memref<16x18x128xbf16, #tpu.memory_space<vmem>>, vector<1x18x128xbf16>
    %59 = vector.shape_cast %58 : vector<1x18x128xbf16> to vector<18x128xbf16>
    %cst_52 = arith.constant dense<0.000000e+00> : vector<18x32xf32>
    %60 = tpu.matmul %59, %8, %cst_52 {dimension_numbers = #tpu.dot_dimension_numbers<[1], [0], [0], [1], [0, 0, 1, 1], [], []>} : vector<18x128xbf16>, vector<128x32xbf16>, vector<18x32xf32> -> vector<18x32xf32>
    %61 = arith.truncf %60 : vector<18x32xf32> to vector<18x32xbf16>
    %c6_53 = arith.constant 6 : index
    %c0_54 = arith.constant 0 : index
    %c0_55 = arith.constant 0 : index
    %62 = vector.load %arg4[%c6_53, %c0_54, %c0_55] : memref<16x32x64xbf16, #tpu.memory_space<vmem>>, vector<1x32x64xbf16>
    %63 = vector.shape_cast %62 : vector<1x32x64xbf16> to vector<32x64xbf16>
    %cst_56 = arith.constant dense<0.000000e+00> : vector<18x64xf32>
    %64 = tpu.matmul %61, %63, %cst_56 {dimension_numbers = #tpu.dot_dimension_numbers<[1], [0], [0], [1], [0, 0, 1, 1], [], []>} : vector<18x32xbf16>, vector<32x64xbf16>, vector<18x64xf32> -> vector<18x64xf32>
    %65 = arith.addf %57, %64 : vector<18x64xf32>
    %c7 = arith.constant 7 : index
    %c0_57 = arith.constant 0 : index
    %c0_58 = arith.constant 0 : index
    %66 = vector.load %arg3[%c7, %c0_57, %c0_58] : memref<16x18x128xbf16, #tpu.memory_space<vmem>>, vector<1x18x128xbf16>
    %67 = vector.shape_cast %66 : vector<1x18x128xbf16> to vector<18x128xbf16>
    %cst_59 = arith.constant dense<0.000000e+00> : vector<18x32xf32>
    %68 = tpu.matmul %67, %8, %cst_59 {dimension_numbers = #tpu.dot_dimension_numbers<[1], [0], [0], [1], [0, 0, 1, 1], [], []>} : vector<18x128xbf16>, vector<128x32xbf16>, vector<18x32xf32> -> vector<18x32xf32>
    %69 = arith.truncf %68 : vector<18x32xf32> to vector<18x32xbf16>
    %c7_60 = arith.constant 7 : index
    %c0_61 = arith.constant 0 : index
    %c0_62 = arith.constant 0 : index
    %70 = vector.load %arg4[%c7_60, %c0_61, %c0_62] : memref<16x32x64xbf16, #tpu.memory_space<vmem>>, vector<1x32x64xbf16>
    %71 = vector.shape_cast %70 : vector<1x32x64xbf16> to vector<32x64xbf16>
    %cst_63 = arith.constant dense<0.000000e+00> : vector<18x64xf32>
    %72 = tpu.matmul %69, %71, %cst_63 {dimension_numbers = #tpu.dot_dimension_numbers<[1], [0], [0], [1], [0, 0, 1, 1], [], []>} : vector<18x32xbf16>, vector<32x64xbf16>, vector<18x64xf32> -> vector<18x64xf32>
    %73 = arith.addf %65, %72 : vector<18x64xf32>
    %c8 = arith.constant 8 : index
    %c0_64 = arith.constant 0 : index
    %c0_65 = arith.constant 0 : index
    %74 = vector.load %arg3[%c8, %c0_64, %c0_65] : memref<16x18x128xbf16, #tpu.memory_space<vmem>>, vector<1x18x128xbf16>
    %75 = vector.shape_cast %74 : vector<1x18x128xbf16> to vector<18x128xbf16>
    %cst_66 = arith.constant dense<0.000000e+00> : vector<18x32xf32>
    %76 = tpu.matmul %75, %8, %cst_66 {dimension_numbers = #tpu.dot_dimension_numbers<[1], [0], [0], [1], [0, 0, 1, 1], [], []>} : vector<18x128xbf16>, vector<128x32xbf16>, vector<18x32xf32> -> vector<18x32xf32>
    %77 = arith.truncf %76 : vector<18x32xf32> to vector<18x32xbf16>
    %c8_67 = arith.constant 8 : index
    %c0_68 = arith.constant 0 : index
    %c0_69 = arith.constant 0 : index
    %78 = vector.load %arg4[%c8_67, %c0_68, %c0_69] : memref<16x32x64xbf16, #tpu.memory_space<vmem>>, vector<1x32x64xbf16>
    %79 = vector.shape_cast %78 : vector<1x32x64xbf16> to vector<32x64xbf16>
    %cst_70 = arith.constant dense<0.000000e+00> : vector<18x64xf32>
    %80 = tpu.matmul %77, %79, %cst_70 {dimension_numbers = #tpu.dot_dimension_numbers<[1], [0], [0], [1], [0, 0, 1, 1], [], []>} : vector<18x32xbf16>, vector<32x64xbf16>, vector<18x64xf32> -> vector<18x64xf32>
    %81 = arith.addf %73, %80 : vector<18x64xf32>
    %c9 = arith.constant 9 : index
    %c0_71 = arith.constant 0 : index
    %c0_72 = arith.constant 0 : index
    %82 = vector.load %arg3[%c9, %c0_71, %c0_72] : memref<16x18x128xbf16, #tpu.memory_space<vmem>>, vector<1x18x128xbf16>
    %83 = vector.shape_cast %82 : vector<1x18x128xbf16> to vector<18x128xbf16>
    %cst_73 = arith.constant dense<0.000000e+00> : vector<18x32xf32>
    %84 = tpu.matmul %83, %8, %cst_73 {dimension_numbers = #tpu.dot_dimension_numbers<[1], [0], [0], [1], [0, 0, 1, 1], [], []>} : vector<18x128xbf16>, vector<128x32xbf16>, vector<18x32xf32> -> vector<18x32xf32>
    %85 = arith.truncf %84 : vector<18x32xf32> to vector<18x32xbf16>
    %c9_74 = arith.constant 9 : index
    %c0_75 = arith.constant 0 : index
    %c0_76 = arith.constant 0 : index
    %86 = vector.load %arg4[%c9_74, %c0_75, %c0_76] : memref<16x32x64xbf16, #tpu.memory_space<vmem>>, vector<1x32x64xbf16>
    %87 = vector.shape_cast %86 : vector<1x32x64xbf16> to vector<32x64xbf16>
    %cst_77 = arith.constant dense<0.000000e+00> : vector<18x64xf32>
    %88 = tpu.matmul %85, %87, %cst_77 {dimension_numbers = #tpu.dot_dimension_numbers<[1], [0], [0], [1], [0, 0, 1, 1], [], []>} : vector<18x32xbf16>, vector<32x64xbf16>, vector<18x64xf32> -> vector<18x64xf32>
    %89 = arith.addf %81, %88 : vector<18x64xf32>
    %c10 = arith.constant 10 : index
    %c0_78 = arith.constant 0 : index
    %c0_79 = arith.constant 0 : index
    %90 = vector.load %arg3[%c10, %c0_78, %c0_79] : memref<16x18x128xbf16, #tpu.memory_space<vmem>>, vector<1x18x128xbf16>
    %91 = vector.shape_cast %90 : vector<1x18x128xbf16> to vector<18x128xbf16>
    %cst_80 = arith.constant dense<0.000000e+00> : vector<18x32xf32>
    %92 = tpu.matmul %91, %8, %cst_80 {dimension_numbers = #tpu.dot_dimension_numbers<[1], [0], [0], [1], [0, 0, 1, 1], [], []>} : vector<18x128xbf16>, vector<128x32xbf16>, vector<18x32xf32> -> vector<18x32xf32>
    %93 = arith.truncf %92 : vector<18x32xf32> to vector<18x32xbf16>
    %c10_81 = arith.constant 10 : index
    %c0_82 = arith.constant 0 : index
    %c0_83 = arith.constant 0 : index
    %94 = vector.load %arg4[%c10_81, %c0_82, %c0_83] : memref<16x32x64xbf16, #tpu.memory_space<vmem>>, vector<1x32x64xbf16>
    %95 = vector.shape_cast %94 : vector<1x32x64xbf16> to vector<32x64xbf16>
    %cst_84 = arith.constant dense<0.000000e+00> : vector<18x64xf32>
    %96 = tpu.matmul %93, %95, %cst_84 {dimension_numbers = #tpu.dot_dimension_numbers<[1], [0], [0], [1], [0, 0, 1, 1], [], []>} : vector<18x32xbf16>, vector<32x64xbf16>, vector<18x64xf32> -> vector<18x64xf32>
    %97 = arith.addf %89, %96 : vector<18x64xf32>
    %c11 = arith.constant 11 : index
    %c0_85 = arith.constant 0 : index
    %c0_86 = arith.constant 0 : index
    %98 = vector.load %arg3[%c11, %c0_85, %c0_86] : memref<16x18x128xbf16, #tpu.memory_space<vmem>>, vector<1x18x128xbf16>
    %99 = vector.shape_cast %98 : vector<1x18x128xbf16> to vector<18x128xbf16>
    %cst_87 = arith.constant dense<0.000000e+00> : vector<18x32xf32>
    %100 = tpu.matmul %99, %8, %cst_87 {dimension_numbers = #tpu.dot_dimension_numbers<[1], [0], [0], [1], [0, 0, 1, 1], [], []>} : vector<18x128xbf16>, vector<128x32xbf16>, vector<18x32xf32> -> vector<18x32xf32>
    %101 = arith.truncf %100 : vector<18x32xf32> to vector<18x32xbf16>
    %c11_88 = arith.constant 11 : index
    %c0_89 = arith.constant 0 : index
    %c0_90 = arith.constant 0 : index
    %102 = vector.load %arg4[%c11_88, %c0_89, %c0_90] : memref<16x32x64xbf16, #tpu.memory_space<vmem>>, vector<1x32x64xbf16>
    %103 = vector.shape_cast %102 : vector<1x32x64xbf16> to vector<32x64xbf16>
    %cst_91 = arith.constant dense<0.000000e+00> : vector<18x64xf32>
    %104 = tpu.matmul %101, %103, %cst_91 {dimension_numbers = #tpu.dot_dimension_numbers<[1], [0], [0], [1], [0, 0, 1, 1], [], []>} : vector<18x32xbf16>, vector<32x64xbf16>, vector<18x64xf32> -> vector<18x64xf32>
    %105 = arith.addf %97, %104 : vector<18x64xf32>
    %c12 = arith.constant 12 : index
    %c0_92 = arith.constant 0 : index
    %c0_93 = arith.constant 0 : index
    %106 = vector.load %arg3[%c12, %c0_92, %c0_93] : memref<16x18x128xbf16, #tpu.memory_space<vmem>>, vector<1x18x128xbf16>
    %107 = vector.shape_cast %106 : vector<1x18x128xbf16> to vector<18x128xbf16>
    %cst_94 = arith.constant dense<0.000000e+00> : vector<18x32xf32>
    %108 = tpu.matmul %107, %8, %cst_94 {dimension_numbers = #tpu.dot_dimension_numbers<[1], [0], [0], [1], [0, 0, 1, 1], [], []>} : vector<18x128xbf16>, vector<128x32xbf16>, vector<18x32xf32> -> vector<18x32xf32>
    %109 = arith.truncf %108 : vector<18x32xf32> to vector<18x32xbf16>
    %c12_95 = arith.constant 12 : index
    %c0_96 = arith.constant 0 : index
    %c0_97 = arith.constant 0 : index
    %110 = vector.load %arg4[%c12_95, %c0_96, %c0_97] : memref<16x32x64xbf16, #tpu.memory_space<vmem>>, vector<1x32x64xbf16>
    %111 = vector.shape_cast %110 : vector<1x32x64xbf16> to vector<32x64xbf16>
    %cst_98 = arith.constant dense<0.000000e+00> : vector<18x64xf32>
    %112 = tpu.matmul %109, %111, %cst_98 {dimension_numbers = #tpu.dot_dimension_numbers<[1], [0], [0], [1], [0, 0, 1, 1], [], []>} : vector<18x32xbf16>, vector<32x64xbf16>, vector<18x64xf32> -> vector<18x64xf32>
    %113 = arith.addf %105, %112 : vector<18x64xf32>
    %c13 = arith.constant 13 : index
    %c0_99 = arith.constant 0 : index
    %c0_100 = arith.constant 0 : index
    %114 = vector.load %arg3[%c13, %c0_99, %c0_100] : memref<16x18x128xbf16, #tpu.memory_space<vmem>>, vector<1x18x128xbf16>
    %115 = vector.shape_cast %114 : vector<1x18x128xbf16> to vector<18x128xbf16>
    %cst_101 = arith.constant dense<0.000000e+00> : vector<18x32xf32>
    %116 = tpu.matmul %115, %8, %cst_101 {dimension_numbers = #tpu.dot_dimension_numbers<[1], [0], [0], [1], [0, 0, 1, 1], [], []>} : vector<18x128xbf16>, vector<128x32xbf16>, vector<18x32xf32> -> vector<18x32xf32>
    %117 = arith.truncf %116 : vector<18x32xf32> to vector<18x32xbf16>
    %c13_102 = arith.constant 13 : index
    %c0_103 = arith.constant 0 : index
    %c0_104 = arith.constant 0 : index
    %118 = vector.load %arg4[%c13_102, %c0_103, %c0_104] : memref<16x32x64xbf16, #tpu.memory_space<vmem>>, vector<1x32x64xbf16>
    %119 = vector.shape_cast %118 : vector<1x32x64xbf16> to vector<32x64xbf16>
    %cst_105 = arith.constant dense<0.000000e+00> : vector<18x64xf32>
    %120 = tpu.matmul %117, %119, %cst_105 {dimension_numbers = #tpu.dot_dimension_numbers<[1], [0], [0], [1], [0, 0, 1, 1], [], []>} : vector<18x32xbf16>, vector<32x64xbf16>, vector<18x64xf32> -> vector<18x64xf32>
    %121 = arith.addf %113, %120 : vector<18x64xf32>
    %c14 = arith.constant 14 : index
    %c0_106 = arith.constant 0 : index
    %c0_107 = arith.constant 0 : index
    %122 = vector.load %arg3[%c14, %c0_106, %c0_107] : memref<16x18x128xbf16, #tpu.memory_space<vmem>>, vector<1x18x128xbf16>
    %123 = vector.shape_cast %122 : vector<1x18x128xbf16> to vector<18x128xbf16>
    %cst_108 = arith.constant dense<0.000000e+00> : vector<18x32xf32>
    %124 = tpu.matmul %123, %8, %cst_108 {dimension_numbers = #tpu.dot_dimension_numbers<[1], [0], [0], [1], [0, 0, 1, 1], [], []>} : vector<18x128xbf16>, vector<128x32xbf16>, vector<18x32xf32> -> vector<18x32xf32>
    %125 = arith.truncf %124 : vector<18x32xf32> to vector<18x32xbf16>
    %c14_109 = arith.constant 14 : index
    %c0_110 = arith.constant 0 : index
    %c0_111 = arith.constant 0 : index
    %126 = vector.load %arg4[%c14_109, %c0_110, %c0_111] : memref<16x32x64xbf16, #tpu.memory_space<vmem>>, vector<1x32x64xbf16>
    %127 = vector.shape_cast %126 : vector<1x32x64xbf16> to vector<32x64xbf16>
    %cst_112 = arith.constant dense<0.000000e+00> : vector<18x64xf32>
    %128 = tpu.matmul %125, %127, %cst_112 {dimension_numbers = #tpu.dot_dimension_numbers<[1], [0], [0], [1], [0, 0, 1, 1], [], []>} : vector<18x32xbf16>, vector<32x64xbf16>, vector<18x64xf32> -> vector<18x64xf32>
    %129 = arith.addf %121, %128 : vector<18x64xf32>
    %c15 = arith.constant 15 : index
    %c0_113 = arith.constant 0 : index
    %c0_114 = arith.constant 0 : index
    %130 = vector.load %arg3[%c15, %c0_113, %c0_114] : memref<16x18x128xbf16, #tpu.memory_space<vmem>>, vector<1x18x128xbf16>
    %131 = vector.shape_cast %130 : vector<1x18x128xbf16> to vector<18x128xbf16>
    %cst_115 = arith.constant dense<0.000000e+00> : vector<18x32xf32>
    %132 = tpu.matmul %131, %8, %cst_115 {dimension_numbers = #tpu.dot_dimension_numbers<[1], [0], [0], [1], [0, 0, 1, 1], [], []>} : vector<18x128xbf16>, vector<128x32xbf16>, vector<18x32xf32> -> vector<18x32xf32>
    %133 = arith.truncf %132 : vector<18x32xf32> to vector<18x32xbf16>
    %c15_116 = arith.constant 15 : index
    %c0_117 = arith.constant 0 : index
    %c0_118 = arith.constant 0 : index
    %134 = vector.load %arg4[%c15_116, %c0_117, %c0_118] : memref<16x32x64xbf16, #tpu.memory_space<vmem>>, vector<1x32x64xbf16>
    %135 = vector.shape_cast %134 : vector<1x32x64xbf16> to vector<32x64xbf16>
    %cst_119 = arith.constant dense<0.000000e+00> : vector<18x64xf32>
    %136 = tpu.matmul %133, %135, %cst_119 {dimension_numbers = #tpu.dot_dimension_numbers<[1], [0], [0], [1], [0, 0, 1, 1], [], []>} : vector<18x32xbf16>, vector<32x64xbf16>, vector<18x64xf32> -> vector<18x64xf32>
    %137 = arith.addf %129, %136 : vector<18x64xf32>
    %c0_120 = arith.constant 0 : index
    %c0_121 = arith.constant 0 : index
    %138 = vector.load %arg5[%c0_120, %c0_121] : memref<1x64xf32, #tpu.memory_space<vmem>>, vector<1x64xf32>
    %139 = vector.broadcast %138 : vector<1x64xf32> to vector<18x64xf32>
    %140 = arith.addf %137, %139 : vector<18x64xf32>
    %cst_122 = arith.constant 0.000000e+00 : f32
    %141 = vector.broadcast %cst_122 : f32 to vector<18x64xf32>
    %142 = arith.maximumf %140, %141 : vector<18x64xf32>
    %143 = arith.truncf %142 : vector<18x64xf32> to vector<18x64xbf16>
    %cst_123 = arith.constant 0.000000e+00 : f32
    %144 = vector.broadcast %cst_123 : f32 to vector<2x64xf32>
    %c0_124 = arith.constant 0 : index
    %c0_125 = arith.constant 0 : index
    %c0_126 = arith.constant 0 : index
    %145 = vector.load %arg6[%c0_124, %c0_125, %c0_126] : memref<9x2x18xbf16, #tpu.memory_space<vmem>>, vector<1x2x18xbf16>
    %146 = vector.shape_cast %145 : vector<1x2x18xbf16> to vector<2x18xbf16>
    %cst_127 = arith.constant dense<0.000000e+00> : vector<2x64xf32>
    %147 = tpu.matmul %146, %143, %cst_127 {dimension_numbers = #tpu.dot_dimension_numbers<[1], [0], [0], [1], [0, 0, 1, 1], [], []>} : vector<2x18xbf16>, vector<18x64xbf16>, vector<2x64xf32> -> vector<2x64xf32>
    %148 = arith.truncf %147 : vector<2x64xf32> to vector<2x64xbf16>
    %c0_128 = arith.constant 0 : index
    %c0_129 = arith.constant 0 : index
    %c0_130 = arith.constant 0 : index
    %149 = vector.load %arg7[%c0_128, %c0_129, %c0_130] : memref<9x64x64xbf16, #tpu.memory_space<vmem>>, vector<1x64x64xbf16>
    %150 = vector.shape_cast %149 : vector<1x64x64xbf16> to vector<64x64xbf16>
    %cst_131 = arith.constant dense<0.000000e+00> : vector<2x64xf32>
    %151 = tpu.matmul %148, %150, %cst_131 {dimension_numbers = #tpu.dot_dimension_numbers<[1], [0], [0], [1], [0, 0, 1, 1], [], []>} : vector<2x64xbf16>, vector<64x64xbf16>, vector<2x64xf32> -> vector<2x64xf32>
    %152 = arith.addf %144, %151 : vector<2x64xf32>
    %c1_132 = arith.constant 1 : index
    %c0_133 = arith.constant 0 : index
    %c0_134 = arith.constant 0 : index
    %153 = vector.load %arg6[%c1_132, %c0_133, %c0_134] : memref<9x2x18xbf16, #tpu.memory_space<vmem>>, vector<1x2x18xbf16>
    %154 = vector.shape_cast %153 : vector<1x2x18xbf16> to vector<2x18xbf16>
    %cst_135 = arith.constant dense<0.000000e+00> : vector<2x64xf32>
    %155 = tpu.matmul %154, %143, %cst_135 {dimension_numbers = #tpu.dot_dimension_numbers<[1], [0], [0], [1], [0, 0, 1, 1], [], []>} : vector<2x18xbf16>, vector<18x64xbf16>, vector<2x64xf32> -> vector<2x64xf32>
    %156 = arith.truncf %155 : vector<2x64xf32> to vector<2x64xbf16>
    %c1_136 = arith.constant 1 : index
    %c0_137 = arith.constant 0 : index
    %c0_138 = arith.constant 0 : index
    %157 = vector.load %arg7[%c1_136, %c0_137, %c0_138] : memref<9x64x64xbf16, #tpu.memory_space<vmem>>, vector<1x64x64xbf16>
    %158 = vector.shape_cast %157 : vector<1x64x64xbf16> to vector<64x64xbf16>
    %cst_139 = arith.constant dense<0.000000e+00> : vector<2x64xf32>
    %159 = tpu.matmul %156, %158, %cst_139 {dimension_numbers = #tpu.dot_dimension_numbers<[1], [0], [0], [1], [0, 0, 1, 1], [], []>} : vector<2x64xbf16>, vector<64x64xbf16>, vector<2x64xf32> -> vector<2x64xf32>
    %160 = arith.addf %152, %159 : vector<2x64xf32>
    %c2_140 = arith.constant 2 : index
    %c0_141 = arith.constant 0 : index
    %c0_142 = arith.constant 0 : index
    %161 = vector.load %arg6[%c2_140, %c0_141, %c0_142] : memref<9x2x18xbf16, #tpu.memory_space<vmem>>, vector<1x2x18xbf16>
    %162 = vector.shape_cast %161 : vector<1x2x18xbf16> to vector<2x18xbf16>
    %cst_143 = arith.constant dense<0.000000e+00> : vector<2x64xf32>
    %163 = tpu.matmul %162, %143, %cst_143 {dimension_numbers = #tpu.dot_dimension_numbers<[1], [0], [0], [1], [0, 0, 1, 1], [], []>} : vector<2x18xbf16>, vector<18x64xbf16>, vector<2x64xf32> -> vector<2x64xf32>
    %164 = arith.truncf %163 : vector<2x64xf32> to vector<2x64xbf16>
    %c2_144 = arith.constant 2 : index
    %c0_145 = arith.constant 0 : index
    %c0_146 = arith.constant 0 : index
    %165 = vector.load %arg7[%c2_144, %c0_145, %c0_146] : memref<9x64x64xbf16, #tpu.memory_space<vmem>>, vector<1x64x64xbf16>
    %166 = vector.shape_cast %165 : vector<1x64x64xbf16> to vector<64x64xbf16>
    %cst_147 = arith.constant dense<0.000000e+00> : vector<2x64xf32>
    %167 = tpu.matmul %164, %166, %cst_147 {dimension_numbers = #tpu.dot_dimension_numbers<[1], [0], [0], [1], [0, 0, 1, 1], [], []>} : vector<2x64xbf16>, vector<64x64xbf16>, vector<2x64xf32> -> vector<2x64xf32>
    %168 = arith.addf %160, %167 : vector<2x64xf32>
    %c3_148 = arith.constant 3 : index
    %c0_149 = arith.constant 0 : index
    %c0_150 = arith.constant 0 : index
    %169 = vector.load %arg6[%c3_148, %c0_149, %c0_150] : memref<9x2x18xbf16, #tpu.memory_space<vmem>>, vector<1x2x18xbf16>
    %170 = vector.shape_cast %169 : vector<1x2x18xbf16> to vector<2x18xbf16>
    %cst_151 = arith.constant dense<0.000000e+00> : vector<2x64xf32>
    %171 = tpu.matmul %170, %143, %cst_151 {dimension_numbers = #tpu.dot_dimension_numbers<[1], [0], [0], [1], [0, 0, 1, 1], [], []>} : vector<2x18xbf16>, vector<18x64xbf16>, vector<2x64xf32> -> vector<2x64xf32>
    %172 = arith.truncf %171 : vector<2x64xf32> to vector<2x64xbf16>
    %c3_152 = arith.constant 3 : index
    %c0_153 = arith.constant 0 : index
    %c0_154 = arith.constant 0 : index
    %173 = vector.load %arg7[%c3_152, %c0_153, %c0_154] : memref<9x64x64xbf16, #tpu.memory_space<vmem>>, vector<1x64x64xbf16>
    %174 = vector.shape_cast %173 : vector<1x64x64xbf16> to vector<64x64xbf16>
    %cst_155 = arith.constant dense<0.000000e+00> : vector<2x64xf32>
    %175 = tpu.matmul %172, %174, %cst_155 {dimension_numbers = #tpu.dot_dimension_numbers<[1], [0], [0], [1], [0, 0, 1, 1], [], []>} : vector<2x64xbf16>, vector<64x64xbf16>, vector<2x64xf32> -> vector<2x64xf32>
    %176 = arith.addf %168, %175 : vector<2x64xf32>
    %c4_156 = arith.constant 4 : index
    %c0_157 = arith.constant 0 : index
    %c0_158 = arith.constant 0 : index
    %177 = vector.load %arg6[%c4_156, %c0_157, %c0_158] : memref<9x2x18xbf16, #tpu.memory_space<vmem>>, vector<1x2x18xbf16>
    %178 = vector.shape_cast %177 : vector<1x2x18xbf16> to vector<2x18xbf16>
    %cst_159 = arith.constant dense<0.000000e+00> : vector<2x64xf32>
    %179 = tpu.matmul %178, %143, %cst_159 {dimension_numbers = #tpu.dot_dimension_numbers<[1], [0], [0], [1], [0, 0, 1, 1], [], []>} : vector<2x18xbf16>, vector<18x64xbf16>, vector<2x64xf32> -> vector<2x64xf32>
    %180 = arith.truncf %179 : vector<2x64xf32> to vector<2x64xbf16>
    %c4_160 = arith.constant 4 : index
    %c0_161 = arith.constant 0 : index
    %c0_162 = arith.constant 0 : index
    %181 = vector.load %arg7[%c4_160, %c0_161, %c0_162] : memref<9x64x64xbf16, #tpu.memory_space<vmem>>, vector<1x64x64xbf16>
    %182 = vector.shape_cast %181 : vector<1x64x64xbf16> to vector<64x64xbf16>
    %cst_163 = arith.constant dense<0.000000e+00> : vector<2x64xf32>
    %183 = tpu.matmul %180, %182, %cst_163 {dimension_numbers = #tpu.dot_dimension_numbers<[1], [0], [0], [1], [0, 0, 1, 1], [], []>} : vector<2x64xbf16>, vector<64x64xbf16>, vector<2x64xf32> -> vector<2x64xf32>
    %184 = arith.addf %176, %183 : vector<2x64xf32>
    %c5_164 = arith.constant 5 : index
    %c0_165 = arith.constant 0 : index
    %c0_166 = arith.constant 0 : index
    %185 = vector.load %arg6[%c5_164, %c0_165, %c0_166] : memref<9x2x18xbf16, #tpu.memory_space<vmem>>, vector<1x2x18xbf16>
    %186 = vector.shape_cast %185 : vector<1x2x18xbf16> to vector<2x18xbf16>
    %cst_167 = arith.constant dense<0.000000e+00> : vector<2x64xf32>
    %187 = tpu.matmul %186, %143, %cst_167 {dimension_numbers = #tpu.dot_dimension_numbers<[1], [0], [0], [1], [0, 0, 1, 1], [], []>} : vector<2x18xbf16>, vector<18x64xbf16>, vector<2x64xf32> -> vector<2x64xf32>
    %188 = arith.truncf %187 : vector<2x64xf32> to vector<2x64xbf16>
    %c5_168 = arith.constant 5 : index
    %c0_169 = arith.constant 0 : index
    %c0_170 = arith.constant 0 : index
    %189 = vector.load %arg7[%c5_168, %c0_169, %c0_170] : memref<9x64x64xbf16, #tpu.memory_space<vmem>>, vector<1x64x64xbf16>
    %190 = vector.shape_cast %189 : vector<1x64x64xbf16> to vector<64x64xbf16>
    %cst_171 = arith.constant dense<0.000000e+00> : vector<2x64xf32>
    %191 = tpu.matmul %188, %190, %cst_171 {dimension_numbers = #tpu.dot_dimension_numbers<[1], [0], [0], [1], [0, 0, 1, 1], [], []>} : vector<2x64xbf16>, vector<64x64xbf16>, vector<2x64xf32> -> vector<2x64xf32>
    %192 = arith.addf %184, %191 : vector<2x64xf32>
    %c6_172 = arith.constant 6 : index
    %c0_173 = arith.constant 0 : index
    %c0_174 = arith.constant 0 : index
    %193 = vector.load %arg6[%c6_172, %c0_173, %c0_174] : memref<9x2x18xbf16, #tpu.memory_space<vmem>>, vector<1x2x18xbf16>
    %194 = vector.shape_cast %193 : vector<1x2x18xbf16> to vector<2x18xbf16>
    %cst_175 = arith.constant dense<0.000000e+00> : vector<2x64xf32>
    %195 = tpu.matmul %194, %143, %cst_175 {dimension_numbers = #tpu.dot_dimension_numbers<[1], [0], [0], [1], [0, 0, 1, 1], [], []>} : vector<2x18xbf16>, vector<18x64xbf16>, vector<2x64xf32> -> vector<2x64xf32>
    %196 = arith.truncf %195 : vector<2x64xf32> to vector<2x64xbf16>
    %c6_176 = arith.constant 6 : index
    %c0_177 = arith.constant 0 : index
    %c0_178 = arith.constant 0 : index
    %197 = vector.load %arg7[%c6_176, %c0_177, %c0_178] : memref<9x64x64xbf16, #tpu.memory_space<vmem>>, vector<1x64x64xbf16>
    %198 = vector.shape_cast %197 : vector<1x64x64xbf16> to vector<64x64xbf16>
    %cst_179 = arith.constant dense<0.000000e+00> : vector<2x64xf32>
    %199 = tpu.matmul %196, %198, %cst_179 {dimension_numbers = #tpu.dot_dimension_numbers<[1], [0], [0], [1], [0, 0, 1, 1], [], []>} : vector<2x64xbf16>, vector<64x64xbf16>, vector<2x64xf32> -> vector<2x64xf32>
    %200 = arith.addf %192, %199 : vector<2x64xf32>
    %c7_180 = arith.constant 7 : index
    %c0_181 = arith.constant 0 : index
    %c0_182 = arith.constant 0 : index
    %201 = vector.load %arg6[%c7_180, %c0_181, %c0_182] : memref<9x2x18xbf16, #tpu.memory_space<vmem>>, vector<1x2x18xbf16>
    %202 = vector.shape_cast %201 : vector<1x2x18xbf16> to vector<2x18xbf16>
    %cst_183 = arith.constant dense<0.000000e+00> : vector<2x64xf32>
    %203 = tpu.matmul %202, %143, %cst_183 {dimension_numbers = #tpu.dot_dimension_numbers<[1], [0], [0], [1], [0, 0, 1, 1], [], []>} : vector<2x18xbf16>, vector<18x64xbf16>, vector<2x64xf32> -> vector<2x64xf32>
    %204 = arith.truncf %203 : vector<2x64xf32> to vector<2x64xbf16>
    %c7_184 = arith.constant 7 : index
    %c0_185 = arith.constant 0 : index
    %c0_186 = arith.constant 0 : index
    %205 = vector.load %arg7[%c7_184, %c0_185, %c0_186] : memref<9x64x64xbf16, #tpu.memory_space<vmem>>, vector<1x64x64xbf16>
    %206 = vector.shape_cast %205 : vector<1x64x64xbf16> to vector<64x64xbf16>
    %cst_187 = arith.constant dense<0.000000e+00> : vector<2x64xf32>
    %207 = tpu.matmul %204, %206, %cst_187 {dimension_numbers = #tpu.dot_dimension_numbers<[1], [0], [0], [1], [0, 0, 1, 1], [], []>} : vector<2x64xbf16>, vector<64x64xbf16>, vector<2x64xf32> -> vector<2x64xf32>
    %208 = arith.addf %200, %207 : vector<2x64xf32>
    %c8_188 = arith.constant 8 : index
    %c0_189 = arith.constant 0 : index
    %c0_190 = arith.constant 0 : index
    %209 = vector.load %arg6[%c8_188, %c0_189, %c0_190] : memref<9x2x18xbf16, #tpu.memory_space<vmem>>, vector<1x2x18xbf16>
    %210 = vector.shape_cast %209 : vector<1x2x18xbf16> to vector<2x18xbf16>
    %cst_191 = arith.constant dense<0.000000e+00> : vector<2x64xf32>
    %211 = tpu.matmul %210, %143, %cst_191 {dimension_numbers = #tpu.dot_dimension_numbers<[1], [0], [0], [1], [0, 0, 1, 1], [], []>} : vector<2x18xbf16>, vector<18x64xbf16>, vector<2x64xf32> -> vector<2x64xf32>
    %212 = arith.truncf %211 : vector<2x64xf32> to vector<2x64xbf16>
    %c8_192 = arith.constant 8 : index
    %c0_193 = arith.constant 0 : index
    %c0_194 = arith.constant 0 : index
    %213 = vector.load %arg7[%c8_192, %c0_193, %c0_194] : memref<9x64x64xbf16, #tpu.memory_space<vmem>>, vector<1x64x64xbf16>
    %214 = vector.shape_cast %213 : vector<1x64x64xbf16> to vector<64x64xbf16>
    %cst_195 = arith.constant dense<0.000000e+00> : vector<2x64xf32>
    %215 = tpu.matmul %212, %214, %cst_195 {dimension_numbers = #tpu.dot_dimension_numbers<[1], [0], [0], [1], [0, 0, 1, 1], [], []>} : vector<2x64xbf16>, vector<64x64xbf16>, vector<2x64xf32> -> vector<2x64xf32>
    %216 = arith.addf %208, %215 : vector<2x64xf32>
    %c0_196 = arith.constant 0 : index
    %c0_197 = arith.constant 0 : index
    %217 = vector.load %arg8[%c0_196, %c0_197] : memref<1x64xf32, #tpu.memory_space<vmem>>, vector<1x64xf32>
    %218 = vector.broadcast %217 : vector<1x64xf32> to vector<2x64xf32>
    %219 = arith.addf %216, %218 : vector<2x64xf32>
    %cst_198 = arith.constant 0.000000e+00 : f32
    %220 = vector.broadcast %cst_198 : f32 to vector<2x64xf32>
    %221 = arith.maximumf %219, %220 : vector<2x64xf32>
    %222 = arith.truncf %221 : vector<2x64xf32> to vector<2x64xbf16>
    %c0_199 = arith.constant 0 : index
    %c0_200 = arith.constant 0 : index
    %223 = vector.load %arg14[%c0_199, %c0_200] : memref<2x8xbf16, #tpu.memory_space<vmem>>, vector<2x8xbf16>
    %c0_201 = arith.constant 0 : index
    %c0_202 = arith.constant 0 : index
    %224 = vector.load %arg11[%c0_201, %c0_202] : memref<8x512xbf16, #tpu.memory_space<vmem>>, vector<8x512xbf16>
    %cst_203 = arith.constant dense<0.000000e+00> : vector<2x512xf32>
    %225 = tpu.matmul %223, %224, %cst_203 {dimension_numbers = #tpu.dot_dimension_numbers<[1], [0], [0], [1], [0, 0, 1, 1], [], []>} : vector<2x8xbf16>, vector<8x512xbf16>, vector<2x512xf32> -> vector<2x512xf32>
    %c0_204 = arith.constant 0 : index
    %c0_205 = arith.constant 0 : index
    %226 = vector.load %arg15[%c0_204, %c0_205] : memref<2x6xbf16, #tpu.memory_space<vmem>>, vector<2x6xbf16>
    %c0_206 = arith.constant 0 : index
    %c0_207 = arith.constant 0 : index
    %227 = vector.load %arg12[%c0_206, %c0_207] : memref<6x512xbf16, #tpu.memory_space<vmem>>, vector<6x512xbf16>
    %cst_208 = arith.constant dense<0.000000e+00> : vector<2x512xf32>
    %228 = tpu.matmul %226, %227, %cst_208 {dimension_numbers = #tpu.dot_dimension_numbers<[1], [0], [0], [1], [0, 0, 1, 1], [], []>} : vector<2x6xbf16>, vector<6x512xbf16>, vector<2x512xf32> -> vector<2x512xf32>
    %229 = arith.addf %225, %228 : vector<2x512xf32>
    %c0_209 = arith.constant 0 : index
    %c0_210 = arith.constant 0 : index
    %230 = vector.load %arg13[%c0_209, %c0_210] : memref<1x512xf32, #tpu.memory_space<vmem>>, vector<1x512xf32>
    %231 = vector.broadcast %230 : vector<1x512xf32> to vector<2x512xf32>
    %232 = arith.addf %229, %231 : vector<2x512xf32>
    %c0_211 = arith.constant 0 : index
    %c0_212 = arith.constant 0 : index
    %c0_213 = arith.constant 0 : index
    %233 = vector.load %arg9[%c0_211, %c0_212, %c0_213] : memref<1x2x2xbf16, #tpu.memory_space<vmem>>, vector<1x2x2xbf16>
    %234 = vector.shape_cast %233 : vector<1x2x2xbf16> to vector<2x2xbf16>
    %cst_214 = arith.constant dense<0.000000e+00> : vector<2x64xf32>
    %235 = tpu.matmul %234, %222, %cst_214 {dimension_numbers = #tpu.dot_dimension_numbers<[1], [0], [0], [1], [0, 0, 1, 1], [], []>} : vector<2x2xbf16>, vector<2x64xbf16>, vector<2x64xf32> -> vector<2x64xf32>
    %236 = arith.truncf %235 : vector<2x64xf32> to vector<2x64xbf16>
    %c0_215 = arith.constant 0 : index
    %c0_216 = arith.constant 0 : index
    %c0_217 = arith.constant 0 : index
    %237 = vector.load %arg10[%c0_215, %c0_216, %c0_217] : memref<1x64x512xbf16, #tpu.memory_space<vmem>>, vector<1x64x512xbf16>
    %238 = vector.shape_cast %237 : vector<1x64x512xbf16> to vector<64x512xbf16>
    %cst_218 = arith.constant dense<0.000000e+00> : vector<2x512xf32>
    %239 = tpu.matmul %236, %238, %cst_218 {dimension_numbers = #tpu.dot_dimension_numbers<[1], [0], [0], [1], [0, 0, 1, 1], [], []>} : vector<2x64xbf16>, vector<64x512xbf16>, vector<2x512xf32> -> vector<2x512xf32>
    %240 = arith.addf %232, %239 : vector<2x512xf32>
    %cst_219 = arith.constant 0.000000e+00 : f32
    %241 = vector.broadcast %cst_219 : f32 to vector<2x512xf32>
    %242 = arith.maximumf %240, %241 : vector<2x512xf32>
    %243 = arith.truncf %242 : vector<2x512xf32> to vector<2x512xbf16>
    %c0_220 = arith.constant 0 : index
    %c0_221 = arith.constant 0 : index
    %244 = vector.load %arg16[%c0_220, %c0_221] : memref<512x1xbf16, #tpu.memory_space<vmem>>, vector<512x1xbf16>
    %cst_222 = arith.constant dense<0.000000e+00> : vector<2x1xf32>
    %245 = tpu.matmul %243, %244, %cst_222 {dimension_numbers = #tpu.dot_dimension_numbers<[1], [0], [0], [1], [0, 0, 1, 1], [], []>} : vector<2x512xbf16>, vector<512x1xbf16>, vector<2x1xf32> -> vector<2x1xf32>
    %c0_223 = arith.constant 0 : index
    %c0_224 = arith.constant 0 : index
    %246 = vector.load %arg17[%c0_223, %c0_224] : memref<1x1xf32, #tpu.memory_space<vmem>>, vector<1x1xf32>
    %247 = vector.broadcast %246 : vector<1x1xf32> to vector<2x1xf32>
    %248 = arith.addf %245, %247 : vector<2x1xf32>
    %c0_225 = arith.constant 0 : index
    %c0_226 = arith.constant 0 : index
    %249 = vector.load %arg18[%c0_225, %c0_226] : memref<2x1xf32, #tpu.memory_space<vmem>>, vector<2x1xf32>
    tpu.vector_store %arg18[%c0_225, %c0_226], %248 {strides = array<i32>} : memref<2x1xf32, #tpu.memory_space<vmem>>, vector<2x1xf32>,
    return
  }
}

</mosaic_0001>

<llo_original>
// kernel: critic_cnn_forward.1
$region0: #{critic_cnn_forward.1}
  #allocation0 [shape = 'u32[]', space=smem, size = 0x4, offset = 0x4, fixed_abs, tag = 'smem constant byte address 0x4 - core index']
  #allocation1 [shape = 'u32[72,128]{1,0:T(1,128)}', space=vmem, size = 0x9000, scoped, tag = 'internal scratch']
  #allocation2 [shape = 'f32[1,1]{1,0:T(1,128)S(1)}', space=vmem, size = 0x200, scoped, tag = 'scoped memory for critic_cnn_forward.1']
  %s0 = inlined_call_operand.vmem [shape: bf16[128,256], index: 0, kind: input, shape index: {}]
  %s1 = inlined_call_operand.vmem [shape: bf16[256,32], index: 1, kind: input, shape index: {}]
  %s2 = inlined_call_operand.vmem [shape: f32[1,32], index: 2, kind: input, shape index: {}]
  %s3 = inlined_call_operand.vmem [shape: bf16[16,18,128], index: 3, kind: input, shape index: {}]
  %s4 = inlined_call_operand.vmem [shape: bf16[16,32,64], index: 4, kind: input, shape index: {}]
  %s5 = inlined_call_operand.vmem [shape: f32[1,64], index: 5, kind: input, shape index: {}]
  %s6 = inlined_call_operand.vmem [shape: bf16[9,2,18], index: 6, kind: input, shape index: {}]
  %s7 = inlined_call_operand.vmem [shape: bf16[9,64,64], index: 7, kind: input, shape index: {}]
  %s8 = inlined_call_operand.vmem [shape: f32[1,64], index: 8, kind: input, shape index: {}]
  %s9 = inlined_call_operand.vmem [shape: bf16[1,2,2], index: 9, kind: input, shape index: {}]
  %s10 = inlined_call_operand.vmem [shape: bf16[1,64,512], index: 10, kind: input, shape index: {}]
  %s11 = inlined_call_operand.vmem [shape: bf16[8,512], index: 11, kind: input, shape index: {}]
  %s12 = inlined_call_operand.vmem [shape: bf16[6,512], index: 12, kind: input, shape index: {}]
  %s13 = inlined_call_operand.vmem [shape: f32[1,512], index: 13, kind: input, shape index: {}]
  %s14 = inlined_call_operand.vmem [shape: bf16[2,8], index: 14, kind: input, shape index: {}]
  %s15 = inlined_call_operand.vmem [shape: bf16[2,6], index: 15, kind: input, shape index: {}]
  %s16 = inlined_call_operand.vmem [shape: bf16[512,1], index: 16, kind: input, shape index: {}]
  %s17 = inlined_call_operand.<no memory space> [shape: f32[1,1], index: 17, kind: input, shape index: {}]
  %s18 = inlined_call_operand.vmem [shape: f32[2,1], index: 18, kind: output, shape index: {}]
  %s19 = sld [smem:[#allocation0]]
  $region82: #{critic_cnn_forward.1} parent=0
    _
  %s21 = ssub.s32 1, %s19
  %s22 = scalar_select 0, %s21, %s19
  %v23 = vstv %s17
  %24 = vst [vmem:[#allocation2] sm:$0x1] %v23
  // Predicated region
  $region2: #{critic_cnn_forward.1} parent=0 // pred_check
    _
  $region3: #{critic_cnn_forward.1} parent=0 // pred_check_branch
    %26 = sbr.rel (0) target = $region5
  $region4: #{critic_cnn_forward.1} parent=0 // pred_region
    _
  $region5: #{critic_cnn_forward.1} parent=0 // pred_fallthru
    _
  // Predicated region
  $region6: #{critic_cnn_forward.1} parent=0 // pred_check
    _
  $region7: #{critic_cnn_forward.1} parent=0 // pred_check_branch
    %28 = sbr.rel (0) target = $region9
  $region8: #{critic_cnn_forward.1} parent=0 // pred_region
    _
  $region9: #{critic_cnn_forward.1} parent=0 // pred_fallthru
    _
  // Predicated region
  $region10: #{critic_cnn_forward.1} parent=0 // pred_check
    _
  $region11: #{critic_cnn_forward.1} parent=0 // pred_check_branch
    %30 = sbr.rel (0) target = $region13
  $region12: #{critic_cnn_forward.1} parent=0 // pred_region
    _
  $region13: #{critic_cnn_forward.1} parent=0 // pred_fallthru
    _
  // Predicated region
  $region14: #{critic_cnn_forward.1} parent=0 // pred_check
    _
  $region15: #{critic_cnn_forward.1} parent=0 // pred_check_branch
    %32 = sbr.rel (0) target = $region17
  $region16: #{critic_cnn_forward.1} parent=0 // pred_region
    _
  $region17: #{critic_cnn_forward.1} parent=0 // pred_fallthru
    _
  // Predicated region
  $region18: #{critic_cnn_forward.1} parent=0 // pred_check
    _
  $region19: #{critic_cnn_forward.1} parent=0 // pred_check_branch
    %34 = sbr.rel (0) target = $region21
  $region20: #{critic_cnn_forward.1} parent=0 // pred_region
    _
  $region21: #{critic_cnn_forward.1} parent=0 // pred_fallthru
    _
  // Predicated region
  $region22: #{critic_cnn_forward.1} parent=0 // pred_check
    _
  $region23: #{critic_cnn_forward.1} parent=0 // pred_check_branch
    %36 = sbr.rel (0) target = $region25
  $region24: #{critic_cnn_forward.1} parent=0 // pred_region
    _
  $region25: #{critic_cnn_forward.1} parent=0 // pred_fallthru
    _
  // Predicated region
  $region26: #{critic_cnn_forward.1} parent=0 // pred_check
    _
  $region27: #{critic_cnn_forward.1} parent=0 // pred_check_branch
    %38 = sbr.rel (0) target = $region29
  $region28: #{critic_cnn_forward.1} parent=0 // pred_region
    _
  $region29: #{critic_cnn_forward.1} parent=0 // pred_fallthru
    _
  // Predicated region
  $region30: #{critic_cnn_forward.1} parent=0 // pred_check
    _
  $region31: #{critic_cnn_forward.1} parent=0 // pred_check_branch
    %40 = sbr.rel (0) target = $region33
  $region32: #{critic_cnn_forward.1} parent=0 // pred_region
    _
  $region33: #{critic_cnn_forward.1} parent=0 // pred_fallthru
    _
  // Predicated region
  $region34: #{critic_cnn_forward.1} parent=0 // pred_check
    _
  $region35: #{critic_cnn_forward.1} parent=0 // pred_check_branch
    %42 = sbr.rel (0) target = $region37
  $region36: #{critic_cnn_forward.1} parent=0 // pred_region
    _
  $region37: #{critic_cnn_forward.1} parent=0 // pred_fallthru
    _
  // Predicated region
  $region38: #{critic_cnn_forward.1} parent=0 // pred_check
    _
  $region39: #{critic_cnn_forward.1} parent=0 // pred_check_branch
    %44 = sbr.rel (0) target = $region41
  $region40: #{critic_cnn_forward.1} parent=0 // pred_region
    _
  $region41: #{critic_cnn_forward.1} parent=0 // pred_fallthru
    _
  // Predicated region
  $region42: #{critic_cnn_forward.1} parent=0 // pred_check
    _
  $region43: #{critic_cnn_forward.1} parent=0 // pred_check_branch
    %46 = sbr.rel (0) target = $region45
  $region44: #{critic_cnn_forward.1} parent=0 // pred_region
    _
  $region45: #{critic_cnn_forward.1} parent=0 // pred_fallthru
    _
  // Predicated region
  $region46: #{critic_cnn_forward.1} parent=0 // pred_check
    _
  $region47: #{critic_cnn_forward.1} parent=0 // pred_check_branch
    %48 = sbr.rel (0) target = $region49
  $region48: #{critic_cnn_forward.1} parent=0 // pred_region
    _
  $region49: #{critic_cnn_forward.1} parent=0 // pred_fallthru
    _
  // Predicated region
  $region50: #{critic_cnn_forward.1} parent=0 // pred_check
    _
  $region51: #{critic_cnn_forward.1} parent=0 // pred_check_branch
    %50 = sbr.rel (0) target = $region53
  $region52: #{critic_cnn_forward.1} parent=0 // pred_region
    _
  $region53: #{critic_cnn_forward.1} parent=0 // pred_fallthru
    _
  // Predicated region
  $region54: #{critic_cnn_forward.1} parent=0 // pred_check
    _
  $region55: #{critic_cnn_forward.1} parent=0 // pred_check_branch
    %52 = sbr.rel (0) target = $region57
  $region56: #{critic_cnn_forward.1} parent=0 // pred_region
    _
  $region57: #{critic_cnn_forward.1} parent=0 // pred_fallthru
    _
  // Predicated region
  $region58: #{critic_cnn_forward.1} parent=0 // pred_check
    _
  $region59: #{critic_cnn_forward.1} parent=0 // pred_check_branch
    %54 = sbr.rel (0) target = $region61
  $region60: #{critic_cnn_forward.1} parent=0 // pred_region
    _
  $region61: #{critic_cnn_forward.1} parent=0 // pred_fallthru
    _
  // Predicated region
  $region62: #{critic_cnn_forward.1} parent=0 // pred_check
    _
  $region63: #{critic_cnn_forward.1} parent=0 // pred_check_branch
    %56 = sbr.rel (0) target = $region65
  $region64: #{critic_cnn_forward.1} parent=0 // pred_region
    _
  $region65: #{critic_cnn_forward.1} parent=0 // pred_fallthru
    _
  // Predicated region
  $region66: #{critic_cnn_forward.1} parent=0 // pred_check
    _
  $region67: #{critic_cnn_forward.1} parent=0 // pred_check_branch
    %58 = sbr.rel (0) target = $region69
  $region68: #{critic_cnn_forward.1} parent=0 // pred_region
    _
  $region69: #{critic_cnn_forward.1} parent=0 // pred_fallthru
    _
  // Predicated region
  $region70: #{critic_cnn_forward.1} parent=0 // pred_check
    _
  $region71: #{critic_cnn_forward.1} parent=0 // pred_check_branch
    %60 = sbr.rel (0) target = $region73
  $region72: #{critic_cnn_forward.1} parent=0 // pred_region
    _
  $region73: #{critic_cnn_forward.1} parent=0 // pred_fallthru
    _
  %v62 = vld [vmem:[%s0] sm:$0xff]
  %v63 = vld [vmem:[%s0 + $0x8] sm:$0xff]
  %v64 = vld [vmem:[%s0 + $0x10] sm:$0xff]
  %v65 = vld [vmem:[%s0 + $0x18] sm:$0xff]
  %v66 = vld [vmem:[%s0 + $0x20] sm:$0xff]
  %v67 = vld [vmem:[%s0 + $0x28] sm:$0xff]
  %v68 = vld [vmem:[%s0 + $0x30] sm:$0xff]
  %v69 = vld [vmem:[%s0 + $0x38] sm:$0xff]
  %v70 = vld [vmem:[%s0 + $0x40] sm:$0xff]
  %v71 = vld [vmem:[%s0 + $0x48] sm:$0xff]
  %v72 = vld [vmem:[%s0 + $0x50] sm:$0xff]
  %v73 = vld [vmem:[%s0 + $0x58] sm:$0xff]
  %v74 = vld [vmem:[%s0 + $0x60] sm:$0xff]
  %v75 = vld [vmem:[%s0 + $0x68] sm:$0xff]
  %v76 = vld [vmem:[%s0 + $0x70] sm:$0xff]
  %v77 = vld [vmem:[%s0 + $0x78] sm:$0xff]
  %v78 = vld [vmem:[%s1] sm:$0xf]
  %v79 = vld [vmem:[%s1 + $0x4] sm:$0xf]
  %v80 = vld [vmem:[%s1 + $0x8] sm:$0xf]
  %v81 = vld [vmem:[%s1 + $0xc] sm:$0xf]
  %v82 = vld [vmem:[%s1 + $0x10] sm:$0xf]
  %v83 = vld [vmem:[%s1 + $0x14] sm:$0xf]
  %v84 = vld [vmem:[%s1 + $0x18] sm:$0xf]
  %v85 = vld [vmem:[%s1 + $0x1c] sm:$0xf]
  %v86 = vld [vmem:[%s1 + $0x20] sm:$0xf]
  %v87 = vld [vmem:[%s1 + $0x24] sm:$0xf]
  %v88 = vld [vmem:[%s1 + $0x28] sm:$0xf]
  %v89 = vld [vmem:[%s1 + $0x2c] sm:$0xf]
  %v90 = vld [vmem:[%s1 + $0x30] sm:$0xf]
  %v91 = vld [vmem:[%s1 + $0x34] sm:$0xf]
  %v92 = vld [vmem:[%s1 + $0x38] sm:$0xf]
  %v93 = vld [vmem:[%s1 + $0x3c] sm:$0xf]
  %v94 = vld [vmem:[%s1 + $0x40] sm:$0xf]
  %v95 = vld [vmem:[%s1 + $0x44] sm:$0xf]
  %v96 = vld [vmem:[%s1 + $0x48] sm:$0xf]
  %v97 = vld [vmem:[%s1 + $0x4c] sm:$0xf]
  %v98 = vld [vmem:[%s1 + $0x50] sm:$0xf]
  %v99 = vld [vmem:[%s1 + $0x54] sm:$0xf]
  %v100 = vld [vmem:[%s1 + $0x58] sm:$0xf]
  %v101 = vld [vmem:[%s1 + $0x5c] sm:$0xf]
  %v102 = vld [vmem:[%s1 + $0x60] sm:$0xf]
  %v103 = vld [vmem:[%s1 + $0x64] sm:$0xf]
  %v104 = vld [vmem:[%s1 + $0x68] sm:$0xf]
  %v105 = vld [vmem:[%s1 + $0x6c] sm:$0xf]
  %v106 = vld [vmem:[%s1 + $0x70] sm:$0xf]
  %v107 = vld [vmem:[%s1 + $0x74] sm:$0xf]
  %v108 = vld [vmem:[%s1 + $0x78] sm:$0xf]
  %v109 = vld [vmem:[%s1 + $0x7c] sm:$0xf]
  %v110 = vld [vmem:[%s2] sm:$0x1]
  %v112 = vperm.slane %v110, 0
  %v130 = vunpack.c.l.b16 %v62
  %v131 = vunpack.c.h.b16 %v62
  %v132 = vunpack.c.l.b16 %v63
  %v133 = vunpack.c.h.b16 %v63
  %v134 = vunpack.c.l.b16 %v64
  %v135 = vunpack.c.h.b16 %v64
  %v136 = vunpack.c.l.b16 %v65
  %v137 = vunpack.c.h.b16 %v65
  %v138 = vunpack.c.l.b16 %v66
  %v139 = vunpack.c.h.b16 %v66
  %v140 = vunpack.c.l.b16 %v67
  %v141 = vunpack.c.h.b16 %v67
  %v142 = vunpack.c.l.b16 %v68
  %v143 = vunpack.c.h.b16 %v68
  %v144 = vunpack.c.l.b16 %v69
  %v145 = vunpack.c.h.b16 %v69
  %v146 = vunpack.c.l.b16 %v70
  %v147 = vunpack.c.h.b16 %v70
  %v148 = vunpack.c.l.b16 %v71
  %v149 = vunpack.c.h.b16 %v71
  %v150 = vunpack.c.l.b16 %v72
  %v151 = vunpack.c.h.b16 %v72
  %v152 = vunpack.c.l.b16 %v73
  %v153 = vunpack.c.h.b16 %v73
  %v154 = vunpack.c.l.b16 %v74
  %v155 = vunpack.c.h.b16 %v74
  %v156 = vunpack.c.l.b16 %v75
  %v157 = vunpack.c.h.b16 %v75
  %v158 = vunpack.c.l.b16 %v76
  %v159 = vunpack.c.h.b16 %v76
  %v160 = vunpack.c.l.b16 %v77
  %v161 = vunpack.c.h.b16 %v77
  %v162 = vpack.c.b16 %v132, %v130
  %v163 = vpack.c.b16 %v133, %v131
  %v164 = vpack.c.b16 %v136, %v134
  %v165 = vpack.c.b16 %v137, %v135
  %v166 = vpack.c.b16 %v140, %v138
  %v167 = vpack.c.b16 %v141, %v139
  %v168 = vpack.c.b16 %v144, %v142
  %v169 = vpack.c.b16 %v145, %v143
  %v170 = vpack.c.b16 %v148, %v146
  %v171 = vpack.c.b16 %v149, %v147
  %v172 = vpack.c.b16 %v152, %v150
  %v173 = vpack.c.b16 %v153, %v151
  %v174 = vpack.c.b16 %v156, %v154
  %v175 = vpack.c.b16 %v157, %v155
  %v176 = vpack.c.b16 %v160, %v158
  %v177 = vpack.c.b16 %v161, %v159
  %v226 = vunpack.c.l.b16 %v78
  %v227 = vunpack.c.l.b16 %v79
  %v228 = vunpack.c.l.b16 %v80
  %v229 = vunpack.c.l.b16 %v81
  %v230 = vunpack.c.l.b16 %v82
  %v231 = vunpack.c.l.b16 %v83
  %v232 = vunpack.c.l.b16 %v84
  %v233 = vunpack.c.l.b16 %v85
  %v234 = vunpack.c.l.b16 %v86
  %v235 = vunpack.c.l.b16 %v87
  %v236 = vunpack.c.l.b16 %v88
  %v237 = vunpack.c.l.b16 %v89
  %v238 = vunpack.c.l.b16 %v90
  %v239 = vunpack.c.l.b16 %v91
  %v240 = vunpack.c.l.b16 %v92
  %v241 = vunpack.c.l.b16 %v93
  %v242 = vunpack.c.l.b16 %v94
  %v243 = vunpack.c.l.b16 %v95
  %v244 = vunpack.c.l.b16 %v96
  %v245 = vunpack.c.l.b16 %v97
  %v246 = vunpack.c.l.b16 %v98
  %v247 = vunpack.c.l.b16 %v99
  %v248 = vunpack.c.l.b16 %v100
  %v249 = vunpack.c.l.b16 %v101
  %v250 = vunpack.c.l.b16 %v102
  %v251 = vunpack.c.l.b16 %v103
  %v252 = vunpack.c.l.b16 %v104
  %v253 = vunpack.c.l.b16 %v105
  %v254 = vunpack.c.l.b16 %v106
  %v255 = vunpack.c.l.b16 %v107
  %v256 = vunpack.c.l.b16 %v108
  %v257 = vunpack.c.l.b16 %v109
  %v258 = vpack.c.b16 %v227, %v226
  %v259 = vpack.c.b16 %v229, %v228
  %v260 = vpack.c.b16 %v231, %v230
  %v261 = vpack.c.b16 %v233, %v232
  %v262 = vpack.c.b16 %v235, %v234
  %v263 = vpack.c.b16 %v237, %v236
  %v264 = vpack.c.b16 %v239, %v238
  %v265 = vpack.c.b16 %v241, %v240
  %v266 = vpack.c.b16 %v243, %v242
  %v267 = vpack.c.b16 %v245, %v244
  %v268 = vpack.c.b16 %v247, %v246
  %v269 = vpack.c.b16 %v249, %v248
  %v270 = vpack.c.b16 %v251, %v250
  %v271 = vpack.c.b16 %v253, %v252
  %v272 = vpack.c.b16 %v255, %v254
  %v273 = vpack.c.b16 %v257, %v256
  %290 = vmatpush.bf16.msra.mxu0 %v265
  %291 = vmatpush.bf16.msra.mxu0 %v264
  %292 = vmatpush.bf16.msra.mxu0 %v263
  %293 = vmatpush.bf16.msra.mxu0 %v262
  %294 = vmatpush.bf16.msra.mxu0 %v261
  %295 = vmatpush.bf16.msra.mxu0 %v260
  %296 = vmatpush.bf16.msra.mxu0 %v259
  %297 = vmatpush.bf16.msra.mxu0 %v258
  %298 = vmatmul.bf16.gmra.mxu0 %v162
  %v299 = vpop.f32.mrf.mxu0
  %v300 = vadd.f32 %v112, %v299
  %v301 = vpop.f32.mrf.mxu0
  %v302 = vadd.f32 %v112, %v301
  %303 = vmatmul.bf16.gmra.mxu0 %v164
  %v304 = vpop.f32.mrf.mxu0
  %v305 = vadd.f32 %v112, %v304
  %v306 = vpop.f32.mrf.mxu0
  %v307 = vadd.f32 %v112, %v306
  %308 = vmatmul.bf16.gmra.mxu0 %v166
  %v309 = vpop.f32.mrf.mxu0
  %v310 = vadd.f32 %v112, %v309
  %v311 = vpop.f32.mrf.mxu0
  %v312 = vadd.f32 %v112, %v311
  %313 = vmatmul.bf16.gmra.mxu0 %v168
  %v314 = vpop.f32.mrf.mxu0
  %v315 = vadd.f32 %v112, %v314
  %v316 = vpop.f32.mrf.mxu0
  %v317 = vadd.f32 %v112, %v316
  %318 = vmatmul.bf16.gmra.mxu0 %v170
  %v319 = vpop.f32.mrf.mxu0
  %v320 = vadd.f32 %v112, %v319
  %v321 = vpop.f32.mrf.mxu0
  %v322 = vadd.f32 %v112, %v321
  %323 = vmatmul.bf16.gmra.mxu0 %v172
  %v324 = vpop.f32.mrf.mxu0
  %v325 = vadd.f32 %v112, %v324
  %v326 = vpop.f32.mrf.mxu0
  %v327 = vadd.f32 %v112, %v326
  %328 = vmatmul.bf16.gmra.mxu0 %v174
  %v329 = vpop.f32.mrf.mxu0
  %v330 = vadd.f32 %v112, %v329
  %v331 = vpop.f32.mrf.mxu0
  %v332 = vadd.f32 %v112, %v331
  %333 = vmatmul.bf16.gmra.mxu0 %v176
  %v334 = vpop.f32.mrf.mxu0
  %v335 = vadd.f32 %v112, %v334
  %v336 = vpop.f32.mrf.mxu0
  %v337 = vadd.f32 %v112, %v336
  %338 = vdwg.mxu0
  %339 = vmatpush.bf16.msra.mxu0 %v273
  %340 = vmatpush.bf16.msra.mxu0 %v272
  %341 = vmatpush.bf16.msra.mxu0 %v271
  %342 = vmatpush.bf16.msra.mxu0 %v270
  %343 = vmatpush.bf16.msra.mxu0 %v269
  %344 = vmatpush.bf16.msra.mxu0 %v268
  %345 = vmatpush.bf16.msra.mxu0 %v267
  %346 = vmatpush.bf16.msra.mxu0 %v266
  %347 = vmatmul.bf16.gmra.mxu0 %v163
  %v348 = vpop.f32.mrf.mxu0
  %v349 = vadd.f32 %v300, %v348
  %v350 = vpop.f32.mrf.mxu0
  %v351 = vadd.f32 %v302, %v350
  %352 = vmatmul.bf16.gmra.mxu0 %v165
  %v353 = vpop.f32.mrf.mxu0
  %v354 = vadd.f32 %v305, %v353
  %v355 = vpop.f32.mrf.mxu0
  %v356 = vadd.f32 %v307, %v355
  %357 = vmatmul.bf16.gmra.mxu0 %v167
  %v358 = vpop.f32.mrf.mxu0
  %v359 = vadd.f32 %v310, %v358
  %v360 = vpop.f32.mrf.mxu0
  %v361 = vadd.f32 %v312, %v360
  %362 = vmatmul.bf16.gmra.mxu0 %v169
  %v363 = vpop.f32.mrf.mxu0
  %v364 = vadd.f32 %v315, %v363
  %v365 = vpop.f32.mrf.mxu0
  %v366 = vadd.f32 %v317, %v365
  %367 = vmatmul.bf16.gmra.mxu0 %v171
  %v368 = vpop.f32.mrf.mxu0
  %v369 = vadd.f32 %v320, %v368
  %v370 = vpop.f32.mrf.mxu0
  %v371 = vadd.f32 %v322, %v370
  %372 = vmatmul.bf16.gmra.mxu0 %v173
  %v373 = vpop.f32.mrf.mxu0
  %v374 = vadd.f32 %v325, %v373
  %v375 = vpop.f32.mrf.mxu0
  %v376 = vadd.f32 %v327, %v375
  %377 = vmatmul.bf16.gmra.mxu0 %v175
  %v378 = vpop.f32.mrf.mxu0
  %v379 = vadd.f32 %v330, %v378
  %v380 = vpop.f32.mrf.mxu0
  %v381 = vadd.f32 %v332, %v380
  %382 = vmatmul.bf16.gmra.mxu0 %v177
  %v383 = vpop.f32.mrf.mxu0
  %v384 = vadd.f32 %v335, %v383
  %v385 = vpop.f32.mrf.mxu0
  %v386 = vadd.f32 %v337, %v385
  %387 = vdwg.mxu0
  %v388 = vmax.f32 %v349, 0.0
  %v389 = vmax.f32 %v351, 0.0
  %v390 = vmax.f32 %v354, 0.0
  %v391 = vmax.f32 %v356, 0.0
  %v392 = vmax.f32 %v359, 0.0
  %v393 = vmax.f32 %v361, 0.0
  %v394 = vmax.f32 %v364, 0.0
  %v395 = vmax.f32 %v366, 0.0
  %v396 = vmax.f32 %v369, 0.0
  %v397 = vmax.f32 %v371, 0.0
  %v398 = vmax.f32 %v374, 0.0
  %v399 = vmax.f32 %v376, 0.0
  %v400 = vmax.f32 %v379, 0.0
  %v401 = vmax.f32 %v381, 0.0
  %v402 = vmax.f32 %v384, 0.0
  %v403 = vmax.f32 %v386, 0.0
  %v404 = vpack.c.bf16 %v389, %v388
  %v405 = vpack.c.bf16 %v391, %v390
  %v406 = vpack.c.bf16 %v393, %v392
  %v407 = vpack.c.bf16 %v395, %v394
  %v408 = vpack.c.bf16 %v397, %v396
  %v409 = vpack.c.bf16 %v399, %v398
  %v410 = vpack.c.bf16 %v401, %v400
  %v411 = vpack.c.bf16 %v403, %v402
  %v412 = vld [vmem:[%s3] sm:$0xf]
  %v413 = vld [vmem:[%s3 + $0x4] sm:$0xf]
  %v414 = vld [vmem:[%s3 + $0x8] sm:$0x1]
  %v418 = vunpack.c.l.b16 %v412
  %v419 = vunpack.c.l.b16 %v413
  %v420 = vunpack.c.l.b16 %v414
  %v421 = vpack.c.b16 %v419, %v418
  %v422 = vpack.c.b16 %v420, %v420
  %425 = vmatpush.bf16.msra.mxu0 %v411
  %426 = vmatpush.bf16.msra.mxu0 %v410
  %427 = vmatpush.bf16.msra.mxu0 %v409
  %428 = vmatpush.bf16.msra.mxu0 %v408
  %429 = vmatpush.bf16.msra.mxu0 %v407
  %430 = vmatpush.bf16.msra.mxu0 %v406
  %431 = vmatpush.bf16.msra.mxu0 %v405
  %432 = vmatpush.bf16.msra.mxu0 %v404
  %433 = vmatmul.bf16.gmra.mxu0 %v421
  %v434 = vpop.f32.mrf.mxu0
  %v435 = vadd.f32 0.0, %v434
  %v436 = vpop.f32.mrf.mxu0
  %v437 = vadd.f32 0.0, %v436
  %438 = vmatmul.bf16.gmra.mxu0 %v422
  %v439 = vpop.f32.mrf.mxu0
  %v440 = vadd.f32 0.0, %v439
  %v441 = vpop.f32.mrf.mxu0
  %442 = vdwg.mxu0
  %v443 = vpack.c.bf16 %v437, %v435
  %v444 = vpack.c.bf16 %v440, %v440
  %v445 = vld [vmem:[%s4] sm:$0xf]
  %v446 = vld [vmem:[%s4 + $0x4] sm:$0xf]
  %v447 = vld [vmem:[%s4 + $0x8] sm:$0xf]
  %v448 = vld [vmem:[%s4 + $0xc] sm:$0xf]
  %s449 = scalar_lea.vmem %s3, 12
  %v450 = vld [vmem:[%s449] sm:$0xf]
  %v451 = vld [vmem:[%s449 + $0x4] sm:$0xf]
  %v452 = vld [vmem:[%s449 + $0x8] sm:$0x1]
  %v456 = vunpack.c.l.b16 %v450
  %v457 = vunpack.c.l.b16 %v451
  %v458 = vunpack.c.l.b16 %v452
  %v459 = vpack.c.b16 %v457, %v456
  %v460 = vpack.c.b16 %v458, %v458
  %463 = vmatpush.bf16.msra.mxu0 %v411
  %464 = vmatpush.bf16.msra.mxu0 %v410
  %465 = vmatpush.bf16.msra.mxu0 %v409
  %466 = vmatpush.bf16.msra.mxu0 %v408
  %467 = vmatpush.bf16.msra.mxu0 %v407
  %468 = vmatpush.bf16.msra.mxu0 %v406
  %469 = vmatpush.bf16.msra.mxu0 %v405
  %470 = vmatpush.bf16.msra.mxu0 %v404
  %471 = vmatmul.bf16.gmra.mxu0 %v459
  %v472 = vpop.f32.mrf.mxu0
  %v473 = vadd.f32 0.0, %v472
  %v474 = vpop.f32.mrf.mxu0
  %v475 = vadd.f32 0.0, %v474
  %476 = vmatmul.bf16.gmra.mxu0 %v460
  %v477 = vpop.f32.mrf.mxu0
  %v478 = vadd.f32 0.0, %v477
  %v479 = vpop.f32.mrf.mxu0
  %480 = vdwg.mxu0
  %v481 = vpack.c.bf16 %v475, %v473
  %v482 = vpack.c.bf16 %v478, %v478
  %s483 = scalar_lea.vmem %s4, 16
  %v484 = vld [vmem:[%s483] sm:$0xf]
  %v485 = vld [vmem:[%s483 + $0x4] sm:$0xf]
  %v486 = vld [vmem:[%s483 + $0x8] sm:$0xf]
  %v487 = vld [vmem:[%s483 + $0xc] sm:$0xf]
  %v492 = vunpack.c.l.b16 %v484
  %v493 = vunpack.c.l.b16 %v485
  %v494 = vunpack.c.l.b16 %v486
  %v495 = vunpack.c.l.b16 %v487
  %v496 = vpack.c.b16 %v493, %v492
  %v497 = vpack.c.b16 %v495, %v494
  %vm500 = vcmask 261120
  %v502 = vsel %vm500, %v481, 0
  %v505 = vsel %vm500, %v482, 0
  %507 = vmatpush.bf16.msra.mxu0 0
  %508 = vmatpush.bf16.msra.mxu0 0
  %509 = vmatpush.bf16.msra.mxu0 0
  %510 = vmatpush.bf16.msra.mxu0 0
  %511 = vmatpush.bf16.msra.mxu0 0
  %512 = vmatpush.bf16.msra.mxu0 0
  %513 = vmatpush.bf16.msra.mxu0 %v497
  %514 = vmatpush.bf16.msra.mxu0 %v496
  %515 = vmatmul.bf16.gmra.mxu0 %v502
  %v516 = vpop.f32.mrf.mxu0
  %v517 = vadd.f32 0.0, %v516
  %v518 = vpop.f32.mrf.mxu0
  %v519 = vadd.f32 0.0, %v518
  %520 = vmatmul.bf16.gmra.mxu0 %v505
  %v521 = vpop.f32.mrf.mxu0
  %v522 = vadd.f32 0.0, %v521
  %v523 = vpop.f32.mrf.mxu0
  %524 = vdwg.mxu0
  %v529 = vunpack.c.l.b16 %v445
  %v530 = vunpack.c.l.b16 %v446
  %v531 = vunpack.c.l.b16 %v447
  %v532 = vunpack.c.l.b16 %v448
  %v533 = vpack.c.b16 %v530, %v529
  %v534 = vpack.c.b16 %v532, %v531
  %v538 = vsel %vm500, %v443, 0
  %v541 = vsel %vm500, %v444, 0
  %543 = vmatpush.bf16.msra.mxu0 0
  %544 = vmatpush.bf16.msra.mxu0 0
  %545 = vmatpush.bf16.msra.mxu0 0
  %546 = vmatpush.bf16.msra.mxu0 0
  %547 = vmatpush.bf16.msra.mxu0 0
  %548 = vmatpush.bf16.msra.mxu0 0
  %549 = vmatpush.bf16.msra.mxu0 %v534
  %550 = vmatpush.bf16.msra.mxu0 %v533
  %551 = vmatmul.bf16.gmra.mxu0 %v538
  %v552 = vpop.f32.mrf.mxu0
  %v553 = vadd.f32 %v517, %v552
  %v554 = vpop.f32.mrf.mxu0
  %v555 = vadd.f32 %v519, %v554
  %556 = vmatmul.bf16.gmra.mxu0 %v541
  %v557 = vpop.f32.mrf.mxu0
  %v558 = vadd.f32 %v522, %v557
  %v559 = vpop.f32.mrf.mxu0
  %560 = vdwg.mxu0
  %s561 = scalar_lea.vmem %s3, 24
  %v562 = vld [vmem:[%s561] sm:$0xf]
  %v563 = vld [vmem:[%s561 + $0x4] sm:$0xf]
  %v564 = vld [vmem:[%s561 + $0x8] sm:$0x1]
  %v568 = vunpack.c.l.b16 %v562
  %v569 = vunpack.c.l.b16 %v563
  %v570 = vunpack.c.l.b16 %v564
  %v571 = vpack.c.b16 %v569, %v568
  %v572 = vpack.c.b16 %v570, %v570
  %575 = vmatpush.bf16.msra.mxu0 %v411
  %576 = vmatpush.bf16.msra.mxu0 %v410
  %577 = vmatpush.bf16.msra.mxu0 %v409
  %578 = vmatpush.bf16.msra.mxu0 %v408
  %579 = vmatpush.bf16.msra.mxu0 %v407
  %580 = vmatpush.bf16.msra.mxu0 %v406
  %581 = vmatpush.bf16.msra.mxu0 %v405
  %582 = vmatpush.bf16.msra.mxu0 %v404
  %583 = vmatmul.bf16.gmra.mxu0 %v571
  %v584 = vpop.f32.mrf.mxu0
  %v585 = vadd.f32 0.0, %v584
  %v586 = vpop.f32.mrf.mxu0
  %v587 = vadd.f32 0.0, %v586
  %588 = vmatmul.bf16.gmra.mxu0 %v572
  %v589 = vpop.f32.mrf.mxu0
  %v590 = vadd.f32 0.0, %v589
  %v591 = vpop.f32.mrf.mxu0
  %592 = vdwg.mxu0
  %v593 = vpack.c.bf16 %v587, %v585
  %v594 = vpack.c.bf16 %v590, %v590
  %s595 = scalar_lea.vmem %s4, 32
  %v596 = vld [vmem:[%s595] sm:$0xf]
  %v597 = vld [vmem:[%s595 + $0x4] sm:$0xf]
  %v598 = vld [vmem:[%s595 + $0x8] sm:$0xf]
  %v599 = vld [vmem:[%s595 + $0xc] sm:$0xf]
  %v604 = vunpack.c.l.b16 %v596
  %v605 = vunpack.c.l.b16 %v597
  %v606 = vunpack.c.l.b16 %v598
  %v607 = vunpack.c.l.b16 %v599
  %v608 = vpack.c.b16 %v605, %v604
  %v609 = vpack.c.b16 %v607, %v606
  %v613 = vsel %vm500, %v593, 0
  %v616 = vsel %vm500, %v594, 0
  %618 = vmatpush.bf16.msra.mxu0 0
  %619 = vmatpush.bf16.msra.mxu0 0
  %620 = vmatpush.bf16.msra.mxu0 0
  %621 = vmatpush.bf16.msra.mxu0 0
  %622 = vmatpush.bf16.msra.mxu0 0
  %623 = vmatpush.bf16.msra.mxu0 0
  %624 = vmatpush.bf16.msra.mxu0 %v609
  %625 = vmatpush.bf16.msra.mxu0 %v608
  %626 = vmatmul.bf16.gmra.mxu0 %v613
  %v627 = vpop.f32.mrf.mxu0
  %v628 = vadd.f32 0.0, %v627
  %v629 = vpop.f32.mrf.mxu0
  %v630 = vadd.f32 0.0, %v629
  %631 = vmatmul.bf16.gmra.mxu0 %v616
  %v632 = vpop.f32.mrf.mxu0
  %v633 = vadd.f32 0.0, %v632
  %v634 = vpop.f32.mrf.mxu0
  %635 = vdwg.mxu0
  %v636 = vadd.f32 %v553, %v628
  %v637 = vadd.f32 %v555, %v630
  %v638 = vadd.f32 %v558, %v633
  %s639 = scalar_lea.vmem %s3, 36
  %v640 = vld [vmem:[%s639] sm:$0xf]
  %v641 = vld [vmem:[%s639 + $0x4] sm:$0xf]
  %v642 = vld [vmem:[%s639 + $0x8] sm:$0x1]
  %v646 = vunpack.c.l.b16 %v640
  %v647 = vunpack.c.l.b16 %v641
  %v648 = vunpack.c.l.b16 %v642
  %v649 = vpack.c.b16 %v647, %v646
  %v650 = vpack.c.b16 %v648, %v648
  %653 = vmatpush.bf16.msra.mxu0 %v411
  %654 = vmatpush.bf16.msra.mxu0 %v410
  %655 = vmatpush.bf16.msra.mxu0 %v409
  %656 = vmatpush.bf16.msra.mxu0 %v408
  %657 = vmatpush.bf16.msra.mxu0 %v407
  %658 = vmatpush.bf16.msra.mxu0 %v406
  %659 = vmatpush.bf16.msra.mxu0 %v405
  %660 = vmatpush.bf16.msra.mxu0 %v404
  %661 = vmatmul.bf16.gmra.mxu0 %v649
  %v662 = vpop.f32.mrf.mxu0
  %v663 = vadd.f32 0.0, %v662
  %v664 = vpop.f32.mrf.mxu0
  %v665 = vadd.f32 0.0, %v664
  %666 = vmatmul.bf16.gmra.mxu0 %v650
  %v667 = vpop.f32.mrf.mxu0
  %v668 = vadd.f32 0.0, %v667
  %v669 = vpop.f32.mrf.mxu0
  %670 = vdwg.mxu0
  %v671 = vpack.c.bf16 %v665, %v663
  %v672 = vpack.c.bf16 %v668, %v668
  %s673 = scalar_lea.vmem %s4, 48
  %v674 = vld [vmem:[%s673] sm:$0xf]
  %v675 = vld [vmem:[%s673 + $0x4] sm:$0xf]
  %v676 = vld [vmem:[%s673 + $0x8] sm:$0xf]
  %v677 = vld [vmem:[%s673 + $0xc] sm:$0xf]
  %v682 = vunpack.c.l.b16 %v674
  %v683 = vunpack.c.l.b16 %v675
  %v684 = vunpack.c.l.b16 %v676
  %v685 = vunpack.c.l.b16 %v677
  %v686 = vpack.c.b16 %v683, %v682
  %v687 = vpack.c.b16 %v685, %v684
  %v691 = vsel %vm500, %v671, 0
  %v694 = vsel %vm500, %v672, 0
  %696 = vmatpush.bf16.msra.mxu0 0
  %697 = vmatpush.bf16.msra.mxu0 0
  %698 = vmatpush.bf16.msra.mxu0 0
  %699 = vmatpush.bf16.msra.mxu0 0
  %700 = vmatpush.bf16.msra.mxu0 0
  %701 = vmatpush.bf16.msra.mxu0 0
  %702 = vmatpush.bf16.msra.mxu0 %v687
  %703 = vmatpush.bf16.msra.mxu0 %v686
  %704 = vmatmul.bf16.gmra.mxu0 %v691
  %v705 = vpop.f32.mrf.mxu0
  %v706 = vadd.f32 0.0, %v705
  %v707 = vpop.f32.mrf.mxu0
  %v708 = vadd.f32 0.0, %v707
  %709 = vmatmul.bf16.gmra.mxu0 %v694
  %v710 = vpop.f32.mrf.mxu0
  %v711 = vadd.f32 0.0, %v710
  %v712 = vpop.f32.mrf.mxu0
  %713 = vdwg.mxu0
  %v714 = vadd.f32 %v636, %v706
  %v715 = vadd.f32 %v637, %v708
  %v716 = vadd.f32 %v638, %v711
  %s717 = scalar_lea.vmem %s3, 48
  %v718 = vld [vmem:[%s717] sm:$0xf]
  %v719 = vld [vmem:[%s717 + $0x4] sm:$0xf]
  %v720 = vld [vmem:[%s717 + $0x8] sm:$0x1]
  %v724 = vunpack.c.l.b16 %v718
  %v725 = vunpack.c.l.b16 %v719
  %v726 = vunpack.c.l.b16 %v720
  %v727 = vpack.c.b16 %v725, %v724
  %v728 = vpack.c.b16 %v726, %v726
  %731 = vmatpush.bf16.msra.mxu0 %v411
  %732 = vmatpush.bf16.msra.mxu0 %v410
  %733 = vmatpush.bf16.msra.mxu0 %v409
  %734 = vmatpush.bf16.msra.mxu0 %v408
  %735 = vmatpush.bf16.msra.mxu0 %v407
  %736 = vmatpush.bf16.msra.mxu0 %v406
  %737 = vmatpush.bf16.msra.mxu0 %v405
  %738 = vmatpush.bf16.msra.mxu0 %v404
  %739 = vmatmul.bf16.gmra.mxu0 %v727
  %v740 = vpop.f32.mrf.mxu0
  %v741 = vadd.f32 0.0, %v740
  %v742 = vpop.f32.mrf.mxu0
  %v743 = vadd.f32 0.0, %v742
  %744 = vmatmul.bf16.gmra.mxu0 %v728
  %v745 = vpop.f32.mrf.mxu0
  %v746 = vadd.f32 0.0, %v745
  %v747 = vpop.f32.mrf.mxu0
  %748 = vdwg.mxu0
  %v749 = vpack.c.bf16 %v743, %v741
  %v750 = vpack.c.bf16 %v746, %v746
  %s751 = scalar_lea.vmem %s4, 64
  %v752 = vld [vmem:[%s751] sm:$0xf]
  %v753 = vld [vmem:[%s751 + $0x4] sm:$0xf]
  %v754 = vld [vmem:[%s751 + $0x8] sm:$0xf]
  %v755 = vld [vmem:[%s751 + $0xc] sm:$0xf]
  %v760 = vunpack.c.l.b16 %v752
  %v761 = vunpack.c.l.b16 %v753
  %v762 = vunpack.c.l.b16 %v754
  %v763 = vunpack.c.l.b16 %v755
  %v764 = vpack.c.b16 %v761, %v760
  %v765 = vpack.c.b16 %v763, %v762
  %v769 = vsel %vm500, %v749, 0
  %v772 = vsel %vm500, %v750, 0
  %774 = vmatpush.bf16.msra.mxu0 0
  %775 = vmatpush.bf16.msra.mxu0 0
  %776 = vmatpush.bf16.msra.mxu0 0
  %777 = vmatpush.bf16.msra.mxu0 0
  %778 = vmatpush.bf16.msra.mxu0 0
  %779 = vmatpush.bf16.msra.mxu0 0
  %780 = vmatpush.bf16.msra.mxu0 %v765
  %781 = vmatpush.bf16.msra.mxu0 %v764
  %782 = vmatmul.bf16.gmra.mxu0 %v769
  %v783 = vpop.f32.mrf.mxu0
  %v784 = vadd.f32 0.0, %v783
  %v785 = vpop.f32.mrf.mxu0
  %v786 = vadd.f32 0.0, %v785
  %787 = vmatmul.bf16.gmra.mxu0 %v772
  %v788 = vpop.f32.mrf.mxu0
  %v789 = vadd.f32 0.0, %v788
  %v790 = vpop.f32.mrf.mxu0
  %791 = vdwg.mxu0
  %v792 = vadd.f32 %v714, %v784
  %v793 = vadd.f32 %v715, %v786
  %v794 = vadd.f32 %v716, %v789
  %s795 = scalar_lea.vmem %s3, 60
  %v796 = vld [vmem:[%s795] sm:$0xf]
  %v797 = vld [vmem:[%s795 + $0x4] sm:$0xf]
  %v798 = vld [vmem:[%s795 + $0x8] sm:$0x1]
  %v802 = vunpack.c.l.b16 %v796
  %v803 = vunpack.c.l.b16 %v797
  %v804 = vunpack.c.l.b16 %v798
  %v805 = vpack.c.b16 %v803, %v802
  %v806 = vpack.c.b16 %v804, %v804
  %809 = vmatpush.bf16.msra.mxu0 %v411
  %810 = vmatpush.bf16.msra.mxu0 %v410
  %811 = vmatpush.bf16.msra.mxu0 %v409
  %812 = vmatpush.bf16.msra.mxu0 %v408
  %813 = vmatpush.bf16.msra.mxu0 %v407
  %814 = vmatpush.bf16.msra.mxu0 %v406
  %815 = vmatpush.bf16.msra.mxu0 %v405
  %816 = vmatpush.bf16.msra.mxu0 %v404
  %817 = vmatmul.bf16.gmra.mxu0 %v805
  %v818 = vpop.f32.mrf.mxu0
  %v819 = vadd.f32 0.0, %v818
  %v820 = vpop.f32.mrf.mxu0
  %v821 = vadd.f32 0.0, %v820
  %822 = vmatmul.bf16.gmra.mxu0 %v806
  %v823 = vpop.f32.mrf.mxu0
  %v824 = vadd.f32 0.0, %v823
  %v825 = vpop.f32.mrf.mxu0
  %826 = vdwg.mxu0
  %v827 = vpack.c.bf16 %v821, %v819
  %v828 = vpack.c.bf16 %v824, %v824
  %s829 = scalar_lea.vmem %s4, 80
  %v830 = vld [vmem:[%s829] sm:$0xf]
  %v831 = vld [vmem:[%s829 + $0x4] sm:$0xf]
  %v832 = vld [vmem:[%s829 + $0x8] sm:$0xf]
  %v833 = vld [vmem:[%s829 + $0xc] sm:$0xf]
  %v838 = vunpack.c.l.b16 %v830
  %v839 = vunpack.c.l.b16 %v831
  %v840 = vunpack.c.l.b16 %v832
  %v841 = vunpack.c.l.b16 %v833
  %v842 = vpack.c.b16 %v839, %v838
  %v843 = vpack.c.b16 %v841, %v840
  %v847 = vsel %vm500, %v827, 0
  %v850 = vsel %vm500, %v828, 0
  %852 = vmatpush.bf16.msra.mxu0 0
  %853 = vmatpush.bf16.msra.mxu0 0
  %854 = vmatpush.bf16.msra.mxu0 0
  %855 = vmatpush.bf16.msra.mxu0 0
  %856 = vmatpush.bf16.msra.mxu0 0
  %857 = vmatpush.bf16.msra.mxu0 0
  %858 = vmatpush.bf16.msra.mxu0 %v843
  %859 = vmatpush.bf16.msra.mxu0 %v842
  %860 = vmatmul.bf16.gmra.mxu0 %v847
  %v861 = vpop.f32.mrf.mxu0
  %v862 = vadd.f32 0.0, %v861
  %v863 = vpop.f32.mrf.mxu0
  %v864 = vadd.f32 0.0, %v863
  %865 = vmatmul.bf16.gmra.mxu0 %v850
  %v866 = vpop.f32.mrf.mxu0
  %v867 = vadd.f32 0.0, %v866
  %v868 = vpop.f32.mrf.mxu0
  %869 = vdwg.mxu0
  %v870 = vadd.f32 %v792, %v862
  %v871 = vadd.f32 %v793, %v864
  %v872 = vadd.f32 %v794, %v867
  %s873 = scalar_lea.vmem %s3, 72
  %v874 = vld [vmem:[%s873] sm:$0xf]
  %v875 = vld [vmem:[%s873 + $0x4] sm:$0xf]
  %v876 = vld [vmem:[%s873 + $0x8] sm:$0x1]
  %v880 = vunpack.c.l.b16 %v874
  %v881 = vunpack.c.l.b16 %v875
  %v882 = vunpack.c.l.b16 %v876
  %v883 = vpack.c.b16 %v881, %v880
  %v884 = vpack.c.b16 %v882, %v882
  %887 = vmatpush.bf16.msra.mxu0 %v411
  %888 = vmatpush.bf16.msra.mxu0 %v410
  %889 = vmatpush.bf16.msra.mxu0 %v409
  %890 = vmatpush.bf16.msra.mxu0 %v408
  %891 = vmatpush.bf16.msra.mxu0 %v407
  %892 = vmatpush.bf16.msra.mxu0 %v406
  %893 = vmatpush.bf16.msra.mxu0 %v405
  %894 = vmatpush.bf16.msra.mxu0 %v404
  %895 = vmatmul.bf16.gmra.mxu0 %v883
  %v896 = vpop.f32.mrf.mxu0
  %v897 = vadd.f32 0.0, %v896
  %v898 = vpop.f32.mrf.mxu0
  %v899 = vadd.f32 0.0, %v898
  %900 = vmatmul.bf16.gmra.mxu0 %v884
  %v901 = vpop.f32.mrf.mxu0
  %v902 = vadd.f32 0.0, %v901
  %v903 = vpop.f32.mrf.mxu0
  %904 = vdwg.mxu0
  %v905 = vpack.c.bf16 %v899, %v897
  %v906 = vpack.c.bf16 %v902, %v902
  %s907 = scalar_lea.vmem %s4, 96
  %v908 = vld [vmem:[%s907] sm:$0xf]
  %v909 = vld [vmem:[%s907 + $0x4] sm:$0xf]
  %v910 = vld [vmem:[%s907 + $0x8] sm:$0xf]
  %v911 = vld [vmem:[%s907 + $0xc] sm:$0xf]
  %v916 = vunpack.c.l.b16 %v908
  %v917 = vunpack.c.l.b16 %v909
  %v918 = vunpack.c.l.b16 %v910
  %v919 = vunpack.c.l.b16 %v911
  %v920 = vpack.c.b16 %v917, %v916
  %v921 = vpack.c.b16 %v919, %v918
  %v925 = vsel %vm500, %v905, 0
  %v928 = vsel %vm500, %v906, 0
  %930 = vmatpush.bf16.msra.mxu0 0
  %931 = vmatpush.bf16.msra.mxu0 0
  %932 = vmatpush.bf16.msra.mxu0 0
  %933 = vmatpush.bf16.msra.mxu0 0
  %934 = vmatpush.bf16.msra.mxu0 0
  %935 = vmatpush.bf16.msra.mxu0 0
  %936 = vmatpush.bf16.msra.mxu0 %v921
  %937 = vmatpush.bf16.msra.mxu0 %v920
  %938 = vmatmul.bf16.gmra.mxu0 %v925
  %v939 = vpop.f32.mrf.mxu0
  %v940 = vadd.f32 0.0, %v939
  %v941 = vpop.f32.mrf.mxu0
  %v942 = vadd.f32 0.0, %v941
  %943 = vmatmul.bf16.gmra.mxu0 %v928
  %v944 = vpop.f32.mrf.mxu0
  %v945 = vadd.f32 0.0, %v944
  %v946 = vpop.f32.mrf.mxu0
  %947 = vdwg.mxu0
  %v948 = vadd.f32 %v870, %v940
  %v949 = vadd.f32 %v871, %v942
  %v950 = vadd.f32 %v872, %v945
  %s951 = scalar_lea.vmem %s3, 84
  %v952 = vld [vmem:[%s951] sm:$0xf]
  %v953 = vld [vmem:[%s951 + $0x4] sm:$0xf]
  %v954 = vld [vmem:[%s951 + $0x8] sm:$0x1]
  %v958 = vunpack.c.l.b16 %v952
  %v959 = vunpack.c.l.b16 %v953
  %v960 = vunpack.c.l.b16 %v954
  %v961 = vpack.c.b16 %v959, %v958
  %v962 = vpack.c.b16 %v960, %v960
  %965 = vmatpush.bf16.msra.mxu0 %v411
  %966 = vmatpush.bf16.msra.mxu0 %v410
  %967 = vmatpush.bf16.msra.mxu0 %v409
  %968 = vmatpush.bf16.msra.mxu0 %v408
  %969 = vmatpush.bf16.msra.mxu0 %v407
  %970 = vmatpush.bf16.msra.mxu0 %v406
  %971 = vmatpush.bf16.msra.mxu0 %v405
  %972 = vmatpush.bf16.msra.mxu0 %v404
  %973 = vmatmul.bf16.gmra.mxu0 %v961
  %v974 = vpop.f32.mrf.mxu0
  %v975 = vadd.f32 0.0, %v974
  %v976 = vpop.f32.mrf.mxu0
  %v977 = vadd.f32 0.0, %v976
  %978 = vmatmul.bf16.gmra.mxu0 %v962
  %v979 = vpop.f32.mrf.mxu0
  %v980 = vadd.f32 0.0, %v979
  %v981 = vpop.f32.mrf.mxu0
  %982 = vdwg.mxu0
  %v983 = vpack.c.bf16 %v977, %v975
  %v984 = vpack.c.bf16 %v980, %v980
  %s985 = scalar_lea.vmem %s4, 112
  %v986 = vld [vmem:[%s985] sm:$0xf]
  %v987 = vld [vmem:[%s985 + $0x4] sm:$0xf]
  %v988 = vld [vmem:[%s985 + $0x8] sm:$0xf]
  %v989 = vld [vmem:[%s985 + $0xc] sm:$0xf]
  %v994 = vunpack.c.l.b16 %v986
  %v995 = vunpack.c.l.b16 %v987
  %v996 = vunpack.c.l.b16 %v988
  %v997 = vunpack.c.l.b16 %v989
  %v998 = vpack.c.b16 %v995, %v994
  %v999 = vpack.c.b16 %v997, %v996
  %v1003 = vsel %vm500, %v983, 0
  %v1006 = vsel %vm500, %v984, 0
  %1008 = vmatpush.bf16.msra.mxu0 0
  %1009 = vmatpush.bf16.msra.mxu0 0
  %1010 = vmatpush.bf16.msra.mxu0 0
  %1011 = vmatpush.bf16.msra.mxu0 0
  %1012 = vmatpush.bf16.msra.mxu0 0
  %1013 = vmatpush.bf16.msra.mxu0 0
  %1014 = vmatpush.bf16.msra.mxu0 %v999
  %1015 = vmatpush.bf16.msra.mxu0 %v998
  %1016 = vmatmul.bf16.gmra.mxu0 %v1003
  %v1017 = vpop.f32.mrf.mxu0
  %v1018 = vadd.f32 0.0, %v1017
  %v1019 = vpop.f32.mrf.mxu0
  %v1020 = vadd.f32 0.0, %v1019
  %1021 = vmatmul.bf16.gmra.mxu0 %v1006
  %v1022 = vpop.f32.mrf.mxu0
  %v1023 = vadd.f32 0.0, %v1022
  %v1024 = vpop.f32.mrf.mxu0
  %1025 = vdwg.mxu0
  %v1026 = vadd.f32 %v948, %v1018
  %v1027 = vadd.f32 %v949, %v1020
  %v1028 = vadd.f32 %v950, %v1023
  %s1029 = scalar_lea.vmem %s3, 96
  %v1030 = vld [vmem:[%s1029] sm:$0xf]
  %v1031 = vld [vmem:[%s1029 + $0x4] sm:$0xf]
  %v1032 = vld [vmem:[%s1029 + $0x8] sm:$0x1]
  %v1036 = vunpack.c.l.b16 %v1030
  %v1037 = vunpack.c.l.b16 %v1031
  %v1038 = vunpack.c.l.b16 %v1032
  %v1039 = vpack.c.b16 %v1037, %v1036
  %v1040 = vpack.c.b16 %v1038, %v1038
  %1043 = vmatpush.bf16.msra.mxu0 %v411
  %1044 = vmatpush.bf16.msra.mxu0 %v410
  %1045 = vmatpush.bf16.msra.mxu0 %v409
  %1046 = vmatpush.bf16.msra.mxu0 %v408
  %1047 = vmatpush.bf16.msra.mxu0 %v407
  %1048 = vmatpush.bf16.msra.mxu0 %v406
  %1049 = vmatpush.bf16.msra.mxu0 %v405
  %1050 = vmatpush.bf16.msra.mxu0 %v404
  %1051 = vmatmul.bf16.gmra.mxu0 %v1039
  %v1052 = vpop.f32.mrf.mxu0
  %v1053 = vadd.f32 0.0, %v1052
  %v1054 = vpop.f32.mrf.mxu0
  %v1055 = vadd.f32 0.0, %v1054
  %1056 = vmatmul.bf16.gmra.mxu0 %v1040
  %v1057 = vpop.f32.mrf.mxu0
  %v1058 = vadd.f32 0.0, %v1057
  %v1059 = vpop.f32.mrf.mxu0
  %1060 = vdwg.mxu0
  %v1061 = vpack.c.bf16 %v1055, %v1053
  %v1062 = vpack.c.bf16 %v1058, %v1058
  %s1063 = scalar_lea.vmem %s4, 128
  %v1064 = vld [vmem:[%s1063] sm:$0xf]
  %v1065 = vld [vmem:[%s1063 + $0x4] sm:$0xf]
  %v1066 = vld [vmem:[%s1063 + $0x8] sm:$0xf]
  %v1067 = vld [vmem:[%s1063 + $0xc] sm:$0xf]
  %v1072 = vunpack.c.l.b16 %v1064
  %v1073 = vunpack.c.l.b16 %v1065
  %v1074 = vunpack.c.l.b16 %v1066
  %v1075 = vunpack.c.l.b16 %v1067
  %v1076 = vpack.c.b16 %v1073, %v1072
  %v1077 = vpack.c.b16 %v1075, %v1074
  %v1081 = vsel %vm500, %v1061, 0
  %v1084 = vsel %vm500, %v1062, 0
  %1086 = vmatpush.bf16.msra.mxu0 0
  %1087 = vmatpush.bf16.msra.mxu0 0
  %1088 = vmatpush.bf16.msra.mxu0 0
  %1089 = vmatpush.bf16.msra.mxu0 0
  %1090 = vmatpush.bf16.msra.mxu0 0
  %1091 = vmatpush.bf16.msra.mxu0 0
  %1092 = vmatpush.bf16.msra.mxu0 %v1077
  %1093 = vmatpush.bf16.msra.mxu0 %v1076
  %1094 = vmatmul.bf16.gmra.mxu0 %v1081
  %v1095 = vpop.f32.mrf.mxu0
  %v1096 = vadd.f32 0.0, %v1095
  %v1097 = vpop.f32.mrf.mxu0
  %v1098 = vadd.f32 0.0, %v1097
  %1099 = vmatmul.bf16.gmra.mxu0 %v1084
  %v1100 = vpop.f32.mrf.mxu0
  %v1101 = vadd.f32 0.0, %v1100
  %v1102 = vpop.f32.mrf.mxu0
  %1103 = vdwg.mxu0
  %v1104 = vadd.f32 %v1026, %v1096
  %v1105 = vadd.f32 %v1027, %v1098
  %v1106 = vadd.f32 %v1028, %v1101
  %s1107 = scalar_lea.vmem %s3, 108
  %v1108 = vld [vmem:[%s1107] sm:$0xf]
  %v1109 = vld [vmem:[%s1107 + $0x4] sm:$0xf]
  %v1110 = vld [vmem:[%s1107 + $0x8] sm:$0x1]
  %v1114 = vunpack.c.l.b16 %v1108
  %v1115 = vunpack.c.l.b16 %v1109
  %v1116 = vunpack.c.l.b16 %v1110
  %v1117 = vpack.c.b16 %v1115, %v1114
  %v1118 = vpack.c.b16 %v1116, %v1116
  %1121 = vmatpush.bf16.msra.mxu0 %v411
  %1122 = vmatpush.bf16.msra.mxu0 %v410
  %1123 = vmatpush.bf16.msra.mxu0 %v409
  %1124 = vmatpush.bf16.msra.mxu0 %v408
  %1125 = vmatpush.bf16.msra.mxu0 %v407
  %1126 = vmatpush.bf16.msra.mxu0 %v406
  %1127 = vmatpush.bf16.msra.mxu0 %v405
  %1128 = vmatpush.bf16.msra.mxu0 %v404
  %1129 = vmatmul.bf16.gmra.mxu0 %v1117
  %v1130 = vpop.f32.mrf.mxu0
  %v1131 = vadd.f32 0.0, %v1130
  %v1132 = vpop.f32.mrf.mxu0
  %v1133 = vadd.f32 0.0, %v1132
  %1134 = vmatmul.bf16.gmra.mxu0 %v1118
  %v1135 = vpop.f32.mrf.mxu0
  %v1136 = vadd.f32 0.0, %v1135
  %v1137 = vpop.f32.mrf.mxu0
  %1138 = vdwg.mxu0
  %v1139 = vpack.c.bf16 %v1133, %v1131
  %v1140 = vpack.c.bf16 %v1136, %v1136
  %s1141 = scalar_lea.vmem %s4, 144
  %v1142 = vld [vmem:[%s1141] sm:$0xf]
  %v1143 = vld [vmem:[%s1141 + $0x4] sm:$0xf]
  %v1144 = vld [vmem:[%s1141 + $0x8] sm:$0xf]
  %v1145 = vld [vmem:[%s1141 + $0xc] sm:$0xf]
  %v1150 = vunpack.c.l.b16 %v1142
  %v1151 = vunpack.c.l.b16 %v1143
  %v1152 = vunpack.c.l.b16 %v1144
  %v1153 = vunpack.c.l.b16 %v1145
  %v1154 = vpack.c.b16 %v1151, %v1150
  %v1155 = vpack.c.b16 %v1153, %v1152
  %v1159 = vsel %vm500, %v1139, 0
  %v1162 = vsel %vm500, %v1140, 0
  %1164 = vmatpush.bf16.msra.mxu0 0
  %1165 = vmatpush.bf16.msra.mxu0 0
  %1166 = vmatpush.bf16.msra.mxu0 0
  %1167 = vmatpush.bf16.msra.mxu0 0
  %1168 = vmatpush.bf16.msra.mxu0 0
  %1169 = vmatpush.bf16.msra.mxu0 0
  %1170 = vmatpush.bf16.msra.mxu0 %v1155
  %1171 = vmatpush.bf16.msra.mxu0 %v1154
  %1172 = vmatmul.bf16.gmra.mxu0 %v1159
  %v1173 = vpop.f32.mrf.mxu0
  %v1174 = vadd.f32 0.0, %v1173
  %v1175 = vpop.f32.mrf.mxu0
  %v1176 = vadd.f32 0.0, %v1175
  %1177 = vmatmul.bf16.gmra.mxu0 %v1162
  %v1178 = vpop.f32.mrf.mxu0
  %v1179 = vadd.f32 0.0, %v1178
  %v1180 = vpop.f32.mrf.mxu0
  %1181 = vdwg.mxu0
  %v1182 = vadd.f32 %v1104, %v1174
  %v1183 = vadd.f32 %v1105, %v1176
  %v1184 = vadd.f32 %v1106, %v1179
  %s1185 = scalar_lea.vmem %s3, 120
  %v1186 = vld [vmem:[%s1185] sm:$0xf]
  %v1187 = vld [vmem:[%s1185 + $0x4] sm:$0xf]
  %v1188 = vld [vmem:[%s1185 + $0x8] sm:$0x1]
  %v1192 = vunpack.c.l.b16 %v1186
  %v1193 = vunpack.c.l.b16 %v1187
  %v1194 = vunpack.c.l.b16 %v1188
  %v1195 = vpack.c.b16 %v1193, %v1192
  %v1196 = vpack.c.b16 %v1194, %v1194
  %1199 = vmatpush.bf16.msra.mxu0 %v411
  %1200 = vmatpush.bf16.msra.mxu0 %v410
  %1201 = vmatpush.bf16.msra.mxu0 %v409
  %1202 = vmatpush.bf16.msra.mxu0 %v408
  %1203 = vmatpush.bf16.msra.mxu0 %v407
  %1204 = vmatpush.bf16.msra.mxu0 %v406
  %1205 = vmatpush.bf16.msra.mxu0 %v405
  %1206 = vmatpush.bf16.msra.mxu0 %v404
  %1207 = vmatmul.bf16.gmra.mxu0 %v1195
  %v1208 = vpop.f32.mrf.mxu0
  %v1209 = vadd.f32 0.0, %v1208
  %v1210 = vpop.f32.mrf.mxu0
  %v1211 = vadd.f32 0.0, %v1210
  %1212 = vmatmul.bf16.gmra.mxu0 %v1196
  %v1213 = vpop.f32.mrf.mxu0
  %v1214 = vadd.f32 0.0, %v1213
  %v1215 = vpop.f32.mrf.mxu0
  %1216 = vdwg.mxu0
  %v1217 = vpack.c.bf16 %v1211, %v1209
  %v1218 = vpack.c.bf16 %v1214, %v1214
  %s1219 = scalar_lea.vmem %s4, 160
  %v1220 = vld [vmem:[%s1219] sm:$0xf]
  %v1221 = vld [vmem:[%s1219 + $0x4] sm:$0xf]
  %v1222 = vld [vmem:[%s1219 + $0x8] sm:$0xf]
  %v1223 = vld [vmem:[%s1219 + $0xc] sm:$0xf]
  %v1228 = vunpack.c.l.b16 %v1220
  %v1229 = vunpack.c.l.b16 %v1221
  %v1230 = vunpack.c.l.b16 %v1222
  %v1231 = vunpack.c.l.b16 %v1223
  %v1232 = vpack.c.b16 %v1229, %v1228
  %v1233 = vpack.c.b16 %v1231, %v1230
  %v1237 = vsel %vm500, %v1217, 0
  %v1240 = vsel %vm500, %v1218, 0
  %1242 = vmatpush.bf16.msra.mxu0 0
  %1243 = vmatpush.bf16.msra.mxu0 0
  %1244 = vmatpush.bf16.msra.mxu0 0
  %1245 = vmatpush.bf16.msra.mxu0 0
  %1246 = vmatpush.bf16.msra.mxu0 0
  %1247 = vmatpush.bf16.msra.mxu0 0
  %1248 = vmatpush.bf16.msra.mxu0 %v1233
  %1249 = vmatpush.bf16.msra.mxu0 %v1232
  %1250 = vmatmul.bf16.gmra.mxu0 %v1237
  %v1251 = vpop.f32.mrf.mxu0
  %v1252 = vadd.f32 0.0, %v1251
  %v1253 = vpop.f32.mrf.mxu0
  %v1254 = vadd.f32 0.0, %v1253
  %1255 = vmatmul.bf16.gmra.mxu0 %v1240
  %v1256 = vpop.f32.mrf.mxu0
  %v1257 = vadd.f32 0.0, %v1256
  %v1258 = vpop.f32.mrf.mxu0
  %1259 = vdwg.mxu0
  %v1260 = vadd.f32 %v1182, %v1252
  %v1261 = vadd.f32 %v1183, %v1254
  %v1262 = vadd.f32 %v1184, %v1257
  %s1263 = scalar_lea.vmem %s3, 132
  %v1264 = vld [vmem:[%s1263] sm:$0xf]
  %v1265 = vld [vmem:[%s1263 + $0x4] sm:$0xf]
  %v1266 = vld [vmem:[%s1263 + $0x8] sm:$0x1]
  %v1270 = vunpack.c.l.b16 %v1264
  %v1271 = vunpack.c.l.b16 %v1265
  %v1272 = vunpack.c.l.b16 %v1266
  %v1273 = vpack.c.b16 %v1271, %v1270
  %v1274 = vpack.c.b16 %v1272, %v1272
  %1277 = vmatpush.bf16.msra.mxu0 %v411
  %1278 = vmatpush.bf16.msra.mxu0 %v410
  %1279 = vmatpush.bf16.msra.mxu0 %v409
  %1280 = vmatpush.bf16.msra.mxu0 %v408
  %1281 = vmatpush.bf16.msra.mxu0 %v407
  %1282 = vmatpush.bf16.msra.mxu0 %v406
  %1283 = vmatpush.bf16.msra.mxu0 %v405
  %1284 = vmatpush.bf16.msra.mxu0 %v404
  %1285 = vmatmul.bf16.gmra.mxu0 %v1273
  %v1286 = vpop.f32.mrf.mxu0
  %v1287 = vadd.f32 0.0, %v1286
  %v1288 = vpop.f32.mrf.mxu0
  %v1289 = vadd.f32 0.0, %v1288
  %1290 = vmatmul.bf16.gmra.mxu0 %v1274
  %v1291 = vpop.f32.mrf.mxu0
  %v1292 = vadd.f32 0.0, %v1291
  %v1293 = vpop.f32.mrf.mxu0
  %1294 = vdwg.mxu0
  %v1295 = vpack.c.bf16 %v1289, %v1287
  %v1296 = vpack.c.bf16 %v1292, %v1292
  %s1297 = scalar_lea.vmem %s4, 176
  %v1298 = vld [vmem:[%s1297] sm:$0xf]
  %v1299 = vld [vmem:[%s1297 + $0x4] sm:$0xf]
  %v1300 = vld [vmem:[%s1297 + $0x8] sm:$0xf]
  %v1301 = vld [vmem:[%s1297 + $0xc] sm:$0xf]
  %v1306 = vunpack.c.l.b16 %v1298
  %v1307 = vunpack.c.l.b16 %v1299
  %v1308 = vunpack.c.l.b16 %v1300
  %v1309 = vunpack.c.l.b16 %v1301
  %v1310 = vpack.c.b16 %v1307, %v1306
  %v1311 = vpack.c.b16 %v1309, %v1308
  %v1315 = vsel %vm500, %v1295, 0
  %v1318 = vsel %vm500, %v1296, 0
  %1320 = vmatpush.bf16.msra.mxu0 0
  %1321 = vmatpush.bf16.msra.mxu0 0
  %1322 = vmatpush.bf16.msra.mxu0 0
  %1323 = vmatpush.bf16.msra.mxu0 0
  %1324 = vmatpush.bf16.msra.mxu0 0
  %1325 = vmatpush.bf16.msra.mxu0 0
  %1326 = vmatpush.bf16.msra.mxu0 %v1311
  %1327 = vmatpush.bf16.msra.mxu0 %v1310
  %1328 = vmatmul.bf16.gmra.mxu0 %v1315
  %v1329 = vpop.f32.mrf.mxu0
  %v1330 = vadd.f32 0.0, %v1329
  %v1331 = vpop.f32.mrf.mxu0
  %v1332 = vadd.f32 0.0, %v1331
  %1333 = vmatmul.bf16.gmra.mxu0 %v1318
  %v1334 = vpop.f32.mrf.mxu0
  %v1335 = vadd.f32 0.0, %v1334
  %v1336 = vpop.f32.mrf.mxu0
  %1337 = vdwg.mxu0
  %v1338 = vadd.f32 %v1260, %v1330
  %v1339 = vadd.f32 %v1261, %v1332
  %v1340 = vadd.f32 %v1262, %v1335
  %s1341 = scalar_lea.vmem %s3, 144
  %v1342 = vld [vmem:[%s1341] sm:$0xf]
  %v1343 = vld [vmem:[%s1341 + $0x4] sm:$0xf]
  %v1344 = vld [vmem:[%s1341 + $0x8] sm:$0x1]
  %v1348 = vunpack.c.l.b16 %v1342
  %v1349 = vunpack.c.l.b16 %v1343
  %v1350 = vunpack.c.l.b16 %v1344
  %v1351 = vpack.c.b16 %v1349, %v1348
  %v1352 = vpack.c.b16 %v1350, %v1350
  %1355 = vmatpush.bf16.msra.mxu0 %v411
  %1356 = vmatpush.bf16.msra.mxu0 %v410
  %1357 = vmatpush.bf16.msra.mxu0 %v409
  %1358 = vmatpush.bf16.msra.mxu0 %v408
  %1359 = vmatpush.bf16.msra.mxu0 %v407
  %1360 = vmatpush.bf16.msra.mxu0 %v406
  %1361 = vmatpush.bf16.msra.mxu0 %v405
  %1362 = vmatpush.bf16.msra.mxu0 %v404
  %1363 = vmatmul.bf16.gmra.mxu0 %v1351
  %v1364 = vpop.f32.mrf.mxu0
  %v1365 = vadd.f32 0.0, %v1364
  %v1366 = vpop.f32.mrf.mxu0
  %v1367 = vadd.f32 0.0, %v1366
  %1368 = vmatmul.bf16.gmra.mxu0 %v1352
  %v1369 = vpop.f32.mrf.mxu0
  %v1370 = vadd.f32 0.0, %v1369
  %v1371 = vpop.f32.mrf.mxu0
  %1372 = vdwg.mxu0
  %v1373 = vpack.c.bf16 %v1367, %v1365
  %v1374 = vpack.c.bf16 %v1370, %v1370
  %s1375 = scalar_lea.vmem %s4, 192
  %v1376 = vld [vmem:[%s1375] sm:$0xf]
  %v1377 = vld [vmem:[%s1375 + $0x4] sm:$0xf]
  %v1378 = vld [vmem:[%s1375 + $0x8] sm:$0xf]
  %v1379 = vld [vmem:[%s1375 + $0xc] sm:$0xf]
  %v1384 = vunpack.c.l.b16 %v1376
  %v1385 = vunpack.c.l.b16 %v1377
  %v1386 = vunpack.c.l.b16 %v1378
  %v1387 = vunpack.c.l.b16 %v1379
  %v1388 = vpack.c.b16 %v1385, %v1384
  %v1389 = vpack.c.b16 %v1387, %v1386
  %v1393 = vsel %vm500, %v1373, 0
  %v1396 = vsel %vm500, %v1374, 0
  %1398 = vmatpush.bf16.msra.mxu0 0
  %1399 = vmatpush.bf16.msra.mxu0 0
  %1400 = vmatpush.bf16.msra.mxu0 0
  %1401 = vmatpush.bf16.msra.mxu0 0
  %1402 = vmatpush.bf16.msra.mxu0 0
  %1403 = vmatpush.bf16.msra.mxu0 0
  %1404 = vmatpush.bf16.msra.mxu0 %v1389
  %1405 = vmatpush.bf16.msra.mxu0 %v1388
  %1406 = vmatmul.bf16.gmra.mxu0 %v1393
  %v1407 = vpop.f32.mrf.mxu0
  %v1408 = vadd.f32 0.0, %v1407
  %v1409 = vpop.f32.mrf.mxu0
  %v1410 = vadd.f32 0.0, %v1409
  %1411 = vmatmul.bf16.gmra.mxu0 %v1396
  %v1412 = vpop.f32.mrf.mxu0
  %v1413 = vadd.f32 0.0, %v1412
  %v1414 = vpop.f32.mrf.mxu0
  %1415 = vdwg.mxu0
  %v1416 = vadd.f32 %v1338, %v1408
  %v1417 = vadd.f32 %v1339, %v1410
  %v1418 = vadd.f32 %v1340, %v1413
  %s1419 = scalar_lea.vmem %s3, 156
  %v1420 = vld [vmem:[%s1419] sm:$0xf]
  %v1421 = vld [vmem:[%s1419 + $0x4] sm:$0xf]
  %v1422 = vld [vmem:[%s1419 + $0x8] sm:$0x1]
  %v1426 = vunpack.c.l.b16 %v1420
  %v1427 = vunpack.c.l.b16 %v1421
  %v1428 = vunpack.c.l.b16 %v1422
  %v1429 = vpack.c.b16 %v1427, %v1426
  %v1430 = vpack.c.b16 %v1428, %v1428
  %1433 = vmatpush.bf16.msra.mxu0 %v411
  %1434 = vmatpush.bf16.msra.mxu0 %v410
  %1435 = vmatpush.bf16.msra.mxu0 %v409
  %1436 = vmatpush.bf16.msra.mxu0 %v408
  %1437 = vmatpush.bf16.msra.mxu0 %v407
  %1438 = vmatpush.bf16.msra.mxu0 %v406
  %1439 = vmatpush.bf16.msra.mxu0 %v405
  %1440 = vmatpush.bf16.msra.mxu0 %v404
  %1441 = vmatmul.bf16.gmra.mxu0 %v1429
  %v1442 = vpop.f32.mrf.mxu0
  %v1443 = vadd.f32 0.0, %v1442
  %v1444 = vpop.f32.mrf.mxu0
  %v1445 = vadd.f32 0.0, %v1444
  %1446 = vmatmul.bf16.gmra.mxu0 %v1430
  %v1447 = vpop.f32.mrf.mxu0
  %v1448 = vadd.f32 0.0, %v1447
  %v1449 = vpop.f32.mrf.mxu0
  %1450 = vdwg.mxu0
  %v1451 = vpack.c.bf16 %v1445, %v1443
  %v1452 = vpack.c.bf16 %v1448, %v1448
  %s1453 = scalar_lea.vmem %s4, 208
  %v1454 = vld [vmem:[%s1453] sm:$0xf]
  %v1455 = vld [vmem:[%s1453 + $0x4] sm:$0xf]
  %v1456 = vld [vmem:[%s1453 + $0x8] sm:$0xf]
  %v1457 = vld [vmem:[%s1453 + $0xc] sm:$0xf]
  %v1462 = vunpack.c.l.b16 %v1454
  %v1463 = vunpack.c.l.b16 %v1455
  %v1464 = vunpack.c.l.b16 %v1456
  %v1465 = vunpack.c.l.b16 %v1457
  %v1466 = vpack.c.b16 %v1463, %v1462
  %v1467 = vpack.c.b16 %v1465, %v1464
  %v1471 = vsel %vm500, %v1451, 0
  %v1474 = vsel %vm500, %v1452, 0
  %1476 = vmatpush.bf16.msra.mxu0 0
  %1477 = vmatpush.bf16.msra.mxu0 0
  %1478 = vmatpush.bf16.msra.mxu0 0
  %1479 = vmatpush.bf16.msra.mxu0 0
  %1480 = vmatpush.bf16.msra.mxu0 0
  %1481 = vmatpush.bf16.msra.mxu0 0
  %1482 = vmatpush.bf16.msra.mxu0 %v1467
  %1483 = vmatpush.bf16.msra.mxu0 %v1466
  %1484 = vmatmul.bf16.gmra.mxu0 %v1471
  %v1485 = vpop.f32.mrf.mxu0
  %v1486 = vadd.f32 0.0, %v1485
  %v1487 = vpop.f32.mrf.mxu0
  %v1488 = vadd.f32 0.0, %v1487
  %1489 = vmatmul.bf16.gmra.mxu0 %v1474
  %v1490 = vpop.f32.mrf.mxu0
  %v1491 = vadd.f32 0.0, %v1490
  %v1492 = vpop.f32.mrf.mxu0
  %1493 = vdwg.mxu0
  %v1494 = vadd.f32 %v1416, %v1486
  %v1495 = vadd.f32 %v1417, %v1488
  %v1496 = vadd.f32 %v1418, %v1491
  %s1497 = scalar_lea.vmem %s3, 168
  %v1498 = vld [vmem:[%s1497] sm:$0xf]
  %v1499 = vld [vmem:[%s1497 + $0x4] sm:$0xf]
  %v1500 = vld [vmem:[%s1497 + $0x8] sm:$0x1]
  %v1504 = vunpack.c.l.b16 %v1498
  %v1505 = vunpack.c.l.b16 %v1499
  %v1506 = vunpack.c.l.b16 %v1500
  %v1507 = vpack.c.b16 %v1505, %v1504
  %v1508 = vpack.c.b16 %v1506, %v1506
  %1511 = vmatpush.bf16.msra.mxu0 %v411
  %1512 = vmatpush.bf16.msra.mxu0 %v410
  %1513 = vmatpush.bf16.msra.mxu0 %v409
  %1514 = vmatpush.bf16.msra.mxu0 %v408
  %1515 = vmatpush.bf16.msra.mxu0 %v407
  %1516 = vmatpush.bf16.msra.mxu0 %v406
  %1517 = vmatpush.bf16.msra.mxu0 %v405
  %1518 = vmatpush.bf16.msra.mxu0 %v404
  %1519 = vmatmul.bf16.gmra.mxu0 %v1507
  %v1520 = vpop.f32.mrf.mxu0
  %v1521 = vadd.f32 0.0, %v1520
  %v1522 = vpop.f32.mrf.mxu0
  %v1523 = vadd.f32 0.0, %v1522
  %1524 = vmatmul.bf16.gmra.mxu0 %v1508
  %v1525 = vpop.f32.mrf.mxu0
  %v1526 = vadd.f32 0.0, %v1525
  %v1527 = vpop.f32.mrf.mxu0
  %1528 = vdwg.mxu0
  %v1529 = vpack.c.bf16 %v1523, %v1521
  %v1530 = vpack.c.bf16 %v1526, %v1526
  %s1531 = scalar_lea.vmem %s4, 224
  %v1532 = vld [vmem:[%s1531] sm:$0xf]
  %v1533 = vld [vmem:[%s1531 + $0x4] sm:$0xf]
  %v1534 = vld [vmem:[%s1531 + $0x8] sm:$0xf]
  %v1535 = vld [vmem:[%s1531 + $0xc] sm:$0xf]
  %v1540 = vunpack.c.l.b16 %v1532
  %v1541 = vunpack.c.l.b16 %v1533
  %v1542 = vunpack.c.l.b16 %v1534
  %v1543 = vunpack.c.l.b16 %v1535
  %v1544 = vpack.c.b16 %v1541, %v1540
  %v1545 = vpack.c.b16 %v1543, %v1542
  %v1549 = vsel %vm500, %v1529, 0
  %v1552 = vsel %vm500, %v1530, 0
  %1554 = vmatpush.bf16.msra.mxu0 0
  %1555 = vmatpush.bf16.msra.mxu0 0
  %1556 = vmatpush.bf16.msra.mxu0 0
  %1557 = vmatpush.bf16.msra.mxu0 0
  %1558 = vmatpush.bf16.msra.mxu0 0
  %1559 = vmatpush.bf16.msra.mxu0 0
  %1560 = vmatpush.bf16.msra.mxu0 %v1545
  %1561 = vmatpush.bf16.msra.mxu0 %v1544
  %1562 = vmatmul.bf16.gmra.mxu0 %v1549
  %v1563 = vpop.f32.mrf.mxu0
  %v1564 = vadd.f32 0.0, %v1563
  %v1565 = vpop.f32.mrf.mxu0
  %v1566 = vadd.f32 0.0, %v1565
  %1567 = vmatmul.bf16.gmra.mxu0 %v1552
  %v1568 = vpop.f32.mrf.mxu0
  %v1569 = vadd.f32 0.0, %v1568
  %v1570 = vpop.f32.mrf.mxu0
  %1571 = vdwg.mxu0
  %v1572 = vadd.f32 %v1494, %v1564
  %v1573 = vadd.f32 %v1495, %v1566
  %v1574 = vadd.f32 %v1496, %v1569
  %s1575 = scalar_lea.vmem %s3, 180
  %v1576 = vld [vmem:[%s1575] sm:$0xf]
  %v1577 = vld [vmem:[%s1575 + $0x4] sm:$0xf]
  %v1578 = vld [vmem:[%s1575 + $0x8] sm:$0x1]
  %v1582 = vunpack.c.l.b16 %v1576
  %v1583 = vunpack.c.l.b16 %v1577
  %v1584 = vunpack.c.l.b16 %v1578
  %v1585 = vpack.c.b16 %v1583, %v1582
  %v1586 = vpack.c.b16 %v1584, %v1584
  %1589 = vmatpush.bf16.msra.mxu0 %v411
  %1590 = vmatpush.bf16.msra.mxu0 %v410
  %1591 = vmatpush.bf16.msra.mxu0 %v409
  %1592 = vmatpush.bf16.msra.mxu0 %v408
  %1593 = vmatpush.bf16.msra.mxu0 %v407
  %1594 = vmatpush.bf16.msra.mxu0 %v406
  %1595 = vmatpush.bf16.msra.mxu0 %v405
  %1596 = vmatpush.bf16.msra.mxu0 %v404
  %1597 = vmatmul.bf16.gmra.mxu0 %v1585
  %v1598 = vpop.f32.mrf.mxu0
  %v1599 = vadd.f32 0.0, %v1598
  %v1600 = vpop.f32.mrf.mxu0
  %v1601 = vadd.f32 0.0, %v1600
  %1602 = vmatmul.bf16.gmra.mxu0 %v1586
  %v1603 = vpop.f32.mrf.mxu0
  %v1604 = vadd.f32 0.0, %v1603
  %v1605 = vpop.f32.mrf.mxu0
  %1606 = vdwg.mxu0
  %v1607 = vpack.c.bf16 %v1601, %v1599
  %v1608 = vpack.c.bf16 %v1604, %v1604
  %s1609 = scalar_lea.vmem %s4, 240
  %v1610 = vld [vmem:[%s1609] sm:$0xf]
  %v1611 = vld [vmem:[%s1609 + $0x4] sm:$0xf]
  %v1612 = vld [vmem:[%s1609 + $0x8] sm:$0xf]
  %v1613 = vld [vmem:[%s1609 + $0xc] sm:$0xf]
  %v1618 = vunpack.c.l.b16 %v1610
  %v1619 = vunpack.c.l.b16 %v1611
  %v1620 = vunpack.c.l.b16 %v1612
  %v1621 = vunpack.c.l.b16 %v1613
  %v1622 = vpack.c.b16 %v1619, %v1618
  %v1623 = vpack.c.b16 %v1621, %v1620
  %v1627 = vsel %vm500, %v1607, 0
  %v1630 = vsel %vm500, %v1608, 0
  %1632 = vmatpush.bf16.msra.mxu0 0
  %1633 = vmatpush.bf16.msra.mxu0 0
  %1634 = vmatpush.bf16.msra.mxu0 0
  %1635 = vmatpush.bf16.msra.mxu0 0
  %1636 = vmatpush.bf16.msra.mxu0 0
  %1637 = vmatpush.bf16.msra.mxu0 0
  %1638 = vmatpush.bf16.msra.mxu0 %v1623
  %1639 = vmatpush.bf16.msra.mxu0 %v1622
  %1640 = vmatmul.bf16.gmra.mxu0 %v1627
  %v1641 = vpop.f32.mrf.mxu0
  %v1642 = vadd.f32 0.0, %v1641
  %v1643 = vpop.f32.mrf.mxu0
  %v1644 = vadd.f32 0.0, %v1643
  %1645 = vmatmul.bf16.gmra.mxu0 %v1630
  %v1646 = vpop.f32.mrf.mxu0
  %v1647 = vadd.f32 0.0, %v1646
  %v1648 = vpop.f32.mrf.mxu0
  %1649 = vdwg.mxu0
  %v1650 = vadd.f32 %v1572, %v1642
  %v1651 = vadd.f32 %v1573, %v1644
  %v1652 = vadd.f32 %v1574, %v1647
  %v1653 = vld [vmem:[%s5] sm:$0x1]
  %v1655 = vperm.slane %v1653, 0
  %v1657 = vadd.f32 %v1650, %v1655
  %v1658 = vadd.f32 %v1651, %v1655
  %v1659 = vadd.f32 %v1652, %v1655
  %v1660 = vmax.f32 %v1657, 0.0
  %v1661 = vmax.f32 %v1658, 0.0
  %v1662 = vmax.f32 %v1659, 0.0
  %v1663 = vpack.c.bf16 %v1661, %v1660
  %v1664 = vpack.c.bf16 %v1662, %v1662
  %v1665 = vld [vmem:[%s6] sm:$0x1]
  %vm1666 = vcmask 146432
  %v1668 = vsel %vm1666, %v1665, 0
  %vm1670 = vcmask 1040384
  %v1672 = vsel %vm1670, %v1664, 0
  %1674 = vmatpush.bf16.msra.mxu0 0
  %1675 = vmatpush.bf16.msra.mxu0 0
  %1676 = vmatpush.bf16.msra.mxu0 0
  %1677 = vmatpush.bf16.msra.mxu0 0
  %1678 = vmatpush.bf16.msra.mxu0 0
  %1679 = vmatpush.bf16.msra.mxu0 0
  %1680 = vmatpush.bf16.msra.mxu0 %v1672
  %1681 = vmatpush.bf16.msra.mxu0 %v1663
  %1682 = vmatmul.bf16.gmra.mxu0 %v1668
  %v1683 = vpop.f32.mrf.mxu0
  %v1684 = vadd.f32 0.0, %v1683
  %v1685 = vpop.f32.mrf.mxu0
  %1686 = vdwg.mxu0
  %v1687 = vpack.c.bf16 %v1684, %v1684
  %v1688 = vld [vmem:[%s7] sm:$0xf]
  %v1689 = vld [vmem:[%s7 + $0x4] sm:$0xf]
  %v1690 = vld [vmem:[%s7 + $0x8] sm:$0xf]
  %v1691 = vld [vmem:[%s7 + $0xc] sm:$0xf]
  %v1692 = vld [vmem:[%s7 + $0x10] sm:$0xf]
  %v1693 = vld [vmem:[%s7 + $0x14] sm:$0xf]
  %v1694 = vld [vmem:[%s7 + $0x18] sm:$0xf]
  %v1695 = vld [vmem:[%s7 + $0x1c] sm:$0xf]
  %s1696 = scalar_lea.vmem %s6, 1
  %v1697 = vld [vmem:[%s1696] sm:$0x1]
  %v1699 = vsel %vm1666, %v1697, 0
  %1701 = vmatpush.bf16.msra.mxu0 0
  %1702 = vmatpush.bf16.msra.mxu0 0
  %1703 = vmatpush.bf16.msra.mxu0 0
  %1704 = vmatpush.bf16.msra.mxu0 0
  %1705 = vmatpush.bf16.msra.mxu0 0
  %1706 = vmatpush.bf16.msra.mxu0 0
  %1707 = vmatpush.bf16.msra.mxu0 %v1672
  %1708 = vmatpush.bf16.msra.mxu0 %v1663
  %1709 = vmatmul.bf16.gmra.mxu0 %v1699
  %v1710 = vpop.f32.mrf.mxu0
  %v1711 = vadd.f32 0.0, %v1710
  %v1712 = vpop.f32.mrf.mxu0
  %1713 = vdwg.mxu0
  %v1714 = vpack.c.bf16 %v1711, %v1711
  %s1715 = scalar_lea.vmem %s7, 32
  %v1716 = vld [vmem:[%s1715] sm:$0xf]
  %v1717 = vld [vmem:[%s1715 + $0x4] sm:$0xf]
  %v1718 = vld [vmem:[%s1715 + $0x8] sm:$0xf]
  %v1719 = vld [vmem:[%s1715 + $0xc] sm:$0xf]
  %v1720 = vld [vmem:[%s1715 + $0x10] sm:$0xf]
  %v1721 = vld [vmem:[%s1715 + $0x14] sm:$0xf]
  %v1722 = vld [vmem:[%s1715 + $0x18] sm:$0xf]
  %v1723 = vld [vmem:[%s1715 + $0x1c] sm:$0xf]
  %v1732 = vunpack.c.l.b16 %v1716
  %v1733 = vunpack.c.l.b16 %v1717
  %v1734 = vunpack.c.l.b16 %v1718
  %v1735 = vunpack.c.l.b16 %v1719
  %v1736 = vunpack.c.l.b16 %v1720
  %v1737 = vunpack.c.l.b16 %v1721
  %v1738 = vunpack.c.l.b16 %v1722
  %v1739 = vunpack.c.l.b16 %v1723
  %v1740 = vpack.c.b16 %v1733, %v1732
  %v1741 = vpack.c.b16 %v1735, %v1734
  %v1742 = vpack.c.b16 %v1737, %v1736
  %v1743 = vpack.c.b16 %v1739, %v1738
  %vm1748 = vcmask 523264
  %v1750 = vsel %vm1748, %v1714, 0
  %1752 = vmatpush.bf16.msra.mxu0 0
  %1753 = vmatpush.bf16.msra.mxu0 0
  %1754 = vmatpush.bf16.msra.mxu0 0
  %1755 = vmatpush.bf16.msra.mxu0 0
  %1756 = vmatpush.bf16.msra.mxu0 %v1743
  %1757 = vmatpush.bf16.msra.mxu0 %v1742
  %1758 = vmatpush.bf16.msra.mxu0 %v1741
  %1759 = vmatpush.bf16.msra.mxu0 %v1740
  %1760 = vmatmul.bf16.gmra.mxu0 %v1750
  %v1761 = vpop.f32.mrf.mxu0
  %v1762 = vadd.f32 0.0, %v1761
  %v1763 = vpop.f32.mrf.mxu0
  %1764 = vdwg.mxu0
  %v1773 = vunpack.c.l.b16 %v1688
  %v1774 = vunpack.c.l.b16 %v1689
  %v1775 = vunpack.c.l.b16 %v1690
  %v1776 = vunpack.c.l.b16 %v1691
  %v1777 = vunpack.c.l.b16 %v1692
  %v1778 = vunpack.c.l.b16 %v1693
  %v1779 = vunpack.c.l.b16 %v1694
  %v1780 = vunpack.c.l.b16 %v1695
  %v1781 = vpack.c.b16 %v1774, %v1773
  %v1782 = vpack.c.b16 %v1776, %v1775
  %v1783 = vpack.c.b16 %v1778, %v1777
  %v1784 = vpack.c.b16 %v1780, %v1779
  %v1790 = vsel %vm1748, %v1687, 0
  %1792 = vmatpush.bf16.msra.mxu0 0
  %1793 = vmatpush.bf16.msra.mxu0 0
  %1794 = vmatpush.bf16.msra.mxu0 0
  %1795 = vmatpush.bf16.msra.mxu0 0
  %1796 = vmatpush.bf16.msra.mxu0 %v1784
  %1797 = vmatpush.bf16.msra.mxu0 %v1783
  %1798 = vmatpush.bf16.msra.mxu0 %v1782
  %1799 = vmatpush.bf16.msra.mxu0 %v1781
  %1800 = vmatmul.bf16.gmra.mxu0 %v1790
  %v1801 = vpop.f32.mrf.mxu0
  %v1802 = vadd.f32 %v1762, %v1801
  %v1803 = vpop.f32.mrf.mxu0
  %1804 = vdwg.mxu0
  %s1805 = scalar_lea.vmem %s6, 2
  %v1806 = vld [vmem:[%s1805] sm:$0x1]
  %v1808 = vsel %vm1666, %v1806, 0
  %1810 = vmatpush.bf16.msra.mxu0 0
  %1811 = vmatpush.bf16.msra.mxu0 0
  %1812 = vmatpush.bf16.msra.mxu0 0
  %1813 = vmatpush.bf16.msra.mxu0 0
  %1814 = vmatpush.bf16.msra.mxu0 0
  %1815 = vmatpush.bf16.msra.mxu0 0
  %1816 = vmatpush.bf16.msra.mxu0 %v1672
  %1817 = vmatpush.bf16.msra.mxu0 %v1663
  %1818 = vmatmul.bf16.gmra.mxu0 %v1808
  %v1819 = vpop.f32.mrf.mxu0
  %v1820 = vadd.f32 0.0, %v1819
  %v1821 = vpop.f32.mrf.mxu0
  %1822 = vdwg.mxu0
  %v1823 = vpack.c.bf16 %v1820, %v1820
  %s1824 = scalar_lea.vmem %s7, 64
  %v1825 = vld [vmem:[%s1824] sm:$0xf]
  %v1826 = vld [vmem:[%s1824 + $0x4] sm:$0xf]
  %v1827 = vld [vmem:[%s1824 + $0x8] sm:$0xf]
  %v1828 = vld [vmem:[%s1824 + $0xc] sm:$0xf]
  %v1829 = vld [vmem:[%s1824 + $0x10] sm:$0xf]
  %v1830 = vld [vmem:[%s1824 + $0x14] sm:$0xf]
  %v1831 = vld [vmem:[%s1824 + $0x18] sm:$0xf]
  %v1832 = vld [vmem:[%s1824 + $0x1c] sm:$0xf]
  %v1841 = vunpack.c.l.b16 %v1825
  %v1842 = vunpack.c.l.b16 %v1826
  %v1843 = vunpack.c.l.b16 %v1827
  %v1844 = vunpack.c.l.b16 %v1828
  %v1845 = vunpack.c.l.b16 %v1829
  %v1846 = vunpack.c.l.b16 %v1830
  %v1847 = vunpack.c.l.b16 %v1831
  %v1848 = vunpack.c.l.b16 %v1832
  %v1849 = vpack.c.b16 %v1842, %v1841
  %v1850 = vpack.c.b16 %v1844, %v1843
  %v1851 = vpack.c.b16 %v1846, %v1845
  %v1852 = vpack.c.b16 %v1848, %v1847
  %v1858 = vsel %vm1748, %v1823, 0
  %1860 = vmatpush.bf16.msra.mxu0 0
  %1861 = vmatpush.bf16.msra.mxu0 0
  %1862 = vmatpush.bf16.msra.mxu0 0
  %1863 = vmatpush.bf16.msra.mxu0 0
  %1864 = vmatpush.bf16.msra.mxu0 %v1852
  %1865 = vmatpush.bf16.msra.mxu0 %v1851
  %1866 = vmatpush.bf16.msra.mxu0 %v1850
  %1867 = vmatpush.bf16.msra.mxu0 %v1849
  %1868 = vmatmul.bf16.gmra.mxu0 %v1858
  %v1869 = vpop.f32.mrf.mxu0
  %v1870 = vadd.f32 0.0, %v1869
  %v1871 = vpop.f32.mrf.mxu0
  %1872 = vdwg.mxu0
  %v1873 = vadd.f32 %v1802, %v1870
  %s1874 = scalar_lea.vmem %s6, 3
  %v1875 = vld [vmem:[%s1874] sm:$0x1]
  %v1877 = vsel %vm1666, %v1875, 0
  %1879 = vmatpush.bf16.msra.mxu0 0
  %1880 = vmatpush.bf16.msra.mxu0 0
  %1881 = vmatpush.bf16.msra.mxu0 0
  %1882 = vmatpush.bf16.msra.mxu0 0
  %1883 = vmatpush.bf16.msra.mxu0 0
  %1884 = vmatpush.bf16.msra.mxu0 0
  %1885 = vmatpush.bf16.msra.mxu0 %v1672
  %1886 = vmatpush.bf16.msra.mxu0 %v1663
  %1887 = vmatmul.bf16.gmra.mxu0 %v1877
  %v1888 = vpop.f32.mrf.mxu0
  %v1889 = vadd.f32 0.0, %v1888
  %v1890 = vpop.f32.mrf.mxu0
  %1891 = vdwg.mxu0
  %v1892 = vpack.c.bf16 %v1889, %v1889
  %s1893 = scalar_lea.vmem %s7, 96
  %v1894 = vld [vmem:[%s1893] sm:$0xf]
  %v1895 = vld [vmem:[%s1893 + $0x4] sm:$0xf]
  %v1896 = vld [vmem:[%s1893 + $0x8] sm:$0xf]
  %v1897 = vld [vmem:[%s1893 + $0xc] sm:$0xf]
  %v1898 = vld [vmem:[%s1893 + $0x10] sm:$0xf]
  %v1899 = vld [vmem:[%s1893 + $0x14] sm:$0xf]
  %v1900 = vld [vmem:[%s1893 + $0x18] sm:$0xf]
  %v1901 = vld [vmem:[%s1893 + $0x1c] sm:$0xf]
  %v1910 = vunpack.c.l.b16 %v1894
  %v1911 = vunpack.c.l.b16 %v1895
  %v1912 = vunpack.c.l.b16 %v1896
  %v1913 = vunpack.c.l.b16 %v1897
  %v1914 = vunpack.c.l.b16 %v1898
  %v1915 = vunpack.c.l.b16 %v1899
  %v1916 = vunpack.c.l.b16 %v1900
  %v1917 = vunpack.c.l.b16 %v1901
  %v1918 = vpack.c.b16 %v1911, %v1910
  %v1919 = vpack.c.b16 %v1913, %v1912
  %v1920 = vpack.c.b16 %v1915, %v1914
  %v1921 = vpack.c.b16 %v1917, %v1916
  %v1927 = vsel %vm1748, %v1892, 0
  %1929 = vmatpush.bf16.msra.mxu0 0
  %1930 = vmatpush.bf16.msra.mxu0 0
  %1931 = vmatpush.bf16.msra.mxu0 0
  %1932 = vmatpush.bf16.msra.mxu0 0
  %1933 = vmatpush.bf16.msra.mxu0 %v1921
  %1934 = vmatpush.bf16.msra.mxu0 %v1920
  %1935 = vmatpush.bf16.msra.mxu0 %v1919
  %1936 = vmatpush.bf16.msra.mxu0 %v1918
  %1937 = vmatmul.bf16.gmra.mxu0 %v1927
  %v1938 = vpop.f32.mrf.mxu0
  %v1939 = vadd.f32 0.0, %v1938
  %v1940 = vpop.f32.mrf.mxu0
  %1941 = vdwg.mxu0
  %v1942 = vadd.f32 %v1873, %v1939
  %s1943 = scalar_lea.vmem %s6, 4
  %v1944 = vld [vmem:[%s1943] sm:$0x1]
  %v1946 = vsel %vm1666, %v1944, 0
  %1948 = vmatpush.bf16.msra.mxu0 0
  %1949 = vmatpush.bf16.msra.mxu0 0
  %1950 = vmatpush.bf16.msra.mxu0 0
  %1951 = vmatpush.bf16.msra.mxu0 0
  %1952 = vmatpush.bf16.msra.mxu0 0
  %1953 = vmatpush.bf16.msra.mxu0 0
  %1954 = vmatpush.bf16.msra.mxu0 %v1672
  %1955 = vmatpush.bf16.msra.mxu0 %v1663
  %1956 = vmatmul.bf16.gmra.mxu0 %v1946
  %v1957 = vpop.f32.mrf.mxu0
  %v1958 = vadd.f32 0.0, %v1957
  %v1959 = vpop.f32.mrf.mxu0
  %1960 = vdwg.mxu0
  %v1961 = vpack.c.bf16 %v1958, %v1958
  %s1962 = scalar_lea.vmem %s7, 128
  %v1963 = vld [vmem:[%s1962] sm:$0xf]
  %v1964 = vld [vmem:[%s1962 + $0x4] sm:$0xf]
  %v1965 = vld [vmem:[%s1962 + $0x8] sm:$0xf]
  %v1966 = vld [vmem:[%s1962 + $0xc] sm:$0xf]
  %v1967 = vld [vmem:[%s1962 + $0x10] sm:$0xf]
  %v1968 = vld [vmem:[%s1962 + $0x14] sm:$0xf]
  %v1969 = vld [vmem:[%s1962 + $0x18] sm:$0xf]
  %v1970 = vld [vmem:[%s1962 + $0x1c] sm:$0xf]
  %v1979 = vunpack.c.l.b16 %v1963
  %v1980 = vunpack.c.l.b16 %v1964
  %v1981 = vunpack.c.l.b16 %v1965
  %v1982 = vunpack.c.l.b16 %v1966
  %v1983 = vunpack.c.l.b16 %v1967
  %v1984 = vunpack.c.l.b16 %v1968
  %v1985 = vunpack.c.l.b16 %v1969
  %v1986 = vunpack.c.l.b16 %v1970
  %v1987 = vpack.c.b16 %v1980, %v1979
  %v1988 = vpack.c.b16 %v1982, %v1981
  %v1989 = vpack.c.b16 %v1984, %v1983
  %v1990 = vpack.c.b16 %v1986, %v1985
  %v1996 = vsel %vm1748, %v1961, 0
  %1998 = vmatpush.bf16.msra.mxu0 0
  %1999 = vmatpush.bf16.msra.mxu0 0
  %2000 = vmatpush.bf16.msra.mxu0 0
  %2001 = vmatpush.bf16.msra.mxu0 0
  %2002 = vmatpush.bf16.msra.mxu0 %v1990
  %2003 = vmatpush.bf16.msra.mxu0 %v1989
  %2004 = vmatpush.bf16.msra.mxu0 %v1988
  %2005 = vmatpush.bf16.msra.mxu0 %v1987
  %2006 = vmatmul.bf16.gmra.mxu0 %v1996
  %v2007 = vpop.f32.mrf.mxu0
  %v2008 = vadd.f32 0.0, %v2007
  %v2009 = vpop.f32.mrf.mxu0
  %2010 = vdwg.mxu0
  %v2011 = vadd.f32 %v1942, %v2008
  %s2012 = scalar_lea.vmem %s6, 5
  %v2013 = vld [vmem:[%s2012] sm:$0x1]
  %v2015 = vsel %vm1666, %v2013, 0
  %2017 = vmatpush.bf16.msra.mxu0 0
  %2018 = vmatpush.bf16.msra.mxu0 0
  %2019 = vmatpush.bf16.msra.mxu0 0
  %2020 = vmatpush.bf16.msra.mxu0 0
  %2021 = vmatpush.bf16.msra.mxu0 0
  %2022 = vmatpush.bf16.msra.mxu0 0
  %2023 = vmatpush.bf16.msra.mxu0 %v1672
  %2024 = vmatpush.bf16.msra.mxu0 %v1663
  %2025 = vmatmul.bf16.gmra.mxu0 %v2015
  %v2026 = vpop.f32.mrf.mxu0
  %v2027 = vadd.f32 0.0, %v2026
  %v2028 = vpop.f32.mrf.mxu0
  %2029 = vdwg.mxu0
  %v2030 = vpack.c.bf16 %v2027, %v2027
  %s2031 = scalar_lea.vmem %s7, 160
  %v2032 = vld [vmem:[%s2031] sm:$0xf]
  %v2033 = vld [vmem:[%s2031 + $0x4] sm:$0xf]
  %v2034 = vld [vmem:[%s2031 + $0x8] sm:$0xf]
  %v2035 = vld [vmem:[%s2031 + $0xc] sm:$0xf]
  %v2036 = vld [vmem:[%s2031 + $0x10] sm:$0xf]
  %v2037 = vld [vmem:[%s2031 + $0x14] sm:$0xf]
  %v2038 = vld [vmem:[%s2031 + $0x18] sm:$0xf]
  %v2039 = vld [vmem:[%s2031 + $0x1c] sm:$0xf]
  %v2048 = vunpack.c.l.b16 %v2032
  %v2049 = vunpack.c.l.b16 %v2033
  %v2050 = vunpack.c.l.b16 %v2034
  %v2051 = vunpack.c.l.b16 %v2035
  %v2052 = vunpack.c.l.b16 %v2036
  %v2053 = vunpack.c.l.b16 %v2037
  %v2054 = vunpack.c.l.b16 %v2038
  %v2055 = vunpack.c.l.b16 %v2039
  %v2056 = vpack.c.b16 %v2049, %v2048
  %v2057 = vpack.c.b16 %v2051, %v2050
  %v2058 = vpack.c.b16 %v2053, %v2052
  %v2059 = vpack.c.b16 %v2055, %v2054
  %v2065 = vsel %vm1748, %v2030, 0
  %2067 = vmatpush.bf16.msra.mxu0 0
  %2068 = vmatpush.bf16.msra.mxu0 0
  %2069 = vmatpush.bf16.msra.mxu0 0
  %2070 = vmatpush.bf16.msra.mxu0 0
  %2071 = vmatpush.bf16.msra.mxu0 %v2059
  %2072 = vmatpush.bf16.msra.mxu0 %v2058
  %2073 = vmatpush.bf16.msra.mxu0 %v2057
  %2074 = vmatpush.bf16.msra.mxu0 %v2056
  %2075 = vmatmul.bf16.gmra.mxu0 %v2065
  %v2076 = vpop.f32.mrf.mxu0
  %v2077 = vadd.f32 0.0, %v2076
  %v2078 = vpop.f32.mrf.mxu0
  %2079 = vdwg.mxu0
  %v2080 = vadd.f32 %v2011, %v2077
  %s2081 = scalar_lea.vmem %s6, 6
  %v2082 = vld [vmem:[%s2081] sm:$0x1]
  %v2084 = vsel %vm1666, %v2082, 0
  %2086 = vmatpush.bf16.msra.mxu0 0
  %2087 = vmatpush.bf16.msra.mxu0 0
  %2088 = vmatpush.bf16.msra.mxu0 0
  %2089 = vmatpush.bf16.msra.mxu0 0
  %2090 = vmatpush.bf16.msra.mxu0 0
  %2091 = vmatpush.bf16.msra.mxu0 0
  %2092 = vmatpush.bf16.msra.mxu0 %v1672
  %2093 = vmatpush.bf16.msra.mxu0 %v1663
  %2094 = vmatmul.bf16.gmra.mxu0 %v2084
  %v2095 = vpop.f32.mrf.mxu0
  %v2096 = vadd.f32 0.0, %v2095
  %v2097 = vpop.f32.mrf.mxu0
  %2098 = vdwg.mxu0
  %v2099 = vpack.c.bf16 %v2096, %v2096
  %s2100 = scalar_lea.vmem %s7, 192
  %v2101 = vld [vmem:[%s2100] sm:$0xf]
  %v2102 = vld [vmem:[%s2100 + $0x4] sm:$0xf]
  %v2103 = vld [vmem:[%s2100 + $0x8] sm:$0xf]
  %v2104 = vld [vmem:[%s2100 + $0xc] sm:$0xf]
  %v2105 = vld [vmem:[%s2100 + $0x10] sm:$0xf]
  %v2106 = vld [vmem:[%s2100 + $0x14] sm:$0xf]
  %v2107 = vld [vmem:[%s2100 + $0x18] sm:$0xf]
  %v2108 = vld [vmem:[%s2100 + $0x1c] sm:$0xf]
  %v2117 = vunpack.c.l.b16 %v2101
  %v2118 = vunpack.c.l.b16 %v2102
  %v2119 = vunpack.c.l.b16 %v2103
  %v2120 = vunpack.c.l.b16 %v2104
  %v2121 = vunpack.c.l.b16 %v2105
  %v2122 = vunpack.c.l.b16 %v2106
  %v2123 = vunpack.c.l.b16 %v2107
  %v2124 = vunpack.c.l.b16 %v2108
  %v2125 = vpack.c.b16 %v2118, %v2117
  %v2126 = vpack.c.b16 %v2120, %v2119
  %v2127 = vpack.c.b16 %v2122, %v2121
  %v2128 = vpack.c.b16 %v2124, %v2123
  %v2134 = vsel %vm1748, %v2099, 0
  %2136 = vmatpush.bf16.msra.mxu0 0
  %2137 = vmatpush.bf16.msra.mxu0 0
  %2138 = vmatpush.bf16.msra.mxu0 0
  %2139 = vmatpush.bf16.msra.mxu0 0
  %2140 = vmatpush.bf16.msra.mxu0 %v2128
  %2141 = vmatpush.bf16.msra.mxu0 %v2127
  %2142 = vmatpush.bf16.msra.mxu0 %v2126
  %2143 = vmatpush.bf16.msra.mxu0 %v2125
  %2144 = vmatmul.bf16.gmra.mxu0 %v2134
  %v2145 = vpop.f32.mrf.mxu0
  %v2146 = vadd.f32 0.0, %v2145
  %v2147 = vpop.f32.mrf.mxu0
  %2148 = vdwg.mxu0
  %v2149 = vadd.f32 %v2080, %v2146
  %s2150 = scalar_lea.vmem %s6, 7
  %v2151 = vld [vmem:[%s2150] sm:$0x1]
  %v2153 = vsel %vm1666, %v2151, 0
  %2155 = vmatpush.bf16.msra.mxu0 0
  %2156 = vmatpush.bf16.msra.mxu0 0
  %2157 = vmatpush.bf16.msra.mxu0 0
  %2158 = vmatpush.bf16.msra.mxu0 0
  %2159 = vmatpush.bf16.msra.mxu0 0
  %2160 = vmatpush.bf16.msra.mxu0 0
  %2161 = vmatpush.bf16.msra.mxu0 %v1672
  %2162 = vmatpush.bf16.msra.mxu0 %v1663
  %2163 = vmatmul.bf16.gmra.mxu0 %v2153
  %v2164 = vpop.f32.mrf.mxu0
  %v2165 = vadd.f32 0.0, %v2164
  %v2166 = vpop.f32.mrf.mxu0
  %2167 = vdwg.mxu0
  %v2168 = vpack.c.bf16 %v2165, %v2165
  %s2169 = scalar_lea.vmem %s7, 224
  %v2170 = vld [vmem:[%s2169] sm:$0xf]
  %v2171 = vld [vmem:[%s2169 + $0x4] sm:$0xf]
  %v2172 = vld [vmem:[%s2169 + $0x8] sm:$0xf]
  %v2173 = vld [vmem:[%s2169 + $0xc] sm:$0xf]
  %v2174 = vld [vmem:[%s2169 + $0x10] sm:$0xf]
  %v2175 = vld [vmem:[%s2169 + $0x14] sm:$0xf]
  %v2176 = vld [vmem:[%s2169 + $0x18] sm:$0xf]
  %v2177 = vld [vmem:[%s2169 + $0x1c] sm:$0xf]
  %v2186 = vunpack.c.l.b16 %v2170
  %v2187 = vunpack.c.l.b16 %v2171
  %v2188 = vunpack.c.l.b16 %v2172
  %v2189 = vunpack.c.l.b16 %v2173
  %v2190 = vunpack.c.l.b16 %v2174
  %v2191 = vunpack.c.l.b16 %v2175
  %v2192 = vunpack.c.l.b16 %v2176
  %v2193 = vunpack.c.l.b16 %v2177
  %v2194 = vpack.c.b16 %v2187, %v2186
  %v2195 = vpack.c.b16 %v2189, %v2188
  %v2196 = vpack.c.b16 %v2191, %v2190
  %v2197 = vpack.c.b16 %v2193, %v2192
  %v2203 = vsel %vm1748, %v2168, 0
  %2205 = vmatpush.bf16.msra.mxu0 0
  %2206 = vmatpush.bf16.msra.mxu0 0
  %2207 = vmatpush.bf16.msra.mxu0 0
  %2208 = vmatpush.bf16.msra.mxu0 0
  %2209 = vmatpush.bf16.msra.mxu0 %v2197
  %2210 = vmatpush.bf16.msra.mxu0 %v2196
  %2211 = vmatpush.bf16.msra.mxu0 %v2195
  %2212 = vmatpush.bf16.msra.mxu0 %v2194
  %2213 = vmatmul.bf16.gmra.mxu0 %v2203
  %v2214 = vpop.f32.mrf.mxu0
  %v2215 = vadd.f32 0.0, %v2214
  %v2216 = vpop.f32.mrf.mxu0
  %2217 = vdwg.mxu0
  %v2218 = vadd.f32 %v2149, %v2215
  %s2219 = scalar_lea.vmem %s6, 8
  %v2220 = vld [vmem:[%s2219] sm:$0x1]
  %v2222 = vsel %vm1666, %v2220, 0
  %2224 = vmatpush.bf16.msra.mxu0 0
  %2225 = vmatpush.bf16.msra.mxu0 0
  %2226 = vmatpush.bf16.msra.mxu0 0
  %2227 = vmatpush.bf16.msra.mxu0 0
  %2228 = vmatpush.bf16.msra.mxu0 0
  %2229 = vmatpush.bf16.msra.mxu0 0
  %2230 = vmatpush.bf16.msra.mxu0 %v1672
  %2231 = vmatpush.bf16.msra.mxu0 %v1663
  %2232 = vmatmul.bf16.gmra.mxu0 %v2222
  %v2233 = vpop.f32.mrf.mxu0
  %v2234 = vadd.f32 0.0, %v2233
  %v2235 = vpop.f32.mrf.mxu0
  %2236 = vdwg.mxu0
  %v2237 = vpack.c.bf16 %v2234, %v2234
  %s2238 = scalar_lea.vmem %s7, 256
  %v2239 = vld [vmem:[%s2238] sm:$0xf]
  %v2240 = vld [vmem:[%s2238 + $0x4] sm:$0xf]
  %v2241 = vld [vmem:[%s2238 + $0x8] sm:$0xf]
  %v2242 = vld [vmem:[%s2238 + $0xc] sm:$0xf]
  %v2243 = vld [vmem:[%s2238 + $0x10] sm:$0xf]
  %v2244 = vld [vmem:[%s2238 + $0x14] sm:$0xf]
  %v2245 = vld [vmem:[%s2238 + $0x18] sm:$0xf]
  %v2246 = vld [vmem:[%s2238 + $0x1c] sm:$0xf]
  %v2255 = vunpack.c.l.b16 %v2239
  %v2256 = vunpack.c.l.b16 %v2240
  %v2257 = vunpack.c.l.b16 %v2241
  %v2258 = vunpack.c.l.b16 %v2242
  %v2259 = vunpack.c.l.b16 %v2243
  %v2260 = vunpack.c.l.b16 %v2244
  %v2261 = vunpack.c.l.b16 %v2245
  %v2262 = vunpack.c.l.b16 %v2246
  %v2263 = vpack.c.b16 %v2256, %v2255
  %v2264 = vpack.c.b16 %v2258, %v2257
  %v2265 = vpack.c.b16 %v2260, %v2259
  %v2266 = vpack.c.b16 %v2262, %v2261
  %v2272 = vsel %vm1748, %v2237, 0
  %2274 = vmatpush.bf16.msra.mxu0 0
  %2275 = vmatpush.bf16.msra.mxu0 0
  %2276 = vmatpush.bf16.msra.mxu0 0
  %2277 = vmatpush.bf16.msra.mxu0 0
  %2278 = vmatpush.bf16.msra.mxu0 %v2266
  %2279 = vmatpush.bf16.msra.mxu0 %v2265
  %2280 = vmatpush.bf16.msra.mxu0 %v2264
  %2281 = vmatpush.bf16.msra.mxu0 %v2263
  %2282 = vmatmul.bf16.gmra.mxu0 %v2272
  %v2283 = vpop.f32.mrf.mxu0
  %v2284 = vadd.f32 0.0, %v2283
  %v2285 = vpop.f32.mrf.mxu0
  %2286 = vdwg.mxu0
  %v2287 = vadd.f32 %v2218, %v2284
  %v2288 = vld [vmem:[%s8] sm:$0x1]
  %v2290 = vperm.slane %v2288, 0
  %v2292 = vadd.f32 %v2287, %v2290
  %v2293 = vmax.f32 %v2292, 0.0
  %v2294 = vpack.c.bf16 %v2293, %v2293
  %v2295 = vld [vmem:[%s14] sm:$0x1]
  %v2296 = vld [vmem:[%s11] sm:$0xff]
  %v2297 = vld [vmem:[%s11 + $0x8] sm:$0xff]
  %v2298 = vld [vmem:[%s15] sm:$0x1]
  %v2299 = vld [vmem:[%s12] sm:$0x77]
  %v2300 = vld [vmem:[%s12 + $0x8] sm:$0x77]
  %v2303 = vunpack.c.l.b16 %v2299
  %v2304 = vunpack.c.h.b16 %v2299
  %v2305 = vunpack.c.l.b16 %v2300
  %v2306 = vunpack.c.h.b16 %v2300
  %v2307 = vpack.c.b16 %v2303, %v2303
  %v2308 = vpack.c.b16 %v2304, %v2304
  %v2309 = vpack.c.b16 %v2305, %v2305
  %v2310 = vpack.c.b16 %v2306, %v2306
  %vm2311 = vcmask 48128
  %v2313 = vsel %vm2311, %v2298, 0
  %vm2315 = vcmask 1042432
  %v2317 = vsel %vm2315, %v2307, 0
  %v2320 = vsel %vm2315, %v2308, 0
  %v2323 = vsel %vm2315, %v2309, 0
  %v2326 = vsel %vm2315, %v2310, 0
  %2328 = vmatpush.bf16.msra.mxu0 0
  %2329 = vmatpush.bf16.msra.mxu0 0
  %2330 = vmatpush.bf16.msra.mxu0 0
  %2331 = vmatpush.bf16.msra.mxu0 0
  %2332 = vmatpush.bf16.msra.mxu0 0
  %2333 = vmatpush.bf16.msra.mxu0 0
  %2334 = vmatpush.bf16.msra.mxu0 0
  %2335 = vmatpush.bf16.msra.mxu0 %v2317
  %2336 = vmatmul.bf16.gmra.mxu0 %v2313
  %v2337 = vpop.f32.mrf.mxu0
  %v2338 = vadd.f32 0.0, %v2337
  %v2339 = vpop.f32.mrf.mxu0
  %2340 = vdwg.mxu0
  %2341 = vmatpush.bf16.msra.mxu0 0
  %2342 = vmatpush.bf16.msra.mxu0 0
  %2343 = vmatpush.bf16.msra.mxu0 0
  %2344 = vmatpush.bf16.msra.mxu0 0
  %2345 = vmatpush.bf16.msra.mxu0 0
  %2346 = vmatpush.bf16.msra.mxu0 0
  %2347 = vmatpush.bf16.msra.mxu0 0
  %2348 = vmatpush.bf16.msra.mxu0 %v2320
  %2349 = vmatmul.bf16.gmra.mxu0 %v2313
  %v2350 = vpop.f32.mrf.mxu0
  %v2351 = vadd.f32 0.0, %v2350
  %v2352 = vpop.f32.mrf.mxu0
  %2353 = vdwg.mxu0
  %2354 = vmatpush.bf16.msra.mxu0 0
  %2355 = vmatpush.bf16.msra.mxu0 0
  %2356 = vmatpush.bf16.msra.mxu0 0
  %2357 = vmatpush.bf16.msra.mxu0 0
  %2358 = vmatpush.bf16.msra.mxu0 0
  %2359 = vmatpush.bf16.msra.mxu0 0
  %2360 = vmatpush.bf16.msra.mxu0 0
  %2361 = vmatpush.bf16.msra.mxu0 %v2323
  %2362 = vmatmul.bf16.gmra.mxu0 %v2313
  %v2363 = vpop.f32.mrf.mxu0
  %v2364 = vadd.f32 0.0, %v2363
  %v2365 = vpop.f32.mrf.mxu0
  %2366 = vdwg.mxu0
  %2367 = vmatpush.bf16.msra.mxu0 0
  %2368 = vmatpush.bf16.msra.mxu0 0
  %2369 = vmatpush.bf16.msra.mxu0 0
  %2370 = vmatpush.bf16.msra.mxu0 0
  %2371 = vmatpush.bf16.msra.mxu0 0
  %2372 = vmatpush.bf16.msra.mxu0 0
  %2373 = vmatpush.bf16.msra.mxu0 0
  %2374 = vmatpush.bf16.msra.mxu0 %v2326
  %2375 = vmatmul.bf16.gmra.mxu0 %v2313
  %v2376 = vpop.f32.mrf.mxu0
  %v2377 = vadd.f32 0.0, %v2376
  %v2378 = vpop.f32.mrf.mxu0
  %2379 = vdwg.mxu0
  %v2382 = vunpack.c.l.b16 %v2296
  %v2383 = vunpack.c.h.b16 %v2296
  %v2384 = vunpack.c.l.b16 %v2297
  %v2385 = vunpack.c.h.b16 %v2297
  %v2386 = vpack.c.b16 %v2382, %v2382
  %v2387 = vpack.c.b16 %v2383, %v2383
  %v2388 = vpack.c.b16 %v2384, %v2384
  %v2389 = vpack.c.b16 %v2385, %v2385
  %vm2390 = vcmask 64512
  %v2392 = vsel %vm2390, %v2295, 0
  %vm2394 = vcmask 1043456
  %v2396 = vsel %vm2394, %v2386, 0
  %v2399 = vsel %vm2394, %v2387, 0
  %v2402 = vsel %vm2394, %v2388, 0
  %v2405 = vsel %vm2394, %v2389, 0
  %2407 = vmatpush.bf16.msra.mxu0 0
  %2408 = vmatpush.bf16.msra.mxu0 0
  %2409 = vmatpush.bf16.msra.mxu0 0
  %2410 = vmatpush.bf16.msra.mxu0 0
  %2411 = vmatpush.bf16.msra.mxu0 0
  %2412 = vmatpush.bf16.msra.mxu0 0
  %2413 = vmatpush.bf16.msra.mxu0 0
  %2414 = vmatpush.bf16.msra.mxu0 %v2396
  %2415 = vmatmul.bf16.gmra.mxu0 %v2392
  %v2416 = vpop.f32.mrf.mxu0
  %v2417 = vadd.f32 %v2338, %v2416
  %v2418 = vpop.f32.mrf.mxu0
  %2419 = vdwg.mxu0
  %2420 = vmatpush.bf16.msra.mxu0 0
  %2421 = vmatpush.bf16.msra.mxu0 0
  %2422 = vmatpush.bf16.msra.mxu0 0
  %2423 = vmatpush.bf16.msra.mxu0 0
  %2424 = vmatpush.bf16.msra.mxu0 0
  %2425 = vmatpush.bf16.msra.mxu0 0
  %2426 = vmatpush.bf16.msra.mxu0 0
  %2427 = vmatpush.bf16.msra.mxu0 %v2399
  %2428 = vmatmul.bf16.gmra.mxu0 %v2392
  %v2429 = vpop.f32.mrf.mxu0
  %v2430 = vadd.f32 %v2351, %v2429
  %v2431 = vpop.f32.mrf.mxu0
  %2432 = vdwg.mxu0
  %2433 = vmatpush.bf16.msra.mxu0 0
  %2434 = vmatpush.bf16.msra.mxu0 0
  %2435 = vmatpush.bf16.msra.mxu0 0
  %2436 = vmatpush.bf16.msra.mxu0 0
  %2437 = vmatpush.bf16.msra.mxu0 0
  %2438 = vmatpush.bf16.msra.mxu0 0
  %2439 = vmatpush.bf16.msra.mxu0 0
  %2440 = vmatpush.bf16.msra.mxu0 %v2402
  %2441 = vmatmul.bf16.gmra.mxu0 %v2392
  %v2442 = vpop.f32.mrf.mxu0
  %v2443 = vadd.f32 %v2364, %v2442
  %v2444 = vpop.f32.mrf.mxu0
  %2445 = vdwg.mxu0
  %2446 = vmatpush.bf16.msra.mxu0 0
  %2447 = vmatpush.bf16.msra.mxu0 0
  %2448 = vmatpush.bf16.msra.mxu0 0
  %2449 = vmatpush.bf16.msra.mxu0 0
  %2450 = vmatpush.bf16.msra.mxu0 0
  %2451 = vmatpush.bf16.msra.mxu0 0
  %2452 = vmatpush.bf16.msra.mxu0 0
  %2453 = vmatpush.bf16.msra.mxu0 %v2405
  %2454 = vmatmul.bf16.gmra.mxu0 %v2392
  %v2455 = vpop.f32.mrf.mxu0
  %v2456 = vadd.f32 %v2377, %v2455
  %v2457 = vpop.f32.mrf.mxu0
  %2458 = vdwg.mxu0
  %v2459 = vld [vmem:[%s13] sm:$0xf]
  %v2461 = vperm.slane %v2459, 0
  %v2462 = vperm.slane %v2459, 1
  %v2463 = vperm.slane %v2459, 2
  %v2464 = vperm.slane %v2459, 3
  %v2469 = vadd.f32 %v2417, %v2461
  %v2470 = vadd.f32 %v2430, %v2462
  %v2471 = vadd.f32 %v2443, %v2463
  %v2472 = vadd.f32 %v2456, %v2464
  %v2473 = vld [vmem:[%s9] sm:$0x1]
  %vm2474 = vcmask 15360
  %v2476 = vsel %vm2474, %v2473, 0
  %v2479 = vsel %vm1670, %v2294, 0
  %2481 = vmatpush.bf16.msra.mxu0 0
  %2482 = vmatpush.bf16.msra.mxu0 0
  %2483 = vmatpush.bf16.msra.mxu0 0
  %2484 = vmatpush.bf16.msra.mxu0 0
  %2485 = vmatpush.bf16.msra.mxu0 0
  %2486 = vmatpush.bf16.msra.mxu0 0
  %2487 = vmatpush.bf16.msra.mxu0 0
  %2488 = vmatpush.bf16.msra.mxu0 %v2479
  %2489 = vmatmul.bf16.gmra.mxu0 %v2476
  %v2490 = vpop.f32.mrf.mxu0
  %v2491 = vadd.f32 0.0, %v2490
  %v2492 = vpop.f32.mrf.mxu0
  %2493 = vdwg.mxu0
  %v2494 = vpack.c.bf16 %v2491, %v2491
  %v2495 = vld [vmem:[%s10] sm:$0xff]
  %v2496 = vld [vmem:[%s10 + $0x8] sm:$0xff]
  %v2497 = vld [vmem:[%s10 + $0x10] sm:$0xff]
  %v2498 = vld [vmem:[%s10 + $0x18] sm:$0xff]
  %v2499 = vld [vmem:[%s10 + $0x20] sm:$0xff]
  %v2500 = vld [vmem:[%s10 + $0x28] sm:$0xff]
  %v2501 = vld [vmem:[%s10 + $0x30] sm:$0xff]
  %v2502 = vld [vmem:[%s10 + $0x38] sm:$0xff]
  %v2503 = vld [vmem:[%s10 + $0x40] sm:$0xff]
  %v2504 = vld [vmem:[%s10 + $0x48] sm:$0xff]
  %v2505 = vld [vmem:[%s10 + $0x50] sm:$0xff]
  %v2506 = vld [vmem:[%s10 + $0x58] sm:$0xff]
  %v2507 = vld [vmem:[%s10 + $0x60] sm:$0xff]
  %v2508 = vld [vmem:[%s10 + $0x68] sm:$0xff]
  %v2509 = vld [vmem:[%s10 + $0x70] sm:$0xff]
  %v2510 = vld [vmem:[%s10 + $0x78] sm:$0xff]
  %v2527 = vunpack.c.l.b16 %v2495
  %v2528 = vunpack.c.h.b16 %v2495
  %v2529 = vunpack.c.l.b16 %v2496
  %v2530 = vunpack.c.h.b16 %v2496
  %v2531 = vunpack.c.l.b16 %v2497
  %v2532 = vunpack.c.h.b16 %v2497
  %v2533 = vunpack.c.l.b16 %v2498
  %v2534 = vunpack.c.h.b16 %v2498
  %v2535 = vunpack.c.l.b16 %v2499
  %v2536 = vunpack.c.h.b16 %v2499
  %v2537 = vunpack.c.l.b16 %v2500
  %v2538 = vunpack.c.h.b16 %v2500
  %v2539 = vunpack.c.l.b16 %v2501
  %v2540 = vunpack.c.h.b16 %v2501
  %v2541 = vunpack.c.l.b16 %v2502
  %v2542 = vunpack.c.h.b16 %v2502
  %v2543 = vunpack.c.l.b16 %v2503
  %v2544 = vunpack.c.h.b16 %v2503
  %v2545 = vunpack.c.l.b16 %v2504
  %v2546 = vunpack.c.h.b16 %v2504
  %v2547 = vunpack.c.l.b16 %v2505
  %v2548 = vunpack.c.h.b16 %v2505
  %v2549 = vunpack.c.l.b16 %v2506
  %v2550 = vunpack.c.h.b16 %v2506
  %v2551 = vunpack.c.l.b16 %v2507
  %v2552 = vunpack.c.h.b16 %v2507
  %v2553 = vunpack.c.l.b16 %v2508
  %v2554 = vunpack.c.h.b16 %v2508
  %v2555 = vunpack.c.l.b16 %v2509
  %v2556 = vunpack.c.h.b16 %v2509
  %v2557 = vunpack.c.l.b16 %v2510
  %v2558 = vunpack.c.h.b16 %v2510
  %v2559 = vpack.c.b16 %v2531, %v2527
  %v2560 = vpack.c.b16 %v2532, %v2528
  %v2561 = vpack.c.b16 %v2533, %v2529
  %v2562 = vpack.c.b16 %v2534, %v2530
  %v2563 = vpack.c.b16 %v2539, %v2535
  %v2564 = vpack.c.b16 %v2540, %v2536
  %v2565 = vpack.c.b16 %v2541, %v2537
  %v2566 = vpack.c.b16 %v2542, %v2538
  %v2567 = vpack.c.b16 %v2547, %v2543
  %v2568 = vpack.c.b16 %v2548, %v2544
  %v2569 = vpack.c.b16 %v2549, %v2545
  %v2570 = vpack.c.b16 %v2550, %v2546
  %v2571 = vpack.c.b16 %v2555, %v2551
  %v2572 = vpack.c.b16 %v2556, %v2552
  %v2573 = vpack.c.b16 %v2557, %v2553
  %v2574 = vpack.c.b16 %v2558, %v2554
  %v2592 = vsel %vm1748, %v2494, 0
  %2594 = vmatpush.bf16.msra.mxu0 0
  %2595 = vmatpush.bf16.msra.mxu0 0
  %2596 = vmatpush.bf16.msra.mxu0 0
  %2597 = vmatpush.bf16.msra.mxu0 0
  %2598 = vmatpush.bf16.msra.mxu0 %v2571
  %2599 = vmatpush.bf16.msra.mxu0 %v2567
  %2600 = vmatpush.bf16.msra.mxu0 %v2563
  %2601 = vmatpush.bf16.msra.mxu0 %v2559
  %2602 = vmatmul.bf16.gmra.mxu0 %v2592
  %v2603 = vpop.f32.mrf.mxu0
  %v2604 = vadd.f32 0.0, %v2603
  %v2605 = vpop.f32.mrf.mxu0
  %2606 = vdwg.mxu0
  %2607 = vmatpush.bf16.msra.mxu0 0
  %2608 = vmatpush.bf16.msra.mxu0 0
  %2609 = vmatpush.bf16.msra.mxu0 0
  %2610 = vmatpush.bf16.msra.mxu0 0
  %2611 = vmatpush.bf16.msra.mxu0 %v2572
  %2612 = vmatpush.bf16.msra.mxu0 %v2568
  %2613 = vmatpush.bf16.msra.mxu0 %v2564
  %2614 = vmatpush.bf16.msra.mxu0 %v2560
  %2615 = vmatmul.bf16.gmra.mxu0 %v2592
  %v2616 = vpop.f32.mrf.mxu0
  %v2617 = vadd.f32 0.0, %v2616
  %v2618 = vpop.f32.mrf.mxu0
  %2619 = vdwg.mxu0
  %2620 = vmatpush.bf16.msra.mxu0 0
  %2621 = vmatpush.bf16.msra.mxu0 0
  %2622 = vmatpush.bf16.msra.mxu0 0
  %2623 = vmatpush.bf16.msra.mxu0 0
  %2624 = vmatpush.bf16.msra.mxu0 %v2573
  %2625 = vmatpush.bf16.msra.mxu0 %v2569
  %2626 = vmatpush.bf16.msra.mxu0 %v2565
  %2627 = vmatpush.bf16.msra.mxu0 %v2561
  %2628 = vmatmul.bf16.gmra.mxu0 %v2592
  %v2629 = vpop.f32.mrf.mxu0
  %v2630 = vadd.f32 0.0, %v2629
  %v2631 = vpop.f32.mrf.mxu0
  %2632 = vdwg.mxu0
  %2633 = vmatpush.bf16.msra.mxu0 0
  %2634 = vmatpush.bf16.msra.mxu0 0
  %2635 = vmatpush.bf16.msra.mxu0 0
  %2636 = vmatpush.bf16.msra.mxu0 0
  %2637 = vmatpush.bf16.msra.mxu0 %v2574
  %2638 = vmatpush.bf16.msra.mxu0 %v2570
  %2639 = vmatpush.bf16.msra.mxu0 %v2566
  %2640 = vmatpush.bf16.msra.mxu0 %v2562
  %2641 = vmatmul.bf16.gmra.mxu0 %v2592
  %v2642 = vpop.f32.mrf.mxu0
  %v2643 = vadd.f32 0.0, %v2642
  %v2644 = vpop.f32.mrf.mxu0
  %2645 = vdwg.mxu0
  %v2646 = vadd.f32 %v2469, %v2604
  %v2647 = vadd.f32 %v2470, %v2617
  %v2648 = vadd.f32 %v2471, %v2630
  %v2649 = vadd.f32 %v2472, %v2643
  %v2650 = vmax.f32 %v2646, 0.0
  %v2651 = vmax.f32 %v2647, 0.0
  %v2652 = vmax.f32 %v2648, 0.0
  %v2653 = vmax.f32 %v2649, 0.0
  %v2654 = vpack.c.bf16 %v2650, %v2650
  %v2655 = vpack.c.bf16 %v2651, %v2651
  %v2656 = vpack.c.bf16 %v2652, %v2652
  %v2657 = vpack.c.bf16 %v2653, %v2653
  %v2658 = vld [vmem:[%s16] sm:$0xf]
  %v2659 = vld [vmem:[%s16 + $0x4] sm:$0xf]
  %v2660 = vld [vmem:[%s16 + $0x8] sm:$0xf]
  %v2661 = vld [vmem:[%s16 + $0xc] sm:$0xf]
  %v2662 = vld [vmem:[%s16 + $0x10] sm:$0xf]
  %v2663 = vld [vmem:[%s16 + $0x14] sm:$0xf]
  %v2664 = vld [vmem:[%s16 + $0x18] sm:$0xf]
  %v2665 = vld [vmem:[%s16 + $0x1c] sm:$0xf]
  %v2666 = vld [vmem:[%s16 + $0x20] sm:$0xf]
  %v2667 = vld [vmem:[%s16 + $0x24] sm:$0xf]
  %v2668 = vld [vmem:[%s16 + $0x28] sm:$0xf]
  %v2669 = vld [vmem:[%s16 + $0x2c] sm:$0xf]
  %v2670 = vld [vmem:[%s16 + $0x30] sm:$0xf]
  %v2671 = vld [vmem:[%s16 + $0x34] sm:$0xf]
  %v2672 = vld [vmem:[%s16 + $0x38] sm:$0xf]
  %v2673 = vld [vmem:[%s16 + $0x3c] sm:$0xf]
  %v2674 = vld [vmem:[%s16 + $0x40] sm:$0xf]
  %v2675 = vld [vmem:[%s16 + $0x44] sm:$0xf]
  %v2676 = vld [vmem:[%s16 + $0x48] sm:$0xf]
  %v2677 = vld [vmem:[%s16 + $0x4c] sm:$0xf]
  %v2678 = vld [vmem:[%s16 + $0x50] sm:$0xf]
  %v2679 = vld [vmem:[%s16 + $0x54] sm:$0xf]
  %v2680 = vld [vmem:[%s16 + $0x58] sm:$0xf]
  %v2681 = vld [vmem:[%s16 + $0x5c] sm:$0xf]
  %v2682 = vld [vmem:[%s16 + $0x60] sm:$0xf]
  %v2683 = vld [vmem:[%s16 + $0x64] sm:$0xf]
  %v2684 = vld [vmem:[%s16 + $0x68] sm:$0xf]
  %v2685 = vld [vmem:[%s16 + $0x6c] sm:$0xf]
  %v2686 = vld [vmem:[%s16 + $0x70] sm:$0xf]
  %v2687 = vld [vmem:[%s16 + $0x74] sm:$0xf]
  %v2688 = vld [vmem:[%s16 + $0x78] sm:$0xf]
  %v2689 = vld [vmem:[%s16 + $0x7c] sm:$0xf]
  %v2690 = vld [vmem:[%s16 + $0x80] sm:$0xf]
  %v2691 = vld [vmem:[%s16 + $0x84] sm:$0xf]
  %v2692 = vld [vmem:[%s16 + $0x88] sm:$0xf]
  %v2693 = vld [vmem:[%s16 + $0x8c] sm:$0xf]
  %v2694 = vld [vmem:[%s16 + $0x90] sm:$0xf]
  %v2695 = vld [vmem:[%s16 + $0x94] sm:$0xf]
  %v2696 = vld [vmem:[%s16 + $0x98] sm:$0xf]
  %v2697 = vld [vmem:[%s16 + $0x9c] sm:$0xf]
  %v2698 = vld [vmem:[%s16 + $0xa0] sm:$0xf]
  %v2699 = vld [vmem:[%s16 + $0xa4] sm:$0xf]
  %v2700 = vld [vmem:[%s16 + $0xa8] sm:$0xf]
  %v2701 = vld [vmem:[%s16 + $0xac] sm:$0xf]
  %v2702 = vld [vmem:[%s16 + $0xb0] sm:$0xf]
  %v2703 = vld [vmem:[%s16 + $0xb4] sm:$0xf]
  %v2704 = vld [vmem:[%s16 + $0xb8] sm:$0xf]
  %v2705 = vld [vmem:[%s16 + $0xbc] sm:$0xf]
  %v2706 = vld [vmem:[%s16 + $0xc0] sm:$0xf]
  %v2707 = vld [vmem:[%s16 + $0xc4] sm:$0xf]
  %v2708 = vld [vmem:[%s16 + $0xc8] sm:$0xf]
  %v2709 = vld [vmem:[%s16 + $0xcc] sm:$0xf]
  %v2710 = vld [vmem:[%s16 + $0xd0] sm:$0xf]
  %v2711 = vld [vmem:[%s16 + $0xd4] sm:$0xf]
  %v2712 = vld [vmem:[%s16 + $0xd8] sm:$0xf]
  %v2713 = vld [vmem:[%s16 + $0xdc] sm:$0xf]
  %v2714 = vld [vmem:[%s16 + $0xe0] sm:$0xf]
  %v2715 = vld [vmem:[%s16 + $0xe4] sm:$0xf]
  %v2716 = vld [vmem:[%s16 + $0xe8] sm:$0xf]
  %v2717 = vld [vmem:[%s16 + $0xec] sm:$0xf]
  %v2718 = vld [vmem:[%s16 + $0xf0] sm:$0xf]
  %v2719 = vld [vmem:[%s16 + $0xf4] sm:$0xf]
  %v2720 = vld [vmem:[%s16 + $0xf8] sm:$0xf]
  %v2721 = vld [vmem:[%s16 + $0xfc] sm:$0xf]
  %v2722 = vld [vmem:[#allocation2] sm:$0x1]
  %v2724 = vperm.slane %v2722, 0
  %v2790 = vunpack.c.l.b16 %v2658
  %v2791 = vunpack.c.l.b16 %v2659
  %v2792 = vunpack.c.l.b16 %v2660
  %v2793 = vunpack.c.l.b16 %v2661
  %v2794 = vunpack.c.l.b16 %v2662
  %v2795 = vunpack.c.l.b16 %v2663
  %v2796 = vunpack.c.l.b16 %v2664
  %v2797 = vunpack.c.l.b16 %v2665
  %v2798 = vunpack.c.l.b16 %v2666
  %v2799 = vunpack.c.l.b16 %v2667
  %v2800 = vunpack.c.l.b16 %v2668
  %v2801 = vunpack.c.l.b16 %v2669
  %v2802 = vunpack.c.l.b16 %v2670
  %v2803 = vunpack.c.l.b16 %v2671
  %v2804 = vunpack.c.l.b16 %v2672
  %v2805 = vunpack.c.l.b16 %v2673
  %v2806 = vunpack.c.l.b16 %v2674
  %v2807 = vunpack.c.l.b16 %v2675
  %v2808 = vunpack.c.l.b16 %v2676
  %v2809 = vunpack.c.l.b16 %v2677
  %v2810 = vunpack.c.l.b16 %v2678
  %v2811 = vunpack.c.l.b16 %v2679
  %v2812 = vunpack.c.l.b16 %v2680
  %v2813 = vunpack.c.l.b16 %v2681
  %v2814 = vunpack.c.l.b16 %v2682
  %v2815 = vunpack.c.l.b16 %v2683
  %v2816 = vunpack.c.l.b16 %v2684
  %v2817 = vunpack.c.l.b16 %v2685
  %v2818 = vunpack.c.l.b16 %v2686
  %v2819 = vunpack.c.l.b16 %v2687
  %v2820 = vunpack.c.l.b16 %v2688
  %v2821 = vunpack.c.l.b16 %v2689
  %v2822 = vunpack.c.l.b16 %v2690
  %v2823 = vunpack.c.l.b16 %v2691
  %v2824 = vunpack.c.l.b16 %v2692
  %v2825 = vunpack.c.l.b16 %v2693
  %v2826 = vunpack.c.l.b16 %v2694
  %v2827 = vunpack.c.l.b16 %v2695
  %v2828 = vunpack.c.l.b16 %v2696
  %v2829 = vunpack.c.l.b16 %v2697
  %v2830 = vunpack.c.l.b16 %v2698
  %v2831 = vunpack.c.l.b16 %v2699
  %v2832 = vunpack.c.l.b16 %v2700
  %v2833 = vunpack.c.l.b16 %v2701
  %v2834 = vunpack.c.l.b16 %v2702
  %v2835 = vunpack.c.l.b16 %v2703
  %v2836 = vunpack.c.l.b16 %v2704
  %v2837 = vunpack.c.l.b16 %v2705
  %v2838 = vunpack.c.l.b16 %v2706
  %v2839 = vunpack.c.l.b16 %v2707
  %v2840 = vunpack.c.l.b16 %v2708
  %v2841 = vunpack.c.l.b16 %v2709
  %v2842 = vunpack.c.l.b16 %v2710
  %v2843 = vunpack.c.l.b16 %v2711
  %v2844 = vunpack.c.l.b16 %v2712
  %v2845 = vunpack.c.l.b16 %v2713
  %v2846 = vunpack.c.l.b16 %v2714
  %v2847 = vunpack.c.l.b16 %v2715
  %v2848 = vunpack.c.l.b16 %v2716
  %v2849 = vunpack.c.l.b16 %v2717
  %v2850 = vunpack.c.l.b16 %v2718
  %v2851 = vunpack.c.l.b16 %v2719
  %v2852 = vunpack.c.l.b16 %v2720
  %v2853 = vunpack.c.l.b16 %v2721
  %v2854 = vpack.c.b16 %v2791, %v2790
  %v2855 = vpack.c.b16 %v2793, %v2792
  %v2856 = vpack.c.b16 %v2795, %v2794
  %v2857 = vpack.c.b16 %v2797, %v2796
  %v2858 = vpack.c.b16 %v2799, %v2798
  %v2859 = vpack.c.b16 %v2801, %v2800
  %v2860 = vpack.c.b16 %v2803, %v2802
  %v2861 = vpack.c.b16 %v2805, %v2804
  %v2862 = vpack.c.b16 %v2807, %v2806
  %v2863 = vpack.c.b16 %v2809, %v2808
  %v2864 = vpack.c.b16 %v2811, %v2810
  %v2865 = vpack.c.b16 %v2813, %v2812
  %v2866 = vpack.c.b16 %v2815, %v2814
  %v2867 = vpack.c.b16 %v2817, %v2816
  %v2868 = vpack.c.b16 %v2819, %v2818
  %v2869 = vpack.c.b16 %v2821, %v2820
  %v2870 = vpack.c.b16 %v2823, %v2822
  %v2871 = vpack.c.b16 %v2825, %v2824
  %v2872 = vpack.c.b16 %v2827, %v2826
  %v2873 = vpack.c.b16 %v2829, %v2828
  %v2874 = vpack.c.b16 %v2831, %v2830
  %v2875 = vpack.c.b16 %v2833, %v2832
  %v2876 = vpack.c.b16 %v2835, %v2834
  %v2877 = vpack.c.b16 %v2837, %v2836
  %v2878 = vpack.c.b16 %v2839, %v2838
  %v2879 = vpack.c.b16 %v2841, %v2840
  %v2880 = vpack.c.b16 %v2843, %v2842
  %v2881 = vpack.c.b16 %v2845, %v2844
  %v2882 = vpack.c.b16 %v2847, %v2846
  %v2883 = vpack.c.b16 %v2849, %v2848
  %v2884 = vpack.c.b16 %v2851, %v2850
  %v2885 = vpack.c.b16 %v2853, %v2852
  %2918 = vmatpush.bf16.msra.mxu0 %v2861
  %2919 = vmatpush.bf16.msra.mxu0 %v2860
  %2920 = vmatpush.bf16.msra.mxu0 %v2859
  %2921 = vmatpush.bf16.msra.mxu0 %v2858
  %2922 = vmatpush.bf16.msra.mxu0 %v2857
  %2923 = vmatpush.bf16.msra.mxu0 %v2856
  %2924 = vmatpush.bf16.msra.mxu0 %v2855
  %2925 = vmatpush.bf16.msra.mxu0 %v2854
  %2926 = vmatmul.bf16.gmra.mxu0 %v2654
  %v2927 = vpop.f32.mrf.mxu0
  %v2928 = vadd.f32 %v2724, %v2927
  %v2929 = vpop.f32.mrf.mxu0
  %2930 = vdwg.mxu0
  %2931 = vmatpush.bf16.msra.mxu0 %v2869
  %2932 = vmatpush.bf16.msra.mxu0 %v2868
  %2933 = vmatpush.bf16.msra.mxu0 %v2867
  %2934 = vmatpush.bf16.msra.mxu0 %v2866
  %2935 = vmatpush.bf16.msra.mxu0 %v2865
  %2936 = vmatpush.bf16.msra.mxu0 %v2864
  %2937 = vmatpush.bf16.msra.mxu0 %v2863
  %2938 = vmatpush.bf16.msra.mxu0 %v2862
  %2939 = vmatmul.bf16.gmra.mxu0 %v2655
  %v2940 = vpop.f32.mrf.mxu0
  %v2941 = vadd.f32 %v2928, %v2940
  %v2942 = vpop.f32.mrf.mxu0
  %2943 = vdwg.mxu0
  %2944 = vmatpush.bf16.msra.mxu0 %v2877
  %2945 = vmatpush.bf16.msra.mxu0 %v2876
  %2946 = vmatpush.bf16.msra.mxu0 %v2875
  %2947 = vmatpush.bf16.msra.mxu0 %v2874
  %2948 = vmatpush.bf16.msra.mxu0 %v2873
  %2949 = vmatpush.bf16.msra.mxu0 %v2872
  %2950 = vmatpush.bf16.msra.mxu0 %v2871
  %2951 = vmatpush.bf16.msra.mxu0 %v2870
  %2952 = vmatmul.bf16.gmra.mxu0 %v2656
  %v2953 = vpop.f32.mrf.mxu0
  %v2954 = vadd.f32 %v2941, %v2953
  %v2955 = vpop.f32.mrf.mxu0
  %2956 = vdwg.mxu0
  %2957 = vmatpush.bf16.msra.mxu0 %v2885
  %2958 = vmatpush.bf16.msra.mxu0 %v2884
  %2959 = vmatpush.bf16.msra.mxu0 %v2883
  %2960 = vmatpush.bf16.msra.mxu0 %v2882
  %2961 = vmatpush.bf16.msra.mxu0 %v2881
  %2962 = vmatpush.bf16.msra.mxu0 %v2880
  %2963 = vmatpush.bf16.msra.mxu0 %v2879
  %2964 = vmatpush.bf16.msra.mxu0 %v2878
  %2965 = vmatmul.bf16.gmra.mxu0 %v2657
  %v2966 = vpop.f32.mrf.mxu0
  %v2967 = vadd.f32 %v2954, %v2966
  %v2968 = vpop.f32.mrf.mxu0
  %2969 = vdwg.mxu0
  %vm2970 = vcmask 1024
  %2971 = vst.msk [vmem:[%s18] sm:$0x3] %vm2970, %v2967
  // Predicated region
  $region74: #{critic_cnn_forward.1} parent=0 // pred_check
    _
  $region75: #{critic_cnn_forward.1} parent=0 // pred_check_branch
    %2973 = sbr.rel (0) target = $region77
  $region76: #{critic_cnn_forward.1} parent=0 // pred_region
    _
  $region77: #{critic_cnn_forward.1} parent=0 // pred_fallthru
    _
  // Predicated region
  $region78: #{critic_cnn_forward.1} parent=0 // pred_check
    _
  $region79: #{critic_cnn_forward.1} parent=0 // pred_check_branch
    %2975 = sbr.rel (0) target = $region81
  $region80: #{critic_cnn_forward.1} parent=0 // pred_region
    _
  $region81: #{critic_cnn_forward.1} parent=0 // pred_fallthru
    _

</llo_original>
